<compile_context>
chip_gen: v7x
topology: tpu7x:2x2x1
jax: 0.10.0
libtpu: 0.0.40
codegen_flags: <defaults>
</compile_context>

<pallas_src>
import functools
import math

import jax
import jax.numpy as jnp
from jax.experimental import pallas as pl
from jax.experimental.pallas import tpu as pltpu


# ----------------------------------------------------------------------------
# Fused Pallas kernel: one block of `bt` batches per grid step.
# ----------------------------------------------------------------------------
def _fused_kernel(q_ref, k_ref, v_ref, w_ref, b_ref, o_ref, merged_ref,
                  *, h, topk, mxu_bf16):
    f32 = jnp.float32
    bt, sq, d_model = q_ref.shape
    sk = k_ref.shape[1]
    dk = d_model // h

    def mm(x):
        # bf16 MXU operands for projections / p.V / epilogue only; QK^T scores
        # are kept f32 so the top-k selection stays tie-free.
        return x.astype(jnp.bfloat16) if mxu_bf16 else x

    b_all = b_ref[...].astype(f32)                      # (4, D)

    # --- q / k / v projections on (bt*S, D) slabs: fills the MXU M dimension
    #     and amortises per-step cost across bt sequences. --------------------
    xq = q_ref[...].reshape(bt * sq, d_model)
    xk = k_ref[...].reshape(bt * sk, d_model)
    xv = v_ref[...].reshape(bt * sk, d_model)

    # w_ref[0] / b_all[0] already carry the 1/sqrt(dk) score scale (host-folded).
    q = jnp.dot(mm(xq), w_ref[0], preferred_element_type=f32) + b_all[0:1]
    k = jnp.dot(mm(xk), w_ref[1], preferred_element_type=f32) + b_all[1:2]
    v = jnp.dot(mm(xv), w_ref[2], preferred_element_type=f32) + b_all[2:3]

    q3 = q.reshape(bt, sq, d_model)
    k3 = k.reshape(bt, sk, d_model)
    v3 = v.reshape(bt, sk, d_model)

    neg_inf = jnp.float32(-jnp.inf)
    n_iter = min(topk, sk)            # topk >= Sk degenerates to full softmax

    # --- per-head top-k attention; heads taken as static lane slices ---------
    for i in range(h):
        lo, hi = i * dk, (i + 1) * dk
        q_i = q3[:, :, lo:hi]                           # (bt, Sq, dk)
        k_i = k3[:, :, lo:hi]                           # (bt, Sk, dk)
        v_i = v3[:, :, lo:hi]                           # (bt, Sk, dk)

        # scores always f32: contraction over the last dims, no explicit k^T.
        s = jnp.einsum('bqd,bkd->bqk', q_i, k_i,
                       preferred_element_type=f32)      # (bt, Sq, Sk)

        # top-k threshold per (batch, query) row via iterative max extraction.
        # Note: entries tied with the running max are removed together, so with
        # duplicate scores the selected set can exceed topk (tie-free in f32).
        work = s
        row_max = None
        thr = None
        for t in range(n_iter):
            cur = jnp.max(work, axis=-1, keepdims=True)  # XLU row reduce
            if t == 0:
                row_max = cur                            # reused for softmax shift
            thr = cur
            if t + 1 < n_iter:                           # skip dead last pass
                work = jnp.where(work >= cur, neg_inf, work)

        # masked softmax over the selected scores (single fused where).
        # TODO(synk): at large Sk, compact selected scores to (Sq, topk) before
        #             exp if profiling shows EUP saturation.
        p = jnp.where(s >= thr, jnp.exp(s - row_max), 0.0)
        denom = jnp.sum(p, axis=-1, keepdims=True)
        p = p / denom                                    # exact; denom is (bt,Sq,1)

        ctx_i = jnp.einsum('bqk,bkd->bqd', mm(p), mm(v_i),
                           preferred_element_type=f32)   # (bt, Sq, dk)

        # merge heads into a lane-dense (bt*Sq, D) slab (VMEM scratch).
        merged_ref[:, lo:hi] = ctx_i.reshape(bt * sq, dk)

    # --- output projection: ONE K=D matmul over the merged slab --------------
    merged = merged_ref[...]
    out = jnp.dot(mm(merged), w_ref[3], preferred_element_type=f32) + b_all[3:4]
    o_ref[...] = out.reshape(bt, sq, d_model).astype(o_ref.dtype)   # lane-dense store


# ----------------------------------------------------------------------------
# Batch-block heuristic: largest divisor of B keeping bt*Sq near the MXU target.
# ----------------------------------------------------------------------------
def _pick_batch_block(batch, seq_q, target_rows=256):
    cap = max(1, target_rows // max(seq_q, 1))
    bt = 1
    for cand in range(1, batch + 1):
        if batch % cand == 0 and cand <= cap:
            bt = cand
    return bt


# ----------------------------------------------------------------------------
# MultiThreadMemory forward (mask=None, layer_past=None path)
# ----------------------------------------------------------------------------
def multi_thread_memory_forward(query, key, value, params, *, h, topk,
                                mxu_bf16=False, batch_block=None):
    B, Sq, D = query.shape
    Sk = key.shape[1]
    dk = D // h
    bt = batch_block if batch_block is not None else _pick_batch_block(B, Sq)
    assert B % bt == 0

    # Fold the 1/sqrt(dk) score scale into W0/b0 host-side (zero in-kernel cost).
    scale = 1.0 / math.sqrt(dk)
    w_stack = jnp.stack([params["w0"] * scale, params["w1"],
                         params["w2"], params["w3"]])          # (4, D, D)
    b_stack = jnp.stack([params["b0"] * scale, params["b1"],
                         params["b2"], params["b3"]])          # (4, D)
    if mxu_bf16:
        # Cast weights once on the host (halves weight DMA bytes / VMEM residency).
        w_stack = w_stack.astype(jnp.bfloat16)

    kernel = functools.partial(_fused_kernel, h=h, topk=topk, mxu_bf16=mxu_bf16)

    in_specs = [
        pl.BlockSpec((bt, Sq, D), lambda i: (i, 0, 0)),
        pl.BlockSpec((bt, Sk, D), lambda i: (i, 0, 0)),
        pl.BlockSpec((bt, Sk, D), lambda i: (i, 0, 0)),
        pl.BlockSpec((4, D, D), lambda i: (0, 0, 0)),   # grid-invariant weights
        pl.BlockSpec((4, D), lambda i: (0, 0)),          # grid-invariant biases
    ]

    out = pl.pallas_call(
        kernel,
        out_shape=jax.ShapeDtypeStruct((B, Sq, D), query.dtype),
        grid=(B // bt,),
        in_specs=in_specs,
        out_specs=pl.BlockSpec((bt, Sq, D), lambda i: (i, 0, 0)),
        scratch_shapes=[pltpu.VMEM((bt * Sq, D), jnp.float32)],  # merged-heads slab
        compiler_params=pltpu.CompilerParams(
            dimension_semantics=("parallel",),     # batch-block axis
            vmem_limit_bytes=32 * 1024 * 1024),    # re-derive per generation
    )(query, key, value, w_stack, b_stack)
    return out


# ----------------------------------------------------------------------------
# Pure-JAX reference (mirrors the PyTorch code, incl. explicit topk + gather)
# ----------------------------------------------------------------------------
def reference_forward(query, key, value, params, *, h, topk):
    def lin(x, w, b):
        return x @ w + b

    q = lin(query, params["w0"], params["b0"])
    k = lin(key, params["w1"], params["b1"])
    v = lin(value, params["w2"], params["b2"])

    B, Sq, D = q.shape
    dk = D // h

    def split(x):
        return x.reshape(B, -1, h, dk).transpose(0, 2, 1, 3)

    qh, kh, vh = split(q), split(k), split(v)
    scores = jnp.einsum("bhqd,bhkd->bhqk", qh, kh) / math.sqrt(dk)
    sel_scores, idx = jax.lax.top_k(scores, topk)
    p_attn = jax.nn.softmax(sel_scores, axis=-1)
    sel_values = jnp.take_along_axis(vh[:, :, None, :, :], idx[..., None], axis=3)
    x = jnp.einsum("bhqt,bhqtd->bhqd", p_attn, sel_values)
    x = x.transpose(0, 2, 1, 3).reshape(B, Sq, D)
    return lin(x, params["w3"], params["b3"])


# ----------------------------------------------------------------------------
# Deterministic parameter init (nn.Linear default: U(-1/sqrt(in), 1/sqrt(in)))
# ----------------------------------------------------------------------------
def init_params(key, d_model):
    params = {}
    bound = 1.0 / math.sqrt(d_model)
    keys = jax.random.split(key, 8)
    for i in range(4):
        params[f"w{i}"] = jax.random.uniform(
            keys[2 * i], (d_model, d_model), jnp.float32, -bound, bound)
        params[f"b{i}"] = jax.random.uniform(
            keys[2 * i + 1], (d_model,), jnp.float32, -bound, bound)
    return params


if __name__ == "__main__":
    # Small shapes consistent with the module.
    B, H, D_MODEL = 2, 4, 32          # d_k = 8
    SEQ_Q, SEQ_MEM = 8, 64            # query length, memory slots
    TOPK = 8

    root = jax.random.PRNGKey(0)
    kq, kk, kv, kp = jax.random.split(root, 4)

    query = jax.random.normal(kq, (B, SEQ_Q, D_MODEL), jnp.float32)
    key_in = jax.random.normal(kk, (B, SEQ_MEM, D_MODEL), jnp.float32)
    value_in = jax.random.normal(kv, (B, SEQ_MEM, D_MODEL), jnp.float32)
    params = init_params(kp, D_MODEL)

    out = multi_thread_memory_forward(query, key_in, value_in, params,
                                      h=H, topk=TOPK)
    out = jax.block_until_ready(out)

    ref = reference_forward(query, key_in, value_in, params, h=H, topk=TOPK)
    assert out.shape == (B, SEQ_Q, D_MODEL)
    # Exact softmax normalisation (no approx reciprocal); in practice the max
    # abs error is ~1e-5, tolerance kept with margin for MXU f32 rounding.
    assert jnp.allclose(out, ref, rtol=1e-3, atol=1e-3), (
        float(jnp.max(jnp.abs(out - ref))))

    print("KERNEL_OK")
</pallas_src>

<mosaic_0001>
module attributes {stable_mosaic.version = 11 : i64} {
  func.func @_fused_kernel(%arg0: i32, %arg1: memref<2x8x32xf32, #tpu.memory_space<vmem>>, %arg2: memref<2x64x32xf32, #tpu.memory_space<vmem>>, %arg3: memref<2x64x32xf32, #tpu.memory_space<vmem>>, %arg4: memref<4x32x32xf32, #tpu.memory_space<vmem>>, %arg5: memref<4x32xf32, #tpu.memory_space<vmem>>, %arg6: memref<2x8x32xf32, #tpu.memory_space<vmem>>, %arg7: memref<16x32xf32, #tpu.memory_space<vmem>>) attributes {dimension_semantics = [#tpu.dimension_semantics<parallel>], iteration_bounds = array<i64: 1>, scalar_prefetch = 0 : i64, scratch_operands = 1 : i64, tpu.core_type = #tpu.core_type<tc>, window_params = [{transform_indices = @transform_0, window_bounds = array<i64: 2, 8, 32>}, {transform_indices = @transform_1, window_bounds = array<i64: 2, 64, 32>}, {transform_indices = @transform_2, window_bounds = array<i64: 2, 64, 32>}, {pipeline_mode = #tpu.pipeline_mode<synchronous>, transform_indices = @transform_3, window_bounds = array<i64: 4, 32, 32>}, {pipeline_mode = #tpu.pipeline_mode<synchronous>, transform_indices = @transform_4, window_bounds = array<i64: 4, 32>}, {transform_indices = @transform_5, window_bounds = array<i64: 2, 8, 32>}]} {
    %c0 = arith.constant 0 : index
    %c0_0 = arith.constant 0 : index
    %0 = vector.load %arg5[%c0, %c0_0] : memref<4x32xf32, #tpu.memory_space<vmem>>, vector<4x32xf32>
    %c0_1 = arith.constant 0 : index
    %c0_2 = arith.constant 0 : index
    %c0_3 = arith.constant 0 : index
    %1 = vector.load %arg1[%c0_1, %c0_2, %c0_3] : memref<2x8x32xf32, #tpu.memory_space<vmem>>, vector<2x8x32xf32>
    %2 = vector.shape_cast %1 : vector<2x8x32xf32> to vector<16x32xf32>
    %c0_4 = arith.constant 0 : index
    %c0_5 = arith.constant 0 : index
    %c0_6 = arith.constant 0 : index
    %3 = vector.load %arg2[%c0_4, %c0_5, %c0_6] : memref<2x64x32xf32, #tpu.memory_space<vmem>>, vector<2x64x32xf32>
    %4 = vector.shape_cast %3 : vector<2x64x32xf32> to vector<128x32xf32>
    %c0_7 = arith.constant 0 : index
    %c0_8 = arith.constant 0 : index
    %c0_9 = arith.constant 0 : index
    %5 = vector.load %arg3[%c0_7, %c0_8, %c0_9] : memref<2x64x32xf32, #tpu.memory_space<vmem>>, vector<2x64x32xf32>
    %6 = vector.shape_cast %5 : vector<2x64x32xf32> to vector<128x32xf32>
    %c0_10 = arith.constant 0 : index
    %c0_11 = arith.constant 0 : index
    %c0_12 = arith.constant 0 : index
    %7 = vector.load %arg4[%c0_10, %c0_11, %c0_12] : memref<4x32x32xf32, #tpu.memory_space<vmem>>, vector<1x32x32xf32>
    %8 = vector.shape_cast %7 : vector<1x32x32xf32> to vector<32x32xf32>
    %cst = arith.constant dense<0.000000e+00> : vector<16x32xf32>
    %9 = tpu.matmul %2, %8, %cst {dimension_numbers = #tpu.dot_dimension_numbers<[1], [0], [0], [1], [0, 0, 1, 1], [], []>} : vector<16x32xf32>, vector<32x32xf32>, vector<16x32xf32> -> vector<16x32xf32>
    %10 = vector.extract_strided_slice %0 {offsets = [0, 0], sizes = [1, 32], strides = [1, 1]} : vector<4x32xf32> to vector<1x32xf32>
    %11 = vector.broadcast %10 : vector<1x32xf32> to vector<16x32xf32>
    %12 = arith.addf %9, %11 : vector<16x32xf32>
    %c1 = arith.constant 1 : index
    %c0_13 = arith.constant 0 : index
    %c0_14 = arith.constant 0 : index
    %13 = vector.load %arg4[%c1, %c0_13, %c0_14] : memref<4x32x32xf32, #tpu.memory_space<vmem>>, vector<1x32x32xf32>
    %14 = vector.shape_cast %13 : vector<1x32x32xf32> to vector<32x32xf32>
    %cst_15 = arith.constant dense<0.000000e+00> : vector<128x32xf32>
    %15 = tpu.matmul %4, %14, %cst_15 {dimension_numbers = #tpu.dot_dimension_numbers<[1], [0], [0], [1], [0, 0, 1, 1], [], []>} : vector<128x32xf32>, vector<32x32xf32>, vector<128x32xf32> -> vector<128x32xf32>
    %16 = vector.extract_strided_slice %0 {offsets = [1, 0], sizes = [1, 32], strides = [1, 1]} : vector<4x32xf32> to vector<1x32xf32>
    %17 = vector.broadcast %16 : vector<1x32xf32> to vector<128x32xf32>
    %18 = arith.addf %15, %17 : vector<128x32xf32>
    %c2 = arith.constant 2 : index
    %c0_16 = arith.constant 0 : index
    %c0_17 = arith.constant 0 : index
    %19 = vector.load %arg4[%c2, %c0_16, %c0_17] : memref<4x32x32xf32, #tpu.memory_space<vmem>>, vector<1x32x32xf32>
    %20 = vector.shape_cast %19 : vector<1x32x32xf32> to vector<32x32xf32>
    %cst_18 = arith.constant dense<0.000000e+00> : vector<128x32xf32>
    %21 = tpu.matmul %6, %20, %cst_18 {dimension_numbers = #tpu.dot_dimension_numbers<[1], [0], [0], [1], [0, 0, 1, 1], [], []>} : vector<128x32xf32>, vector<32x32xf32>, vector<128x32xf32> -> vector<128x32xf32>
    %22 = vector.extract_strided_slice %0 {offsets = [2, 0], sizes = [1, 32], strides = [1, 1]} : vector<4x32xf32> to vector<1x32xf32>
    %23 = vector.broadcast %22 : vector<1x32xf32> to vector<128x32xf32>
    %24 = arith.addf %21, %23 : vector<128x32xf32>
    %25 = vector.shape_cast %12 : vector<16x32xf32> to vector<2x8x32xf32>
    %26 = vector.shape_cast %18 : vector<128x32xf32> to vector<2x64x32xf32>
    %27 = vector.shape_cast %24 : vector<128x32xf32> to vector<2x64x32xf32>
    %28 = vector.extract_strided_slice %25 {offsets = [0, 0, 0], sizes = [2, 8, 8], strides = [1, 1, 1]} : vector<2x8x32xf32> to vector<2x8x8xf32>
    %29 = vector.extract_strided_slice %26 {offsets = [0, 0, 0], sizes = [2, 64, 8], strides = [1, 1, 1]} : vector<2x64x32xf32> to vector<2x64x8xf32>
    %30 = vector.extract_strided_slice %27 {offsets = [0, 0, 0], sizes = [2, 64, 8], strides = [1, 1, 1]} : vector<2x64x32xf32> to vector<2x64x8xf32>
    "tpu.trace_start"() <{level = 10 : i32, message = "bqd,bkd->bqk"}> : () -> ()
    %cst_19 = arith.constant dense<0.000000e+00> : vector<2x8x64xf32>
    %31 = tpu.matmul %28, %29, %cst_19 {dimension_numbers = #tpu.dot_dimension_numbers<[2], [2], [1], [1], [0, 0, 0, 1, 1, 1], [0], [0]>} : vector<2x8x8xf32>, vector<2x64x8xf32>, vector<2x8x64xf32> -> vector<2x8x64xf32>
    "tpu.trace_stop"() : () -> ()
    %cst_20 = arith.constant dense<0xFF800000> : vector<2x8xf32>
    %32 = vector.multi_reduction <maximumf>, %31, %cst_20 [2] : vector<2x8x64xf32> to vector<2x8xf32>
    %33 = vector.shape_cast %32 : vector<2x8xf32> to vector<2x8x1xf32>
    %34 = vector.broadcast %33 : vector<2x8x1xf32> to vector<2x8x64xf32>
    %35 = arith.cmpf oge, %31, %34 : vector<2x8x64xf32>
    %cst_21 = arith.constant 0xFF800000 : f32
    %36 = vector.broadcast %cst_21 : f32 to vector<2x8x64xf32>
    %37 = arith.select %35, %36, %31 : vector<2x8x64xi1>, vector<2x8x64xf32>
    %cst_22 = arith.constant dense<0xFF800000> : vector<2x8xf32>
    %38 = vector.multi_reduction <maximumf>, %37, %cst_22 [2] : vector<2x8x64xf32> to vector<2x8xf32>
    %39 = vector.shape_cast %38 : vector<2x8xf32> to vector<2x8x1xf32>
    %40 = vector.broadcast %39 : vector<2x8x1xf32> to vector<2x8x64xf32>
    %41 = arith.cmpf oge, %37, %40 : vector<2x8x64xf32>
    %cst_23 = arith.constant 0xFF800000 : f32
    %42 = vector.broadcast %cst_23 : f32 to vector<2x8x64xf32>
    %43 = arith.select %41, %42, %37 : vector<2x8x64xi1>, vector<2x8x64xf32>
    %cst_24 = arith.constant dense<0xFF800000> : vector<2x8xf32>
    %44 = vector.multi_reduction <maximumf>, %43, %cst_24 [2] : vector<2x8x64xf32> to vector<2x8xf32>
    %45 = vector.shape_cast %44 : vector<2x8xf32> to vector<2x8x1xf32>
    %46 = vector.broadcast %45 : vector<2x8x1xf32> to vector<2x8x64xf32>
    %47 = arith.cmpf oge, %43, %46 : vector<2x8x64xf32>
    %cst_25 = arith.constant 0xFF800000 : f32
    %48 = vector.broadcast %cst_25 : f32 to vector<2x8x64xf32>
    %49 = arith.select %47, %48, %43 : vector<2x8x64xi1>, vector<2x8x64xf32>
    %cst_26 = arith.constant dense<0xFF800000> : vector<2x8xf32>
    %50 = vector.multi_reduction <maximumf>, %49, %cst_26 [2] : vector<2x8x64xf32> to vector<2x8xf32>
    %51 = vector.shape_cast %50 : vector<2x8xf32> to vector<2x8x1xf32>
    %52 = vector.broadcast %51 : vector<2x8x1xf32> to vector<2x8x64xf32>
    %53 = arith.cmpf oge, %49, %52 : vector<2x8x64xf32>
    %cst_27 = arith.constant 0xFF800000 : f32
    %54 = vector.broadcast %cst_27 : f32 to vector<2x8x64xf32>
    %55 = arith.select %53, %54, %49 : vector<2x8x64xi1>, vector<2x8x64xf32>
    %cst_28 = arith.constant dense<0xFF800000> : vector<2x8xf32>
    %56 = vector.multi_reduction <maximumf>, %55, %cst_28 [2] : vector<2x8x64xf32> to vector<2x8xf32>
    %57 = vector.shape_cast %56 : vector<2x8xf32> to vector<2x8x1xf32>
    %58 = vector.broadcast %57 : vector<2x8x1xf32> to vector<2x8x64xf32>
    %59 = arith.cmpf oge, %55, %58 : vector<2x8x64xf32>
    %cst_29 = arith.constant 0xFF800000 : f32
    %60 = vector.broadcast %cst_29 : f32 to vector<2x8x64xf32>
    %61 = arith.select %59, %60, %55 : vector<2x8x64xi1>, vector<2x8x64xf32>
    %cst_30 = arith.constant dense<0xFF800000> : vector<2x8xf32>
    %62 = vector.multi_reduction <maximumf>, %61, %cst_30 [2] : vector<2x8x64xf32> to vector<2x8xf32>
    %63 = vector.shape_cast %62 : vector<2x8xf32> to vector<2x8x1xf32>
    %64 = vector.broadcast %63 : vector<2x8x1xf32> to vector<2x8x64xf32>
    %65 = arith.cmpf oge, %61, %64 : vector<2x8x64xf32>
    %cst_31 = arith.constant 0xFF800000 : f32
    %66 = vector.broadcast %cst_31 : f32 to vector<2x8x64xf32>
    %67 = arith.select %65, %66, %61 : vector<2x8x64xi1>, vector<2x8x64xf32>
    %cst_32 = arith.constant dense<0xFF800000> : vector<2x8xf32>
    %68 = vector.multi_reduction <maximumf>, %67, %cst_32 [2] : vector<2x8x64xf32> to vector<2x8xf32>
    %69 = vector.shape_cast %68 : vector<2x8xf32> to vector<2x8x1xf32>
    %70 = vector.broadcast %69 : vector<2x8x1xf32> to vector<2x8x64xf32>
    %71 = arith.cmpf oge, %67, %70 : vector<2x8x64xf32>
    %cst_33 = arith.constant 0xFF800000 : f32
    %72 = vector.broadcast %cst_33 : f32 to vector<2x8x64xf32>
    %73 = arith.select %71, %72, %67 : vector<2x8x64xi1>, vector<2x8x64xf32>
    %cst_34 = arith.constant dense<0xFF800000> : vector<2x8xf32>
    %74 = vector.multi_reduction <maximumf>, %73, %cst_34 [2] : vector<2x8x64xf32> to vector<2x8xf32>
    %75 = vector.shape_cast %74 : vector<2x8xf32> to vector<2x8x1xf32>
    %76 = vector.broadcast %75 : vector<2x8x1xf32> to vector<2x8x64xf32>
    %77 = arith.cmpf oge, %31, %76 : vector<2x8x64xf32>
    %78 = vector.broadcast %33 : vector<2x8x1xf32> to vector<2x8x64xf32>
    %79 = arith.subf %31, %78 : vector<2x8x64xf32>
    %80 = math.exp %79 : vector<2x8x64xf32>
    %cst_35 = arith.constant 0.000000e+00 : f32
    %81 = vector.broadcast %cst_35 : f32 to vector<2x8x64xf32>
    %82 = arith.select %77, %80, %81 : vector<2x8x64xi1>, vector<2x8x64xf32>
    %cst_36 = arith.constant dense<0.000000e+00> : vector<2x8xf32>
    %83 = vector.multi_reduction <add>, %82, %cst_36 [2] : vector<2x8x64xf32> to vector<2x8xf32>
    %84 = vector.shape_cast %83 : vector<2x8xf32> to vector<2x8x1xf32>
    %85 = vector.broadcast %84 : vector<2x8x1xf32> to vector<2x8x64xf32>
    %86 = arith.divf %82, %85 : vector<2x8x64xf32>
    "tpu.trace_start"() <{level = 10 : i32, message = "bqk,bkd->bqd"}> : () -> ()
    %cst_37 = arith.constant dense<0.000000e+00> : vector<2x8x8xf32>
    %87 = tpu.matmul %86, %30, %cst_37 {dimension_numbers = #tpu.dot_dimension_numbers<[2], [1], [1], [2], [0, 0, 0, 1, 1, 2], [0], [0]>} : vector<2x8x64xf32>, vector<2x64x8xf32>, vector<2x8x8xf32> -> vector<2x8x8xf32>
    "tpu.trace_stop"() : () -> ()
    %88 = vector.shape_cast %87 : vector<2x8x8xf32> to vector<16x8xf32>
    %c0_38 = arith.constant 0 : index
    %c0_39 = arith.constant 0 : index
    %89 = vector.load %arg7[%c0_38, %c0_39] : memref<16x32xf32, #tpu.memory_space<vmem>>, vector<16x8xf32>
    tpu.vector_store %arg7[%c0_38, %c0_39], %88 {strides = array<i32>} : memref<16x32xf32, #tpu.memory_space<vmem>>, vector<16x8xf32>,
    %90 = vector.extract_strided_slice %25 {offsets = [0, 0, 8], sizes = [2, 8, 8], strides = [1, 1, 1]} : vector<2x8x32xf32> to vector<2x8x8xf32>
    %91 = vector.extract_strided_slice %26 {offsets = [0, 0, 8], sizes = [2, 64, 8], strides = [1, 1, 1]} : vector<2x64x32xf32> to vector<2x64x8xf32>
    %92 = vector.extract_strided_slice %27 {offsets = [0, 0, 8], sizes = [2, 64, 8], strides = [1, 1, 1]} : vector<2x64x32xf32> to vector<2x64x8xf32>
    "tpu.trace_start"() <{level = 10 : i32, message = "bqd,bkd->bqk"}> : () -> ()
    %cst_40 = arith.constant dense<0.000000e+00> : vector<2x8x64xf32>
    %93 = tpu.matmul %90, %91, %cst_40 {dimension_numbers = #tpu.dot_dimension_numbers<[2], [2], [1], [1], [0, 0, 0, 1, 1, 1], [0], [0]>} : vector<2x8x8xf32>, vector<2x64x8xf32>, vector<2x8x64xf32> -> vector<2x8x64xf32>
    "tpu.trace_stop"() : () -> ()
    %cst_41 = arith.constant dense<0xFF800000> : vector<2x8xf32>
    %94 = vector.multi_reduction <maximumf>, %93, %cst_41 [2] : vector<2x8x64xf32> to vector<2x8xf32>
    %95 = vector.shape_cast %94 : vector<2x8xf32> to vector<2x8x1xf32>
    %96 = vector.broadcast %95 : vector<2x8x1xf32> to vector<2x8x64xf32>
    %97 = arith.cmpf oge, %93, %96 : vector<2x8x64xf32>
    %cst_42 = arith.constant 0xFF800000 : f32
    %98 = vector.broadcast %cst_42 : f32 to vector<2x8x64xf32>
    %99 = arith.select %97, %98, %93 : vector<2x8x64xi1>, vector<2x8x64xf32>
    %cst_43 = arith.constant dense<0xFF800000> : vector<2x8xf32>
    %100 = vector.multi_reduction <maximumf>, %99, %cst_43 [2] : vector<2x8x64xf32> to vector<2x8xf32>
    %101 = vector.shape_cast %100 : vector<2x8xf32> to vector<2x8x1xf32>
    %102 = vector.broadcast %101 : vector<2x8x1xf32> to vector<2x8x64xf32>
    %103 = arith.cmpf oge, %99, %102 : vector<2x8x64xf32>
    %cst_44 = arith.constant 0xFF800000 : f32
    %104 = vector.broadcast %cst_44 : f32 to vector<2x8x64xf32>
    %105 = arith.select %103, %104, %99 : vector<2x8x64xi1>, vector<2x8x64xf32>
    %cst_45 = arith.constant dense<0xFF800000> : vector<2x8xf32>
    %106 = vector.multi_reduction <maximumf>, %105, %cst_45 [2] : vector<2x8x64xf32> to vector<2x8xf32>
    %107 = vector.shape_cast %106 : vector<2x8xf32> to vector<2x8x1xf32>
    %108 = vector.broadcast %107 : vector<2x8x1xf32> to vector<2x8x64xf32>
    %109 = arith.cmpf oge, %105, %108 : vector<2x8x64xf32>
    %cst_46 = arith.constant 0xFF800000 : f32
    %110 = vector.broadcast %cst_46 : f32 to vector<2x8x64xf32>
    %111 = arith.select %109, %110, %105 : vector<2x8x64xi1>, vector<2x8x64xf32>
    %cst_47 = arith.constant dense<0xFF800000> : vector<2x8xf32>
    %112 = vector.multi_reduction <maximumf>, %111, %cst_47 [2] : vector<2x8x64xf32> to vector<2x8xf32>
    %113 = vector.shape_cast %112 : vector<2x8xf32> to vector<2x8x1xf32>
    %114 = vector.broadcast %113 : vector<2x8x1xf32> to vector<2x8x64xf32>
    %115 = arith.cmpf oge, %111, %114 : vector<2x8x64xf32>
    %cst_48 = arith.constant 0xFF800000 : f32
    %116 = vector.broadcast %cst_48 : f32 to vector<2x8x64xf32>
    %117 = arith.select %115, %116, %111 : vector<2x8x64xi1>, vector<2x8x64xf32>
    %cst_49 = arith.constant dense<0xFF800000> : vector<2x8xf32>
    %118 = vector.multi_reduction <maximumf>, %117, %cst_49 [2] : vector<2x8x64xf32> to vector<2x8xf32>
    %119 = vector.shape_cast %118 : vector<2x8xf32> to vector<2x8x1xf32>
    %120 = vector.broadcast %119 : vector<2x8x1xf32> to vector<2x8x64xf32>
    %121 = arith.cmpf oge, %117, %120 : vector<2x8x64xf32>
    %cst_50 = arith.constant 0xFF800000 : f32
    %122 = vector.broadcast %cst_50 : f32 to vector<2x8x64xf32>
    %123 = arith.select %121, %122, %117 : vector<2x8x64xi1>, vector<2x8x64xf32>
    %cst_51 = arith.constant dense<0xFF800000> : vector<2x8xf32>
    %124 = vector.multi_reduction <maximumf>, %123, %cst_51 [2] : vector<2x8x64xf32> to vector<2x8xf32>
    %125 = vector.shape_cast %124 : vector<2x8xf32> to vector<2x8x1xf32>
    %126 = vector.broadcast %125 : vector<2x8x1xf32> to vector<2x8x64xf32>
    %127 = arith.cmpf oge, %123, %126 : vector<2x8x64xf32>
    %cst_52 = arith.constant 0xFF800000 : f32
    %128 = vector.broadcast %cst_52 : f32 to vector<2x8x64xf32>
    %129 = arith.select %127, %128, %123 : vector<2x8x64xi1>, vector<2x8x64xf32>
    %cst_53 = arith.constant dense<0xFF800000> : vector<2x8xf32>
    %130 = vector.multi_reduction <maximumf>, %129, %cst_53 [2] : vector<2x8x64xf32> to vector<2x8xf32>
    %131 = vector.shape_cast %130 : vector<2x8xf32> to vector<2x8x1xf32>
    %132 = vector.broadcast %131 : vector<2x8x1xf32> to vector<2x8x64xf32>
    %133 = arith.cmpf oge, %129, %132 : vector<2x8x64xf32>
    %cst_54 = arith.constant 0xFF800000 : f32
    %134 = vector.broadcast %cst_54 : f32 to vector<2x8x64xf32>
    %135 = arith.select %133, %134, %129 : vector<2x8x64xi1>, vector<2x8x64xf32>
    %cst_55 = arith.constant dense<0xFF800000> : vector<2x8xf32>
    %136 = vector.multi_reduction <maximumf>, %135, %cst_55 [2] : vector<2x8x64xf32> to vector<2x8xf32>
    %137 = vector.shape_cast %136 : vector<2x8xf32> to vector<2x8x1xf32>
    %138 = vector.broadcast %137 : vector<2x8x1xf32> to vector<2x8x64xf32>
    %139 = arith.cmpf oge, %93, %138 : vector<2x8x64xf32>
    %140 = vector.broadcast %95 : vector<2x8x1xf32> to vector<2x8x64xf32>
    %141 = arith.subf %93, %140 : vector<2x8x64xf32>
    %142 = math.exp %141 : vector<2x8x64xf32>
    %cst_56 = arith.constant 0.000000e+00 : f32
    %143 = vector.broadcast %cst_56 : f32 to vector<2x8x64xf32>
    %144 = arith.select %139, %142, %143 : vector<2x8x64xi1>, vector<2x8x64xf32>
    %cst_57 = arith.constant dense<0.000000e+00> : vector<2x8xf32>
    %145 = vector.multi_reduction <add>, %144, %cst_57 [2] : vector<2x8x64xf32> to vector<2x8xf32>
    %146 = vector.shape_cast %145 : vector<2x8xf32> to vector<2x8x1xf32>
    %147 = vector.broadcast %146 : vector<2x8x1xf32> to vector<2x8x64xf32>
    %148 = arith.divf %144, %147 : vector<2x8x64xf32>
    "tpu.trace_start"() <{level = 10 : i32, message = "bqk,bkd->bqd"}> : () -> ()
    %cst_58 = arith.constant dense<0.000000e+00> : vector<2x8x8xf32>
    %149 = tpu.matmul %148, %92, %cst_58 {dimension_numbers = #tpu.dot_dimension_numbers<[2], [1], [1], [2], [0, 0, 0, 1, 1, 2], [0], [0]>} : vector<2x8x64xf32>, vector<2x64x8xf32>, vector<2x8x8xf32> -> vector<2x8x8xf32>
    "tpu.trace_stop"() : () -> ()
    %150 = vector.shape_cast %149 : vector<2x8x8xf32> to vector<16x8xf32>
    %c0_59 = arith.constant 0 : index
    %c8 = arith.constant 8 : index
    %151 = vector.load %arg7[%c0_59, %c8] : memref<16x32xf32, #tpu.memory_space<vmem>>, vector<16x8xf32>
    tpu.vector_store %arg7[%c0_59, %c8], %150 {strides = array<i32>} : memref<16x32xf32, #tpu.memory_space<vmem>>, vector<16x8xf32>,
    %152 = vector.extract_strided_slice %25 {offsets = [0, 0, 16], sizes = [2, 8, 8], strides = [1, 1, 1]} : vector<2x8x32xf32> to vector<2x8x8xf32>
    %153 = vector.extract_strided_slice %26 {offsets = [0, 0, 16], sizes = [2, 64, 8], strides = [1, 1, 1]} : vector<2x64x32xf32> to vector<2x64x8xf32>
    %154 = vector.extract_strided_slice %27 {offsets = [0, 0, 16], sizes = [2, 64, 8], strides = [1, 1, 1]} : vector<2x64x32xf32> to vector<2x64x8xf32>
    "tpu.trace_start"() <{level = 10 : i32, message = "bqd,bkd->bqk"}> : () -> ()
    %cst_60 = arith.constant dense<0.000000e+00> : vector<2x8x64xf32>
    %155 = tpu.matmul %152, %153, %cst_60 {dimension_numbers = #tpu.dot_dimension_numbers<[2], [2], [1], [1], [0, 0, 0, 1, 1, 1], [0], [0]>} : vector<2x8x8xf32>, vector<2x64x8xf32>, vector<2x8x64xf32> -> vector<2x8x64xf32>
    "tpu.trace_stop"() : () -> ()
    %cst_61 = arith.constant dense<0xFF800000> : vector<2x8xf32>
    %156 = vector.multi_reduction <maximumf>, %155, %cst_61 [2] : vector<2x8x64xf32> to vector<2x8xf32>
    %157 = vector.shape_cast %156 : vector<2x8xf32> to vector<2x8x1xf32>
    %158 = vector.broadcast %157 : vector<2x8x1xf32> to vector<2x8x64xf32>
    %159 = arith.cmpf oge, %155, %158 : vector<2x8x64xf32>
    %cst_62 = arith.constant 0xFF800000 : f32
    %160 = vector.broadcast %cst_62 : f32 to vector<2x8x64xf32>
    %161 = arith.select %159, %160, %155 : vector<2x8x64xi1>, vector<2x8x64xf32>
    %cst_63 = arith.constant dense<0xFF800000> : vector<2x8xf32>
    %162 = vector.multi_reduction <maximumf>, %161, %cst_63 [2] : vector<2x8x64xf32> to vector<2x8xf32>
    %163 = vector.shape_cast %162 : vector<2x8xf32> to vector<2x8x1xf32>
    %164 = vector.broadcast %163 : vector<2x8x1xf32> to vector<2x8x64xf32>
    %165 = arith.cmpf oge, %161, %164 : vector<2x8x64xf32>
    %cst_64 = arith.constant 0xFF800000 : f32
    %166 = vector.broadcast %cst_64 : f32 to vector<2x8x64xf32>
    %167 = arith.select %165, %166, %161 : vector<2x8x64xi1>, vector<2x8x64xf32>
    %cst_65 = arith.constant dense<0xFF800000> : vector<2x8xf32>
    %168 = vector.multi_reduction <maximumf>, %167, %cst_65 [2] : vector<2x8x64xf32> to vector<2x8xf32>
    %169 = vector.shape_cast %168 : vector<2x8xf32> to vector<2x8x1xf32>
    %170 = vector.broadcast %169 : vector<2x8x1xf32> to vector<2x8x64xf32>
    %171 = arith.cmpf oge, %167, %170 : vector<2x8x64xf32>
    %cst_66 = arith.constant 0xFF800000 : f32
    %172 = vector.broadcast %cst_66 : f32 to vector<2x8x64xf32>
    %173 = arith.select %171, %172, %167 : vector<2x8x64xi1>, vector<2x8x64xf32>
    %cst_67 = arith.constant dense<0xFF800000> : vector<2x8xf32>
    %174 = vector.multi_reduction <maximumf>, %173, %cst_67 [2] : vector<2x8x64xf32> to vector<2x8xf32>
    %175 = vector.shape_cast %174 : vector<2x8xf32> to vector<2x8x1xf32>
    %176 = vector.broadcast %175 : vector<2x8x1xf32> to vector<2x8x64xf32>
    %177 = arith.cmpf oge, %173, %176 : vector<2x8x64xf32>
    %cst_68 = arith.constant 0xFF800000 : f32
    %178 = vector.broadcast %cst_68 : f32 to vector<2x8x64xf32>
    %179 = arith.select %177, %178, %173 : vector<2x8x64xi1>, vector<2x8x64xf32>
    %cst_69 = arith.constant dense<0xFF800000> : vector<2x8xf32>
    %180 = vector.multi_reduction <maximumf>, %179, %cst_69 [2] : vector<2x8x64xf32> to vector<2x8xf32>
    %181 = vector.shape_cast %180 : vector<2x8xf32> to vector<2x8x1xf32>
    %182 = vector.broadcast %181 : vector<2x8x1xf32> to vector<2x8x64xf32>
    %183 = arith.cmpf oge, %179, %182 : vector<2x8x64xf32>
    %cst_70 = arith.constant 0xFF800000 : f32
    %184 = vector.broadcast %cst_70 : f32 to vector<2x8x64xf32>
    %185 = arith.select %183, %184, %179 : vector<2x8x64xi1>, vector<2x8x64xf32>
    %cst_71 = arith.constant dense<0xFF800000> : vector<2x8xf32>
    %186 = vector.multi_reduction <maximumf>, %185, %cst_71 [2] : vector<2x8x64xf32> to vector<2x8xf32>
    %187 = vector.shape_cast %186 : vector<2x8xf32> to vector<2x8x1xf32>
    %188 = vector.broadcast %187 : vector<2x8x1xf32> to vector<2x8x64xf32>
    %189 = arith.cmpf oge, %185, %188 : vector<2x8x64xf32>
    %cst_72 = arith.constant 0xFF800000 : f32
    %190 = vector.broadcast %cst_72 : f32 to vector<2x8x64xf32>
    %191 = arith.select %189, %190, %185 : vector<2x8x64xi1>, vector<2x8x64xf32>
    %cst_73 = arith.constant dense<0xFF800000> : vector<2x8xf32>
    %192 = vector.multi_reduction <maximumf>, %191, %cst_73 [2] : vector<2x8x64xf32> to vector<2x8xf32>
    %193 = vector.shape_cast %192 : vector<2x8xf32> to vector<2x8x1xf32>
    %194 = vector.broadcast %193 : vector<2x8x1xf32> to vector<2x8x64xf32>
    %195 = arith.cmpf oge, %191, %194 : vector<2x8x64xf32>
    %cst_74 = arith.constant 0xFF800000 : f32
    %196 = vector.broadcast %cst_74 : f32 to vector<2x8x64xf32>
    %197 = arith.select %195, %196, %191 : vector<2x8x64xi1>, vector<2x8x64xf32>
    %cst_75 = arith.constant dense<0xFF800000> : vector<2x8xf32>
    %198 = vector.multi_reduction <maximumf>, %197, %cst_75 [2] : vector<2x8x64xf32> to vector<2x8xf32>
    %199 = vector.shape_cast %198 : vector<2x8xf32> to vector<2x8x1xf32>
    %200 = vector.broadcast %199 : vector<2x8x1xf32> to vector<2x8x64xf32>
    %201 = arith.cmpf oge, %155, %200 : vector<2x8x64xf32>
    %202 = vector.broadcast %157 : vector<2x8x1xf32> to vector<2x8x64xf32>
    %203 = arith.subf %155, %202 : vector<2x8x64xf32>
    %204 = math.exp %203 : vector<2x8x64xf32>
    %cst_76 = arith.constant 0.000000e+00 : f32
    %205 = vector.broadcast %cst_76 : f32 to vector<2x8x64xf32>
    %206 = arith.select %201, %204, %205 : vector<2x8x64xi1>, vector<2x8x64xf32>
    %cst_77 = arith.constant dense<0.000000e+00> : vector<2x8xf32>
    %207 = vector.multi_reduction <add>, %206, %cst_77 [2] : vector<2x8x64xf32> to vector<2x8xf32>
    %208 = vector.shape_cast %207 : vector<2x8xf32> to vector<2x8x1xf32>
    %209 = vector.broadcast %208 : vector<2x8x1xf32> to vector<2x8x64xf32>
    %210 = arith.divf %206, %209 : vector<2x8x64xf32>
    "tpu.trace_start"() <{level = 10 : i32, message = "bqk,bkd->bqd"}> : () -> ()
    %cst_78 = arith.constant dense<0.000000e+00> : vector<2x8x8xf32>
    %211 = tpu.matmul %210, %154, %cst_78 {dimension_numbers = #tpu.dot_dimension_numbers<[2], [1], [1], [2], [0, 0, 0, 1, 1, 2], [0], [0]>} : vector<2x8x64xf32>, vector<2x64x8xf32>, vector<2x8x8xf32> -> vector<2x8x8xf32>
    "tpu.trace_stop"() : () -> ()
    %212 = vector.shape_cast %211 : vector<2x8x8xf32> to vector<16x8xf32>
    %c0_79 = arith.constant 0 : index
    %c16 = arith.constant 16 : index
    %213 = vector.load %arg7[%c0_79, %c16] : memref<16x32xf32, #tpu.memory_space<vmem>>, vector<16x8xf32>
    tpu.vector_store %arg7[%c0_79, %c16], %212 {strides = array<i32>} : memref<16x32xf32, #tpu.memory_space<vmem>>, vector<16x8xf32>,
    %214 = vector.extract_strided_slice %25 {offsets = [0, 0, 24], sizes = [2, 8, 8], strides = [1, 1, 1]} : vector<2x8x32xf32> to vector<2x8x8xf32>
    %215 = vector.extract_strided_slice %26 {offsets = [0, 0, 24], sizes = [2, 64, 8], strides = [1, 1, 1]} : vector<2x64x32xf32> to vector<2x64x8xf32>
    %216 = vector.extract_strided_slice %27 {offsets = [0, 0, 24], sizes = [2, 64, 8], strides = [1, 1, 1]} : vector<2x64x32xf32> to vector<2x64x8xf32>
    "tpu.trace_start"() <{level = 10 : i32, message = "bqd,bkd->bqk"}> : () -> ()
    %cst_80 = arith.constant dense<0.000000e+00> : vector<2x8x64xf32>
    %217 = tpu.matmul %214, %215, %cst_80 {dimension_numbers = #tpu.dot_dimension_numbers<[2], [2], [1], [1], [0, 0, 0, 1, 1, 1], [0], [0]>} : vector<2x8x8xf32>, vector<2x64x8xf32>, vector<2x8x64xf32> -> vector<2x8x64xf32>
    "tpu.trace_stop"() : () -> ()
    %cst_81 = arith.constant dense<0xFF800000> : vector<2x8xf32>
    %218 = vector.multi_reduction <maximumf>, %217, %cst_81 [2] : vector<2x8x64xf32> to vector<2x8xf32>
    %219 = vector.shape_cast %218 : vector<2x8xf32> to vector<2x8x1xf32>
    %220 = vector.broadcast %219 : vector<2x8x1xf32> to vector<2x8x64xf32>
    %221 = arith.cmpf oge, %217, %220 : vector<2x8x64xf32>
    %cst_82 = arith.constant 0xFF800000 : f32
    %222 = vector.broadcast %cst_82 : f32 to vector<2x8x64xf32>
    %223 = arith.select %221, %222, %217 : vector<2x8x64xi1>, vector<2x8x64xf32>
    %cst_83 = arith.constant dense<0xFF800000> : vector<2x8xf32>
    %224 = vector.multi_reduction <maximumf>, %223, %cst_83 [2] : vector<2x8x64xf32> to vector<2x8xf32>
    %225 = vector.shape_cast %224 : vector<2x8xf32> to vector<2x8x1xf32>
    %226 = vector.broadcast %225 : vector<2x8x1xf32> to vector<2x8x64xf32>
    %227 = arith.cmpf oge, %223, %226 : vector<2x8x64xf32>
    %cst_84 = arith.constant 0xFF800000 : f32
    %228 = vector.broadcast %cst_84 : f32 to vector<2x8x64xf32>
    %229 = arith.select %227, %228, %223 : vector<2x8x64xi1>, vector<2x8x64xf32>
    %cst_85 = arith.constant dense<0xFF800000> : vector<2x8xf32>
    %230 = vector.multi_reduction <maximumf>, %229, %cst_85 [2] : vector<2x8x64xf32> to vector<2x8xf32>
    %231 = vector.shape_cast %230 : vector<2x8xf32> to vector<2x8x1xf32>
    %232 = vector.broadcast %231 : vector<2x8x1xf32> to vector<2x8x64xf32>
    %233 = arith.cmpf oge, %229, %232 : vector<2x8x64xf32>
    %cst_86 = arith.constant 0xFF800000 : f32
    %234 = vector.broadcast %cst_86 : f32 to vector<2x8x64xf32>
    %235 = arith.select %233, %234, %229 : vector<2x8x64xi1>, vector<2x8x64xf32>
    %cst_87 = arith.constant dense<0xFF800000> : vector<2x8xf32>
    %236 = vector.multi_reduction <maximumf>, %235, %cst_87 [2] : vector<2x8x64xf32> to vector<2x8xf32>
    %237 = vector.shape_cast %236 : vector<2x8xf32> to vector<2x8x1xf32>
    %238 = vector.broadcast %237 : vector<2x8x1xf32> to vector<2x8x64xf32>
    %239 = arith.cmpf oge, %235, %238 : vector<2x8x64xf32>
    %cst_88 = arith.constant 0xFF800000 : f32
    %240 = vector.broadcast %cst_88 : f32 to vector<2x8x64xf32>
    %241 = arith.select %239, %240, %235 : vector<2x8x64xi1>, vector<2x8x64xf32>
    %cst_89 = arith.constant dense<0xFF800000> : vector<2x8xf32>
    %242 = vector.multi_reduction <maximumf>, %241, %cst_89 [2] : vector<2x8x64xf32> to vector<2x8xf32>
    %243 = vector.shape_cast %242 : vector<2x8xf32> to vector<2x8x1xf32>
    %244 = vector.broadcast %243 : vector<2x8x1xf32> to vector<2x8x64xf32>
    %245 = arith.cmpf oge, %241, %244 : vector<2x8x64xf32>
    %cst_90 = arith.constant 0xFF800000 : f32
    %246 = vector.broadcast %cst_90 : f32 to vector<2x8x64xf32>
    %247 = arith.select %245, %246, %241 : vector<2x8x64xi1>, vector<2x8x64xf32>
    %cst_91 = arith.constant dense<0xFF800000> : vector<2x8xf32>
    %248 = vector.multi_reduction <maximumf>, %247, %cst_91 [2] : vector<2x8x64xf32> to vector<2x8xf32>
    %249 = vector.shape_cast %248 : vector<2x8xf32> to vector<2x8x1xf32>
    %250 = vector.broadcast %249 : vector<2x8x1xf32> to vector<2x8x64xf32>
    %251 = arith.cmpf oge, %247, %250 : vector<2x8x64xf32>
    %cst_92 = arith.constant 0xFF800000 : f32
    %252 = vector.broadcast %cst_92 : f32 to vector<2x8x64xf32>
    %253 = arith.select %251, %252, %247 : vector<2x8x64xi1>, vector<2x8x64xf32>
    %cst_93 = arith.constant dense<0xFF800000> : vector<2x8xf32>
    %254 = vector.multi_reduction <maximumf>, %253, %cst_93 [2] : vector<2x8x64xf32> to vector<2x8xf32>
    %255 = vector.shape_cast %254 : vector<2x8xf32> to vector<2x8x1xf32>
    %256 = vector.broadcast %255 : vector<2x8x1xf32> to vector<2x8x64xf32>
    %257 = arith.cmpf oge, %253, %256 : vector<2x8x64xf32>
    %cst_94 = arith.constant 0xFF800000 : f32
    %258 = vector.broadcast %cst_94 : f32 to vector<2x8x64xf32>
    %259 = arith.select %257, %258, %253 : vector<2x8x64xi1>, vector<2x8x64xf32>
    %cst_95 = arith.constant dense<0xFF800000> : vector<2x8xf32>
    %260 = vector.multi_reduction <maximumf>, %259, %cst_95 [2] : vector<2x8x64xf32> to vector<2x8xf32>
    %261 = vector.shape_cast %260 : vector<2x8xf32> to vector<2x8x1xf32>
    %262 = vector.broadcast %261 : vector<2x8x1xf32> to vector<2x8x64xf32>
    %263 = arith.cmpf oge, %217, %262 : vector<2x8x64xf32>
    %264 = vector.broadcast %219 : vector<2x8x1xf32> to vector<2x8x64xf32>
    %265 = arith.subf %217, %264 : vector<2x8x64xf32>
    %266 = math.exp %265 : vector<2x8x64xf32>
    %cst_96 = arith.constant 0.000000e+00 : f32
    %267 = vector.broadcast %cst_96 : f32 to vector<2x8x64xf32>
    %268 = arith.select %263, %266, %267 : vector<2x8x64xi1>, vector<2x8x64xf32>
    %cst_97 = arith.constant dense<0.000000e+00> : vector<2x8xf32>
    %269 = vector.multi_reduction <add>, %268, %cst_97 [2] : vector<2x8x64xf32> to vector<2x8xf32>
    %270 = vector.shape_cast %269 : vector<2x8xf32> to vector<2x8x1xf32>
    %271 = vector.broadcast %270 : vector<2x8x1xf32> to vector<2x8x64xf32>
    %272 = arith.divf %268, %271 : vector<2x8x64xf32>
    "tpu.trace_start"() <{level = 10 : i32, message = "bqk,bkd->bqd"}> : () -> ()
    %cst_98 = arith.constant dense<0.000000e+00> : vector<2x8x8xf32>
    %273 = tpu.matmul %272, %216, %cst_98 {dimension_numbers = #tpu.dot_dimension_numbers<[2], [1], [1], [2], [0, 0, 0, 1, 1, 2], [0], [0]>} : vector<2x8x64xf32>, vector<2x64x8xf32>, vector<2x8x8xf32> -> vector<2x8x8xf32>
    "tpu.trace_stop"() : () -> ()
    %274 = vector.shape_cast %273 : vector<2x8x8xf32> to vector<16x8xf32>
    %c0_99 = arith.constant 0 : index
    %c24 = arith.constant 24 : index
    %275 = vector.load %arg7[%c0_99, %c24] : memref<16x32xf32, #tpu.memory_space<vmem>>, vector<16x8xf32>
    tpu.vector_store %arg7[%c0_99, %c24], %274 {strides = array<i32>} : memref<16x32xf32, #tpu.memory_space<vmem>>, vector<16x8xf32>,
    %c0_100 = arith.constant 0 : index
    %c0_101 = arith.constant 0 : index
    %276 = vector.load %arg7[%c0_100, %c0_101] : memref<16x32xf32, #tpu.memory_space<vmem>>, vector<16x32xf32>
    %c3 = arith.constant 3 : index
    %c0_102 = arith.constant 0 : index
    %c0_103 = arith.constant 0 : index
    %277 = vector.load %arg4[%c3, %c0_102, %c0_103] : memref<4x32x32xf32, #tpu.memory_space<vmem>>, vector<1x32x32xf32>
    %278 = vector.shape_cast %277 : vector<1x32x32xf32> to vector<32x32xf32>
    %cst_104 = arith.constant dense<0.000000e+00> : vector<16x32xf32>
    %279 = tpu.matmul %276, %278, %cst_104 {dimension_numbers = #tpu.dot_dimension_numbers<[1], [0], [0], [1], [0, 0, 1, 1], [], []>} : vector<16x32xf32>, vector<32x32xf32>, vector<16x32xf32> -> vector<16x32xf32>
    %280 = vector.extract_strided_slice %0 {offsets = [3, 0], sizes = [1, 32], strides = [1, 1]} : vector<4x32xf32> to vector<1x32xf32>
    %281 = vector.broadcast %280 : vector<1x32xf32> to vector<16x32xf32>
    %282 = arith.addf %279, %281 : vector<16x32xf32>
    %283 = vector.shape_cast %282 : vector<16x32xf32> to vector<2x8x32xf32>
    %c0_105 = arith.constant 0 : index
    %c0_106 = arith.constant 0 : index
    %c0_107 = arith.constant 0 : index
    %284 = vector.load %arg6[%c0_105, %c0_106, %c0_107] : memref<2x8x32xf32, #tpu.memory_space<vmem>>, vector<2x8x32xf32>
    tpu.vector_store %arg6[%c0_105, %c0_106, %c0_107], %283 {strides = array<i32>} : memref<2x8x32xf32, #tpu.memory_space<vmem>>, vector<2x8x32xf32>,
    return
  }
  func.func @transform_0(%arg0: i32) -> (i32, i32, i32) {
    %c0_i32 = arith.constant 0 : i32
    %c0_i32_0 = arith.constant 0 : i32
    %c0_i32_1 = arith.constant 0 : i32
    return %arg0, %c0_i32, %c0_i32_0 : i32, i32, i32
  }
  func.func @transform_1(%arg0: i32) -> (i32, i32, i32) {
    %c0_i32 = arith.constant 0 : i32
    %c0_i32_0 = arith.constant 0 : i32
    %c0_i32_1 = arith.constant 0 : i32
    return %arg0, %c0_i32, %c0_i32_0 : i32, i32, i32
  }
  func.func @transform_2(%arg0: i32) -> (i32, i32, i32) {
    %c0_i32 = arith.constant 0 : i32
    %c0_i32_0 = arith.constant 0 : i32
    %c0_i32_1 = arith.constant 0 : i32
    return %arg0, %c0_i32, %c0_i32_0 : i32, i32, i32
  }
  func.func @transform_3(%arg0: i32) -> (i32, i32, i32) {
    %c0_i32 = arith.constant 0 : i32
    %c0_i32_0 = arith.constant 0 : i32
    %c0_i32_1 = arith.constant 0 : i32
    %c0_i32_2 = arith.constant 0 : i32
    return %c0_i32, %c0_i32_0, %c0_i32_1 : i32, i32, i32
  }
  func.func @transform_4(%arg0: i32) -> (i32, i32) {
    %c0_i32 = arith.constant 0 : i32
    %c0_i32_0 = arith.constant 0 : i32
    %c0_i32_1 = arith.constant 0 : i32
    return %c0_i32, %c0_i32_0 : i32, i32
  }
  func.func @transform_5(%arg0: i32) -> (i32, i32, i32) {
    %c0_i32 = arith.constant 0 : i32
    %c0_i32_0 = arith.constant 0 : i32
    %c0_i32_1 = arith.constant 0 : i32
    return %arg0, %c0_i32, %c0_i32_0 : i32, i32, i32
  }
}

</mosaic_0001>

<llo_original>
// kernel: tpu_custom_call.1
$region0: #{tpu_custom_call.1}
  #allocation0 [shape = 'u32[]', space=smem, size = 0x4, offset = 0x4, fixed_abs, tag = 'smem constant byte address 0x4 - core index']
  #allocation1 [shape = 'u32[144,128]{1,0:T(1,128)}', space=vmem, size = 0x12000, scoped, tag = 'internal scratch']
  #allocation2 [shape = 'f32[16,32]{1,0:T(8,128)}', space=vmem, size = 0x2000, scoped, tag = 'scratch operand']
  %s0 = inlined_call_operand.vmem [shape: f32[2,8,32], index: 0, kind: input, shape index: {}]
  %s1 = inlined_call_operand.vmem [shape: f32[2,64,32], index: 1, kind: input, shape index: {}]
  %s2 = inlined_call_operand.vmem [shape: f32[2,64,32], index: 2, kind: input, shape index: {}]
  %s3 = inlined_call_operand.vmem [shape: f32[4,32,32], index: 3, kind: input, shape index: {}]
  %s4 = inlined_call_operand.vmem [shape: f32[4,32], index: 4, kind: input, shape index: {}]
  %s5 = inlined_call_operand.hbm [shape: f32[2,8,32], index: 5, kind: output, shape index: {}]
  %s6 = sld [smem:[#allocation0]]
  $region30: #{tpu_custom_call.1} parent=0
    _
  %s8 = ssub.s32 1, %s6
  %s9 = scalar_select 0, %s8, %s6
  $region1: #{tpu_custom_call.1} parent=0
    #allocation3 [shape = 'u8[8192]{0}', space=vmem, size = 0x2000, scoped, tag = 'output window, operand 0, single buffered']
    #allocation4 [shape = 's32[1]{0}', space=sflag, size = 0x4, scoped, tag = 'scoped memory for tpu_custom_call.1']
    %10 = vsyncpa [#allocation4], 0
    // Predicated region
    $region2: #{tpu_custom_call.1} parent=1 // pred_check
      _
    $region3: #{tpu_custom_call.1} parent=1 // pred_check_branch
      %12 = sbr.rel (0) target = $region5
    $region4: #{tpu_custom_call.1} parent=1 // pred_region
      _
    $region5: #{tpu_custom_call.1} parent=1 // pred_fallthru
      _
    // Predicated region
    $region6: #{tpu_custom_call.1} parent=1 // pred_check
      _
    $region7: #{tpu_custom_call.1} parent=1 // pred_check_branch
      %14 = sbr.rel (0) target = $region9
    $region8: #{tpu_custom_call.1} parent=1 // pred_region
      _
    $region9: #{tpu_custom_call.1} parent=1 // pred_fallthru
      _
    // Predicated region
    $region10: #{tpu_custom_call.1} parent=1 // pred_check
      _
    $region11: #{tpu_custom_call.1} parent=1 // pred_check_branch
      %16 = sbr.rel (0) target = $region13
    $region12: #{tpu_custom_call.1} parent=1 // pred_region
      _
    $region13: #{tpu_custom_call.1} parent=1 // pred_fallthru
      _
    // Predicated region
    $region14: #{tpu_custom_call.1} parent=1 // pred_check
      _
    $region15: #{tpu_custom_call.1} parent=1 // pred_check_branch
      %18 = sbr.rel (0) target = $region17
    $region16: #{tpu_custom_call.1} parent=1 // pred_region
      _
    $region17: #{tpu_custom_call.1} parent=1 // pred_fallthru
      _
    // Predicated region
    $region18: #{tpu_custom_call.1} parent=1 // pred_check
      _
    $region19: #{tpu_custom_call.1} parent=1 // pred_check_branch
      %20 = sbr.rel (0) target = $region21
    $region20: #{tpu_custom_call.1} parent=1 // pred_region
      _
    $region21: #{tpu_custom_call.1} parent=1 // pred_fallthru
      _
    %v21 = vld [vmem:[%s4] sm:$0xf]
    %v22 = vld [vmem:[%s0] sm:$0xff]
    %v23 = vld [vmem:[%s0 + $0x8] sm:$0xff]
    %v24 = vld [vmem:[%s1] sm:$0xff]
    %v25 = vld [vmem:[%s1 + $0x8] sm:$0xff]
    %v26 = vld [vmem:[%s1 + $0x10] sm:$0xff]
    %v27 = vld [vmem:[%s1 + $0x18] sm:$0xff]
    %v28 = vld [vmem:[%s1 + $0x20] sm:$0xff]
    %v29 = vld [vmem:[%s1 + $0x28] sm:$0xff]
    %v30 = vld [vmem:[%s1 + $0x30] sm:$0xff]
    %v31 = vld [vmem:[%s1 + $0x38] sm:$0xff]
    %v32 = vld [vmem:[%s1 + $0x40] sm:$0xff]
    %v33 = vld [vmem:[%s1 + $0x48] sm:$0xff]
    %v34 = vld [vmem:[%s1 + $0x50] sm:$0xff]
    %v35 = vld [vmem:[%s1 + $0x58] sm:$0xff]
    %v36 = vld [vmem:[%s1 + $0x60] sm:$0xff]
    %v37 = vld [vmem:[%s1 + $0x68] sm:$0xff]
    %v38 = vld [vmem:[%s1 + $0x70] sm:$0xff]
    %v39 = vld [vmem:[%s1 + $0x78] sm:$0xff]
    %v40 = vld [vmem:[%s2] sm:$0xff]
    %v41 = vld [vmem:[%s2 + $0x8] sm:$0xff]
    %v42 = vld [vmem:[%s2 + $0x10] sm:$0xff]
    %v43 = vld [vmem:[%s2 + $0x18] sm:$0xff]
    %v44 = vld [vmem:[%s2 + $0x20] sm:$0xff]
    %v45 = vld [vmem:[%s2 + $0x28] sm:$0xff]
    %v46 = vld [vmem:[%s2 + $0x30] sm:$0xff]
    %v47 = vld [vmem:[%s2 + $0x38] sm:$0xff]
    %v48 = vld [vmem:[%s2 + $0x40] sm:$0xff]
    %v49 = vld [vmem:[%s2 + $0x48] sm:$0xff]
    %v50 = vld [vmem:[%s2 + $0x50] sm:$0xff]
    %v51 = vld [vmem:[%s2 + $0x58] sm:$0xff]
    %v52 = vld [vmem:[%s2 + $0x60] sm:$0xff]
    %v53 = vld [vmem:[%s2 + $0x68] sm:$0xff]
    %v54 = vld [vmem:[%s2 + $0x70] sm:$0xff]
    %v55 = vld [vmem:[%s2 + $0x78] sm:$0xff]
    %v56 = vld [vmem:[%s3] sm:$0xff]
    %v57 = vld [vmem:[%s3 + $0x8] sm:$0xff]
    %v58 = vld [vmem:[%s3 + $0x10] sm:$0xff]
    %v59 = vld [vmem:[%s3 + $0x18] sm:$0xff]
    %v60 = vlaneseq
    %v61 = vshrl.u32 %v60, 7
    %v62 = vsub.s32 0, %v61
    %v63 = vrot.slane %v21, %v62
    %vm64 = vcmask 261120
    %v66 = vsel %vm64, %v22, 0
    %v69 = vsel %vm64, %v23, 0
    %71 = vmatprep.subr.mxu0 0.0
    %72 = vmatpush1.msra.mxu0 %v56
    %73 = vmatprep.subr.mxu0 0.0
    %74 = vmatpush1.msra.mxu0 %v57
    %75 = vmatprep.subr.mxu0 0.0
    %76 = vmatpush1.msra.mxu0 %v58
    %77 = vmatprep.subr.mxu0 0.0
    %78 = vmatpush1.msra.mxu0 %v59
    %79 = vmatprep.subr.mxu0 0.0
    %80 = vmatpush1.msra.mxu0 0.0
    %81 = vmatprep.subr.mxu0 0.0
    %82 = vmatpush1.msra.mxu0 0.0
    %83 = vmatprep.subr.mxu0 0.0
    %84 = vmatpush1.msra.mxu0 0.0
    %85 = vmatprep.subr.mxu0 0.0
    %86 = vmatpush1.msra.mxu0 0.0
    %87 = vmatprep.subr.mxu0 0.0
    %88 = vmatpush1.msra.mxu0 0.0
    %89 = vmatprep.subr.mxu0 0.0
    %90 = vmatpush1.msra.mxu0 0.0
    %91 = vmatprep.subr.mxu0 0.0
    %92 = vmatpush1.msra.mxu0 0.0
    %93 = vmatprep.subr.mxu0 0.0
    %94 = vmatpush1.msra.mxu0 0.0
    %95 = vmatprep.subr.mxu0 0.0
    %96 = vmatpush1.msra.mxu0 0.0
    %97 = vmatprep.subr.mxu0 0.0
    %98 = vmatpush1.msra.mxu0 0.0
    %99 = vmatprep.subr.mxu0 0.0
    %100 = vmatpush1.msra.mxu0 0.0
    %101 = vmatprep.subr.mxu0 0.0
    %102 = vmatpush1.msra.mxu0 0.0
    %103 = vmatprep.subr.mxu0 0.0
    %104 = vmatpush1.msra.mxu0 0.0
    %105 = vmatprep.subr.mxu0 0.0
    %106 = vmatpush1.msra.mxu0 0.0
    %107 = vmatprep.subr.mxu0 0.0
    %108 = vmatpush1.msra.mxu0 0.0
    %109 = vmatprep.subr.mxu0 0.0
    %110 = vmatpush1.msra.mxu0 0.0
    %111 = vmatprep.subr.mxu0 0.0
    %112 = vmatpush1.msra.mxu0 0.0
    %113 = vmatprep.subr.mxu0 0.0
    %114 = vmatpush1.msra.mxu0 0.0
    %115 = vmatprep.subr.mxu0 0.0
    %116 = vmatpush1.msra.mxu0 0.0
    %117 = vmatprep.subr.mxu0 0.0
    %118 = vmatpush1.msra.mxu0 0.0
    %119 = vmatprep.subr.mxu0 0.0
    %120 = vmatpush1.msra.mxu0 0.0
    %121 = vmatprep.subr.mxu0 0.0
    %122 = vmatpush1.msra.mxu0 0.0
    %123 = vmatprep.subr.mxu0 0.0
    %124 = vmatpush1.msra.mxu0 0.0
    %125 = vmatprep.subr.mxu0 0.0
    %126 = vmatpush1.msra.mxu0 0.0
    %127 = vmatprep.subr.mxu0 0.0
    %128 = vmatpush1.msra.mxu0 0.0
    %129 = vmatprep.subr.mxu0 0.0
    %130 = vmatpush1.msra.mxu0 0.0
    %131 = vmatprep.subr.mxu0 0.0
    %132 = vmatpush1.msra.mxu0 0.0
    %133 = vmatprep.subr.mxu0 0.0
    %134 = vmatpush1.msra.mxu0 0.0
    %135 = vmatprep.mubr.f32.mxu0 0.0
    %136 = vmatmul.mubr.f32.gmra.mrb[0].mxu0 %v66
    %v137 = vpop.f32.mrb[0].mxu0
    %v138 = vadd.f32 %v63, %v137
    %v139 = vpop.f32.mrb[0].mxu0
    %140 = vmatprep.mubr.f32.mxu0 0.0
    %141 = vmatmul.mubr.f32.gmra.mrb[0].mxu0 %v69
    %v142 = vpop.f32.mrb[0].mxu0
    %v143 = vadd.f32 %v63, %v142
    %v144 = vpop.f32.mrb[0].mxu0
    %145 = vdwg.mxu0
    %s146 = scalar_lea.vmem %s3, 32
    %v147 = vld [vmem:[%s146] sm:$0xff]
    %v148 = vld [vmem:[%s146 + $0x8] sm:$0xff]
    %v149 = vld [vmem:[%s146 + $0x10] sm:$0xff]
    %v150 = vld [vmem:[%s146 + $0x18] sm:$0xff]
    %v151 = vlaneseq
    %v152 = vshrl.u32 %v151, 7
    %v153 = vsub.s32 1, %v152
    %v154 = vrot.slane %v21, %v153
    %v156 = vsel %vm64, %v24, 0
    %v159 = vsel %vm64, %v25, 0
    %v162 = vsel %vm64, %v26, 0
    %v165 = vsel %vm64, %v27, 0
    %v168 = vsel %vm64, %v28, 0
    %v171 = vsel %vm64, %v29, 0
    %v174 = vsel %vm64, %v30, 0
    %v177 = vsel %vm64, %v31, 0
    %v180 = vsel %vm64, %v32, 0
    %v183 = vsel %vm64, %v33, 0
    %v186 = vsel %vm64, %v34, 0
    %v189 = vsel %vm64, %v35, 0
    %v192 = vsel %vm64, %v36, 0
    %v195 = vsel %vm64, %v37, 0
    %v198 = vsel %vm64, %v38, 0
    %v201 = vsel %vm64, %v39, 0
    %203 = vmatprep.subr.mxu0 0.0
    %204 = vmatpush1.msra.mxu0 %v147
    %205 = vmatprep.subr.mxu0 0.0
    %206 = vmatpush1.msra.mxu0 %v148
    %207 = vmatprep.subr.mxu0 0.0
    %208 = vmatpush1.msra.mxu0 %v149
    %209 = vmatprep.subr.mxu0 0.0
    %210 = vmatpush1.msra.mxu0 %v150
    %211 = vmatprep.subr.mxu0 0.0
    %212 = vmatpush1.msra.mxu0 0.0
    %213 = vmatprep.subr.mxu0 0.0
    %214 = vmatpush1.msra.mxu0 0.0
    %215 = vmatprep.subr.mxu0 0.0
    %216 = vmatpush1.msra.mxu0 0.0
    %217 = vmatprep.subr.mxu0 0.0
    %218 = vmatpush1.msra.mxu0 0.0
    %219 = vmatprep.subr.mxu0 0.0
    %220 = vmatpush1.msra.mxu0 0.0
    %221 = vmatprep.subr.mxu0 0.0
    %222 = vmatpush1.msra.mxu0 0.0
    %223 = vmatprep.subr.mxu0 0.0
    %224 = vmatpush1.msra.mxu0 0.0
    %225 = vmatprep.subr.mxu0 0.0
    %226 = vmatpush1.msra.mxu0 0.0
    %227 = vmatprep.subr.mxu0 0.0
    %228 = vmatpush1.msra.mxu0 0.0
    %229 = vmatprep.subr.mxu0 0.0
    %230 = vmatpush1.msra.mxu0 0.0
    %231 = vmatprep.subr.mxu0 0.0
    %232 = vmatpush1.msra.mxu0 0.0
    %233 = vmatprep.subr.mxu0 0.0
    %234 = vmatpush1.msra.mxu0 0.0
    %235 = vmatprep.subr.mxu0 0.0
    %236 = vmatpush1.msra.mxu0 0.0
    %237 = vmatprep.subr.mxu0 0.0
    %238 = vmatpush1.msra.mxu0 0.0
    %239 = vmatprep.subr.mxu0 0.0
    %240 = vmatpush1.msra.mxu0 0.0
    %241 = vmatprep.subr.mxu0 0.0
    %242 = vmatpush1.msra.mxu0 0.0
    %243 = vmatprep.subr.mxu0 0.0
    %244 = vmatpush1.msra.mxu0 0.0
    %245 = vmatprep.subr.mxu0 0.0
    %246 = vmatpush1.msra.mxu0 0.0
    %247 = vmatprep.subr.mxu0 0.0
    %248 = vmatpush1.msra.mxu0 0.0
    %249 = vmatprep.subr.mxu0 0.0
    %250 = vmatpush1.msra.mxu0 0.0
    %251 = vmatprep.subr.mxu0 0.0
    %252 = vmatpush1.msra.mxu0 0.0
    %253 = vmatprep.subr.mxu0 0.0
    %254 = vmatpush1.msra.mxu0 0.0
    %255 = vmatprep.subr.mxu0 0.0
    %256 = vmatpush1.msra.mxu0 0.0
    %257 = vmatprep.subr.mxu0 0.0
    %258 = vmatpush1.msra.mxu0 0.0
    %259 = vmatprep.subr.mxu0 0.0
    %260 = vmatpush1.msra.mxu0 0.0
    %261 = vmatprep.subr.mxu0 0.0
    %262 = vmatpush1.msra.mxu0 0.0
    %263 = vmatprep.subr.mxu0 0.0
    %264 = vmatpush1.msra.mxu0 0.0
    %265 = vmatprep.subr.mxu0 0.0
    %266 = vmatpush1.msra.mxu0 0.0
    %267 = vmatprep.mubr.f32.mxu0 0.0
    %268 = vmatmul.mubr.f32.gmra.mrb[0].mxu0 %v156
    %v269 = vpop.f32.mrb[0].mxu0
    %v270 = vadd.f32 %v154, %v269
    %v271 = vpop.f32.mrb[0].mxu0
    %272 = vmatprep.mubr.f32.mxu0 0.0
    %273 = vmatmul.mubr.f32.gmra.mrb[0].mxu0 %v159
    %v274 = vpop.f32.mrb[0].mxu0
    %v275 = vadd.f32 %v154, %v274
    %v276 = vpop.f32.mrb[0].mxu0
    %277 = vmatprep.mubr.f32.mxu0 0.0
    %278 = vmatmul.mubr.f32.gmra.mrb[0].mxu0 %v162
    %v279 = vpop.f32.mrb[0].mxu0
    %v280 = vadd.f32 %v154, %v279
    %v281 = vpop.f32.mrb[0].mxu0
    %282 = vmatprep.mubr.f32.mxu0 0.0
    %283 = vmatmul.mubr.f32.gmra.mrb[0].mxu0 %v165
    %v284 = vpop.f32.mrb[0].mxu0
    %v285 = vadd.f32 %v154, %v284
    %v286 = vpop.f32.mrb[0].mxu0
    %287 = vmatprep.mubr.f32.mxu0 0.0
    %288 = vmatmul.mubr.f32.gmra.mrb[0].mxu0 %v168
    %v289 = vpop.f32.mrb[0].mxu0
    %v290 = vadd.f32 %v154, %v289
    %v291 = vpop.f32.mrb[0].mxu0
    %292 = vmatprep.mubr.f32.mxu0 0.0
    %293 = vmatmul.mubr.f32.gmra.mrb[0].mxu0 %v171
    %v294 = vpop.f32.mrb[0].mxu0
    %v295 = vadd.f32 %v154, %v294
    %v296 = vpop.f32.mrb[0].mxu0
    %297 = vmatprep.mubr.f32.mxu0 0.0
    %298 = vmatmul.mubr.f32.gmra.mrb[0].mxu0 %v174
    %v299 = vpop.f32.mrb[0].mxu0
    %v300 = vadd.f32 %v154, %v299
    %v301 = vpop.f32.mrb[0].mxu0
    %302 = vmatprep.mubr.f32.mxu0 0.0
    %303 = vmatmul.mubr.f32.gmra.mrb[0].mxu0 %v177
    %v304 = vpop.f32.mrb[0].mxu0
    %v305 = vadd.f32 %v154, %v304
    %v306 = vpop.f32.mrb[0].mxu0
    %307 = vmatprep.mubr.f32.mxu0 0.0
    %308 = vmatmul.mubr.f32.gmra.mrb[0].mxu0 %v180
    %v309 = vpop.f32.mrb[0].mxu0
    %v310 = vadd.f32 %v154, %v309
    %v311 = vpop.f32.mrb[0].mxu0
    %312 = vmatprep.mubr.f32.mxu0 0.0
    %313 = vmatmul.mubr.f32.gmra.mrb[0].mxu0 %v183
    %v314 = vpop.f32.mrb[0].mxu0
    %v315 = vadd.f32 %v154, %v314
    %v316 = vpop.f32.mrb[0].mxu0
    %317 = vmatprep.mubr.f32.mxu0 0.0
    %318 = vmatmul.mubr.f32.gmra.mrb[0].mxu0 %v186
    %v319 = vpop.f32.mrb[0].mxu0
    %v320 = vadd.f32 %v154, %v319
    %v321 = vpop.f32.mrb[0].mxu0
    %322 = vmatprep.mubr.f32.mxu0 0.0
    %323 = vmatmul.mubr.f32.gmra.mrb[0].mxu0 %v189
    %v324 = vpop.f32.mrb[0].mxu0
    %v325 = vadd.f32 %v154, %v324
    %v326 = vpop.f32.mrb[0].mxu0
    %327 = vmatprep.mubr.f32.mxu0 0.0
    %328 = vmatmul.mubr.f32.gmra.mrb[0].mxu0 %v192
    %v329 = vpop.f32.mrb[0].mxu0
    %v330 = vadd.f32 %v154, %v329
    %v331 = vpop.f32.mrb[0].mxu0
    %332 = vmatprep.mubr.f32.mxu0 0.0
    %333 = vmatmul.mubr.f32.gmra.mrb[0].mxu0 %v195
    %v334 = vpop.f32.mrb[0].mxu0
    %v335 = vadd.f32 %v154, %v334
    %v336 = vpop.f32.mrb[0].mxu0
    %337 = vmatprep.mubr.f32.mxu0 0.0
    %338 = vmatmul.mubr.f32.gmra.mrb[0].mxu0 %v198
    %v339 = vpop.f32.mrb[0].mxu0
    %v340 = vadd.f32 %v154, %v339
    %v341 = vpop.f32.mrb[0].mxu0
    %342 = vmatprep.mubr.f32.mxu0 0.0
    %343 = vmatmul.mubr.f32.gmra.mrb[0].mxu0 %v201
    %v344 = vpop.f32.mrb[0].mxu0
    %v345 = vadd.f32 %v154, %v344
    %v346 = vpop.f32.mrb[0].mxu0
    %347 = vdwg.mxu0
    %s348 = scalar_lea.vmem %s3, 64
    %v349 = vld [vmem:[%s348] sm:$0xff]
    %v350 = vld [vmem:[%s348 + $0x8] sm:$0xff]
    %v351 = vld [vmem:[%s348 + $0x10] sm:$0xff]
    %v352 = vld [vmem:[%s348 + $0x18] sm:$0xff]
    %v353 = vlaneseq
    %v354 = vshrl.u32 %v353, 7
    %v355 = vsub.s32 2, %v354
    %v356 = vrot.slane %v21, %v355
    %v358 = vsel %vm64, %v40, 0
    %v361 = vsel %vm64, %v41, 0
    %v364 = vsel %vm64, %v42, 0
    %v367 = vsel %vm64, %v43, 0
    %v370 = vsel %vm64, %v44, 0
    %v373 = vsel %vm64, %v45, 0
    %v376 = vsel %vm64, %v46, 0
    %v379 = vsel %vm64, %v47, 0
    %v382 = vsel %vm64, %v48, 0
    %v385 = vsel %vm64, %v49, 0
    %v388 = vsel %vm64, %v50, 0
    %v391 = vsel %vm64, %v51, 0
    %v394 = vsel %vm64, %v52, 0
    %v397 = vsel %vm64, %v53, 0
    %v400 = vsel %vm64, %v54, 0
    %v403 = vsel %vm64, %v55, 0
    %405 = vmatprep.subr.mxu0 0.0
    %406 = vmatpush1.msra.mxu0 %v349
    %407 = vmatprep.subr.mxu0 0.0
    %408 = vmatpush1.msra.mxu0 %v350
    %409 = vmatprep.subr.mxu0 0.0
    %410 = vmatpush1.msra.mxu0 %v351
    %411 = vmatprep.subr.mxu0 0.0
    %412 = vmatpush1.msra.mxu0 %v352
    %413 = vmatprep.subr.mxu0 0.0
    %414 = vmatpush1.msra.mxu0 0.0
    %415 = vmatprep.subr.mxu0 0.0
    %416 = vmatpush1.msra.mxu0 0.0
    %417 = vmatprep.subr.mxu0 0.0
    %418 = vmatpush1.msra.mxu0 0.0
    %419 = vmatprep.subr.mxu0 0.0
    %420 = vmatpush1.msra.mxu0 0.0
    %421 = vmatprep.subr.mxu0 0.0
    %422 = vmatpush1.msra.mxu0 0.0
    %423 = vmatprep.subr.mxu0 0.0
    %424 = vmatpush1.msra.mxu0 0.0
    %425 = vmatprep.subr.mxu0 0.0
    %426 = vmatpush1.msra.mxu0 0.0
    %427 = vmatprep.subr.mxu0 0.0
    %428 = vmatpush1.msra.mxu0 0.0
    %429 = vmatprep.subr.mxu0 0.0
    %430 = vmatpush1.msra.mxu0 0.0
    %431 = vmatprep.subr.mxu0 0.0
    %432 = vmatpush1.msra.mxu0 0.0
    %433 = vmatprep.subr.mxu0 0.0
    %434 = vmatpush1.msra.mxu0 0.0
    %435 = vmatprep.subr.mxu0 0.0
    %436 = vmatpush1.msra.mxu0 0.0
    %437 = vmatprep.subr.mxu0 0.0
    %438 = vmatpush1.msra.mxu0 0.0
    %439 = vmatprep.subr.mxu0 0.0
    %440 = vmatpush1.msra.mxu0 0.0
    %441 = vmatprep.subr.mxu0 0.0
    %442 = vmatpush1.msra.mxu0 0.0
    %443 = vmatprep.subr.mxu0 0.0
    %444 = vmatpush1.msra.mxu0 0.0
    %445 = vmatprep.subr.mxu0 0.0
    %446 = vmatpush1.msra.mxu0 0.0
    %447 = vmatprep.subr.mxu0 0.0
    %448 = vmatpush1.msra.mxu0 0.0
    %449 = vmatprep.subr.mxu0 0.0
    %450 = vmatpush1.msra.mxu0 0.0
    %451 = vmatprep.subr.mxu0 0.0
    %452 = vmatpush1.msra.mxu0 0.0
    %453 = vmatprep.subr.mxu0 0.0
    %454 = vmatpush1.msra.mxu0 0.0
    %455 = vmatprep.subr.mxu0 0.0
    %456 = vmatpush1.msra.mxu0 0.0
    %457 = vmatprep.subr.mxu0 0.0
    %458 = vmatpush1.msra.mxu0 0.0
    %459 = vmatprep.subr.mxu0 0.0
    %460 = vmatpush1.msra.mxu0 0.0
    %461 = vmatprep.subr.mxu0 0.0
    %462 = vmatpush1.msra.mxu0 0.0
    %463 = vmatprep.subr.mxu0 0.0
    %464 = vmatpush1.msra.mxu0 0.0
    %465 = vmatprep.subr.mxu0 0.0
    %466 = vmatpush1.msra.mxu0 0.0
    %467 = vmatprep.subr.mxu0 0.0
    %468 = vmatpush1.msra.mxu0 0.0
    %469 = vmatprep.mubr.f32.mxu0 0.0
    %470 = vmatmul.mubr.f32.gmra.mrb[0].mxu0 %v358
    %v471 = vpop.f32.mrb[0].mxu0
    %v472 = vadd.f32 %v356, %v471
    %v473 = vpop.f32.mrb[0].mxu0
    %474 = vmatprep.mubr.f32.mxu0 0.0
    %475 = vmatmul.mubr.f32.gmra.mrb[0].mxu0 %v361
    %v476 = vpop.f32.mrb[0].mxu0
    %v477 = vadd.f32 %v356, %v476
    %v478 = vpop.f32.mrb[0].mxu0
    %479 = vmatprep.mubr.f32.mxu0 0.0
    %480 = vmatmul.mubr.f32.gmra.mrb[0].mxu0 %v364
    %v481 = vpop.f32.mrb[0].mxu0
    %v482 = vadd.f32 %v356, %v481
    %v483 = vpop.f32.mrb[0].mxu0
    %484 = vmatprep.mubr.f32.mxu0 0.0
    %485 = vmatmul.mubr.f32.gmra.mrb[0].mxu0 %v367
    %v486 = vpop.f32.mrb[0].mxu0
    %v487 = vadd.f32 %v356, %v486
    %v488 = vpop.f32.mrb[0].mxu0
    %489 = vmatprep.mubr.f32.mxu0 0.0
    %490 = vmatmul.mubr.f32.gmra.mrb[0].mxu0 %v370
    %v491 = vpop.f32.mrb[0].mxu0
    %v492 = vadd.f32 %v356, %v491
    %v493 = vpop.f32.mrb[0].mxu0
    %494 = vmatprep.mubr.f32.mxu0 0.0
    %495 = vmatmul.mubr.f32.gmra.mrb[0].mxu0 %v373
    %v496 = vpop.f32.mrb[0].mxu0
    %v497 = vadd.f32 %v356, %v496
    %v498 = vpop.f32.mrb[0].mxu0
    %499 = vmatprep.mubr.f32.mxu0 0.0
    %500 = vmatmul.mubr.f32.gmra.mrb[0].mxu0 %v376
    %v501 = vpop.f32.mrb[0].mxu0
    %v502 = vadd.f32 %v356, %v501
    %v503 = vpop.f32.mrb[0].mxu0
    %504 = vmatprep.mubr.f32.mxu0 0.0
    %505 = vmatmul.mubr.f32.gmra.mrb[0].mxu0 %v379
    %v506 = vpop.f32.mrb[0].mxu0
    %v507 = vadd.f32 %v356, %v506
    %v508 = vpop.f32.mrb[0].mxu0
    %509 = vmatprep.mubr.f32.mxu0 0.0
    %510 = vmatmul.mubr.f32.gmra.mrb[0].mxu0 %v382
    %v511 = vpop.f32.mrb[0].mxu0
    %v512 = vadd.f32 %v356, %v511
    %v513 = vpop.f32.mrb[0].mxu0
    %514 = vmatprep.mubr.f32.mxu0 0.0
    %515 = vmatmul.mubr.f32.gmra.mrb[0].mxu0 %v385
    %v516 = vpop.f32.mrb[0].mxu0
    %v517 = vadd.f32 %v356, %v516
    %v518 = vpop.f32.mrb[0].mxu0
    %519 = vmatprep.mubr.f32.mxu0 0.0
    %520 = vmatmul.mubr.f32.gmra.mrb[0].mxu0 %v388
    %v521 = vpop.f32.mrb[0].mxu0
    %v522 = vadd.f32 %v356, %v521
    %v523 = vpop.f32.mrb[0].mxu0
    %524 = vmatprep.mubr.f32.mxu0 0.0
    %525 = vmatmul.mubr.f32.gmra.mrb[0].mxu0 %v391
    %v526 = vpop.f32.mrb[0].mxu0
    %v527 = vadd.f32 %v356, %v526
    %v528 = vpop.f32.mrb[0].mxu0
    %529 = vmatprep.mubr.f32.mxu0 0.0
    %530 = vmatmul.mubr.f32.gmra.mrb[0].mxu0 %v394
    %v531 = vpop.f32.mrb[0].mxu0
    %v532 = vadd.f32 %v356, %v531
    %v533 = vpop.f32.mrb[0].mxu0
    %534 = vmatprep.mubr.f32.mxu0 0.0
    %535 = vmatmul.mubr.f32.gmra.mrb[0].mxu0 %v397
    %v536 = vpop.f32.mrb[0].mxu0
    %v537 = vadd.f32 %v356, %v536
    %v538 = vpop.f32.mrb[0].mxu0
    %539 = vmatprep.mubr.f32.mxu0 0.0
    %540 = vmatmul.mubr.f32.gmra.mrb[0].mxu0 %v400
    %v541 = vpop.f32.mrb[0].mxu0
    %v542 = vadd.f32 %v356, %v541
    %v543 = vpop.f32.mrb[0].mxu0
    %544 = vmatprep.mubr.f32.mxu0 0.0
    %545 = vmatmul.mubr.f32.gmra.mrb[0].mxu0 %v403
    %v546 = vpop.f32.mrb[0].mxu0
    %v547 = vadd.f32 %v356, %v546
    %v548 = vpop.f32.mrb[0].mxu0
    %549 = vdwg.mxu0
    %vm550 = vcmask 64512
    %v552 = vsel %vm550, %v138, 0
    %v555 = vsel %vm550, %v270, 0
    %v558 = vsel %vm550, %v275, 0
    %v561 = vsel %vm550, %v280, 0
    %v564 = vsel %vm550, %v285, 0
    %v567 = vsel %vm550, %v290, 0
    %v570 = vsel %vm550, %v295, 0
    %v573 = vsel %vm550, %v300, 0
    %v576 = vsel %vm550, %v305, 0
    %578 = vmatprep.subr.mxu0 0.0
    %579 = vmatpush1.xpose.msra.mxu0 %v555
    %580 = vmatprep.subr.mxu0 0.0
    %581 = vmatpush1.xpose.msra.mxu0 %v558
    %582 = vmatprep.subr.mxu0 0.0
    %583 = vmatpush1.xpose.msra.mxu0 %v561
    %584 = vmatprep.subr.mxu0 0.0
    %585 = vmatpush1.xpose.msra.mxu0 %v564
    %586 = vmatprep.subr.mxu0 0.0
    %587 = vmatpush1.xpose.msra.mxu0 %v567
    %588 = vmatprep.subr.mxu0 0.0
    %589 = vmatpush1.xpose.msra.mxu0 %v570
    %590 = vmatprep.subr.mxu0 0.0
    %591 = vmatpush1.xpose.msra.mxu0 %v573
    %592 = vmatprep.subr.mxu0 0.0
    %593 = vmatpush1.xpose.msra.mxu0 %v576
    %594 = vmatprep.subr.mxu0 0.0
    %595 = vmatpush1.xpose.msra.mxu0 0.0
    %596 = vmatprep.subr.mxu0 0.0
    %597 = vmatpush1.xpose.msra.mxu0 0.0
    %598 = vmatprep.subr.mxu0 0.0
    %599 = vmatpush1.xpose.msra.mxu0 0.0
    %600 = vmatprep.subr.mxu0 0.0
    %601 = vmatpush1.xpose.msra.mxu0 0.0
    %602 = vmatprep.subr.mxu0 0.0
    %603 = vmatpush1.xpose.msra.mxu0 0.0
    %604 = vmatprep.subr.mxu0 0.0
    %605 = vmatpush1.xpose.msra.mxu0 0.0
    %606 = vmatprep.subr.mxu0 0.0
    %607 = vmatpush1.xpose.msra.mxu0 0.0
    %608 = vmatprep.subr.mxu0 0.0
    %609 = vmatpush1.xpose.msra.mxu0 0.0
    %610 = vmatprep.subr.mxu0 0.0
    %611 = vmatpush1.xpose.msra.mxu0 0.0
    %612 = vmatprep.subr.mxu0 0.0
    %613 = vmatpush1.xpose.msra.mxu0 0.0
    %614 = vmatprep.subr.mxu0 0.0
    %615 = vmatpush1.xpose.msra.mxu0 0.0
    %616 = vmatprep.subr.mxu0 0.0
    %617 = vmatpush1.xpose.msra.mxu0 0.0
    %618 = vmatprep.subr.mxu0 0.0
    %619 = vmatpush1.xpose.msra.mxu0 0.0
    %620 = vmatprep.subr.mxu0 0.0
    %621 = vmatpush1.xpose.msra.mxu0 0.0
    %622 = vmatprep.subr.mxu0 0.0
    %623 = vmatpush1.xpose.msra.mxu0 0.0
    %624 = vmatprep.subr.mxu0 0.0
    %625 = vmatpush1.xpose.msra.mxu0 0.0
    %626 = vmatprep.subr.mxu0 0.0
    %627 = vmatpush1.xpose.msra.mxu0 0.0
    %628 = vmatprep.subr.mxu0 0.0
    %629 = vmatpush1.xpose.msra.mxu0 0.0
    %630 = vmatprep.subr.mxu0 0.0
    %631 = vmatpush1.xpose.msra.mxu0 0.0
    %632 = vmatprep.subr.mxu0 0.0
    %633 = vmatpush1.xpose.msra.mxu0 0.0
    %634 = vmatprep.subr.mxu0 0.0
    %635 = vmatpush1.xpose.msra.mxu0 0.0
    %636 = vmatprep.subr.mxu0 0.0
    %637 = vmatpush1.xpose.msra.mxu0 0.0
    %638 = vmatprep.subr.mxu0 0.0
    %639 = vmatpush1.xpose.msra.mxu0 0.0
    %640 = vmatprep.subr.mxu0 0.0
    %641 = vmatpush1.xpose.msra.mxu0 0.0
    %642 = vmatprep.mubr.f32.mxu0 0.0
    %643 = vmatmul.mubr.f32.gmra.mrb[0].mxu0 %v552
    %v644 = vpop.f32.mrb[0].mxu0
    %v645 = vadd.f32 0.0, %v644
    %v646 = vpop.f32.mrb[0].mxu0
    %647 = vdwg.mxu0
    %v649 = vsel %vm550, %v143, 0
    %v652 = vsel %vm550, %v310, 0
    %v655 = vsel %vm550, %v315, 0
    %v658 = vsel %vm550, %v320, 0
    %v661 = vsel %vm550, %v325, 0
    %v664 = vsel %vm550, %v330, 0
    %v667 = vsel %vm550, %v335, 0
    %v670 = vsel %vm550, %v340, 0
    %v673 = vsel %vm550, %v345, 0
    %675 = vmatprep.subr.mxu0 0.0
    %676 = vmatpush1.xpose.msra.mxu0 %v652
    %677 = vmatprep.subr.mxu0 0.0
    %678 = vmatpush1.xpose.msra.mxu0 %v655
    %679 = vmatprep.subr.mxu0 0.0
    %680 = vmatpush1.xpose.msra.mxu0 %v658
    %681 = vmatprep.subr.mxu0 0.0
    %682 = vmatpush1.xpose.msra.mxu0 %v661
    %683 = vmatprep.subr.mxu0 0.0
    %684 = vmatpush1.xpose.msra.mxu0 %v664
    %685 = vmatprep.subr.mxu0 0.0
    %686 = vmatpush1.xpose.msra.mxu0 %v667
    %687 = vmatprep.subr.mxu0 0.0
    %688 = vmatpush1.xpose.msra.mxu0 %v670
    %689 = vmatprep.subr.mxu0 0.0
    %690 = vmatpush1.xpose.msra.mxu0 %v673
    %691 = vmatprep.subr.mxu0 0.0
    %692 = vmatpush1.xpose.msra.mxu0 0.0
    %693 = vmatprep.subr.mxu0 0.0
    %694 = vmatpush1.xpose.msra.mxu0 0.0
    %695 = vmatprep.subr.mxu0 0.0
    %696 = vmatpush1.xpose.msra.mxu0 0.0
    %697 = vmatprep.subr.mxu0 0.0
    %698 = vmatpush1.xpose.msra.mxu0 0.0
    %699 = vmatprep.subr.mxu0 0.0
    %700 = vmatpush1.xpose.msra.mxu0 0.0
    %701 = vmatprep.subr.mxu0 0.0
    %702 = vmatpush1.xpose.msra.mxu0 0.0
    %703 = vmatprep.subr.mxu0 0.0
    %704 = vmatpush1.xpose.msra.mxu0 0.0
    %705 = vmatprep.subr.mxu0 0.0
    %706 = vmatpush1.xpose.msra.mxu0 0.0
    %707 = vmatprep.subr.mxu0 0.0
    %708 = vmatpush1.xpose.msra.mxu0 0.0
    %709 = vmatprep.subr.mxu0 0.0
    %710 = vmatpush1.xpose.msra.mxu0 0.0
    %711 = vmatprep.subr.mxu0 0.0
    %712 = vmatpush1.xpose.msra.mxu0 0.0
    %713 = vmatprep.subr.mxu0 0.0
    %714 = vmatpush1.xpose.msra.mxu0 0.0
    %715 = vmatprep.subr.mxu0 0.0
    %716 = vmatpush1.xpose.msra.mxu0 0.0
    %717 = vmatprep.subr.mxu0 0.0
    %718 = vmatpush1.xpose.msra.mxu0 0.0
    %719 = vmatprep.subr.mxu0 0.0
    %720 = vmatpush1.xpose.msra.mxu0 0.0
    %721 = vmatprep.subr.mxu0 0.0
    %722 = vmatpush1.xpose.msra.mxu0 0.0
    %723 = vmatprep.subr.mxu0 0.0
    %724 = vmatpush1.xpose.msra.mxu0 0.0
    %725 = vmatprep.subr.mxu0 0.0
    %726 = vmatpush1.xpose.msra.mxu0 0.0
    %727 = vmatprep.subr.mxu0 0.0
    %728 = vmatpush1.xpose.msra.mxu0 0.0
    %729 = vmatprep.subr.mxu0 0.0
    %730 = vmatpush1.xpose.msra.mxu0 0.0
    %731 = vmatprep.subr.mxu0 0.0
    %732 = vmatpush1.xpose.msra.mxu0 0.0
    %733 = vmatprep.subr.mxu0 0.0
    %734 = vmatpush1.xpose.msra.mxu0 0.0
    %735 = vmatprep.subr.mxu0 0.0
    %736 = vmatpush1.xpose.msra.mxu0 0.0
    %737 = vmatprep.subr.mxu0 0.0
    %738 = vmatpush1.xpose.msra.mxu0 0.0
    %739 = vmatprep.mubr.f32.mxu0 0.0
    %740 = vmatmul.mubr.f32.gmra.mrb[0].mxu0 %v649
    %v741 = vpop.f32.mrb[0].mxu0
    %v742 = vadd.f32 0.0, %v741
    %v743 = vpop.f32.mrb[0].mxu0
    %744 = vdwg.mxu0
    %vm745 = vcmask 523264
    %v746 = vsel %vm745, %v645, -inf
    %747 = vmax.xlane.f32.xlu0 %v746
    %v748 = vpop.xlane.xlu0 %747
    %v749 = vsel %vm745, %v742, -inf
    %750 = vmax.xlane.f32.xlu0 %v749
    %v751 = vpop.xlane.xlu0 %750
    %vm752 = vcmp.ge.f32.partialorder %v645, %v748
    %vm753 = vcmp.ge.f32.partialorder %v742, %v751
    %v754 = vsel %vm752, -inf, %v645
    %v755 = vsel %vm753, -inf, %v742
    %v756 = vsel %vm745, %v754, -inf
    %757 = vmax.xlane.f32.xlu0 %v756
    %v758 = vpop.xlane.xlu0 %757
    %v759 = vsel %vm745, %v755, -inf
    %760 = vmax.xlane.f32.xlu0 %v759
    %v761 = vpop.xlane.xlu0 %760
    %vm762 = vcmp.ge.f32.partialorder %v754, %v758
    %vm763 = vcmp.ge.f32.partialorder %v755, %v761
    %v764 = vsel %vm762, -inf, %v754
    %v765 = vsel %vm763, -inf, %v755
    %v766 = vsel %vm745, %v764, -inf
    %767 = vmax.xlane.f32.xlu0 %v766
    %v768 = vpop.xlane.xlu0 %767
    %v769 = vsel %vm745, %v765, -inf
    %770 = vmax.xlane.f32.xlu0 %v769
    %v771 = vpop.xlane.xlu0 %770
    %vm772 = vcmp.ge.f32.partialorder %v764, %v768
    %vm773 = vcmp.ge.f32.partialorder %v765, %v771
    %v774 = vsel %vm772, -inf, %v764
    %v775 = vsel %vm773, -inf, %v765
    %v776 = vsel %vm745, %v774, -inf
    %777 = vmax.xlane.f32.xlu0 %v776
    %v778 = vpop.xlane.xlu0 %777
    %v779 = vsel %vm745, %v775, -inf
    %780 = vmax.xlane.f32.xlu0 %v779
    %v781 = vpop.xlane.xlu0 %780
    %vm782 = vcmp.ge.f32.partialorder %v774, %v778
    %vm783 = vcmp.ge.f32.partialorder %v775, %v781
    %v784 = vsel %vm782, -inf, %v774
    %v785 = vsel %vm783, -inf, %v775
    %v786 = vsel %vm745, %v784, -inf
    %787 = vmax.xlane.f32.xlu0 %v786
    %v788 = vpop.xlane.xlu0 %787
    %v789 = vsel %vm745, %v785, -inf
    %790 = vmax.xlane.f32.xlu0 %v789
    %v791 = vpop.xlane.xlu0 %790
    %vm792 = vcmp.ge.f32.partialorder %v784, %v788
    %vm793 = vcmp.ge.f32.partialorder %v785, %v791
    %v794 = vsel %vm792, -inf, %v784
    %v795 = vsel %vm793, -inf, %v785
    %v796 = vsel %vm745, %v794, -inf
    %797 = vmax.xlane.f32.xlu0 %v796
    %v798 = vpop.xlane.xlu0 %797
    %v799 = vsel %vm745, %v795, -inf
    %800 = vmax.xlane.f32.xlu0 %v799
    %v801 = vpop.xlane.xlu0 %800
    %vm802 = vcmp.ge.f32.partialorder %v794, %v798
    %vm803 = vcmp.ge.f32.partialorder %v795, %v801
    %v804 = vsel %vm802, -inf, %v794
    %v805 = vsel %vm803, -inf, %v795
    %v806 = vsel %vm745, %v804, -inf
    %807 = vmax.xlane.f32.xlu0 %v806
    %v808 = vpop.xlane.xlu0 %807
    %v809 = vsel %vm745, %v805, -inf
    %810 = vmax.xlane.f32.xlu0 %v809
    %v811 = vpop.xlane.xlu0 %810
    %vm812 = vcmp.ge.f32.partialorder %v804, %v808
    %vm813 = vcmp.ge.f32.partialorder %v805, %v811
    %v814 = vsel %vm812, -inf, %v804
    %v815 = vsel %vm813, -inf, %v805
    %v816 = vsel %vm745, %v814, -inf
    %817 = vmax.xlane.f32.xlu0 %v816
    %v818 = vpop.xlane.xlu0 %817
    %v819 = vsel %vm745, %v815, -inf
    %820 = vmax.xlane.f32.xlu0 %v819
    %v821 = vpop.xlane.xlu0 %820
    %vm822 = vcmp.ge.f32.partialorder %v645, %v818
    %vm823 = vcmp.ge.f32.partialorder %v742, %v821
    %v824 = vsub.f32 %v645, %v748
    %v825 = vsub.f32 %v742, %v751
    %v826 = vmul.f32 %v824, 1.442695
    %v827 = vpow.pop %v826
    %v828 = vmul.f32 %v825, 1.442695
    %v829 = vpow.pop %v828
    %v830 = vsel %vm822, %v827, 0.0
    %v831 = vsel %vm823, %v829, 0.0
    %v832 = vsel %vm745, %v830, 0.0
    %833 = vadd.xlane.f32.xlu0 %v832
    %v834 = vpop.xlane.xlu0 %833
    %v835 = vsel %vm745, %v831, 0.0
    %836 = vadd.xlane.f32.xlu0 %v835
    %v837 = vpop.xlane.xlu0 %836
    %v838 = vrcp.pop %v834
    %v839 = vmul.f32 %v830, %v838
    %v840 = vrcp.pop %v837
    %v841 = vmul.f32 %v831, %v840
    %v843 = vsel %vm745, %v839, 0
    %845 = vmatprep.subr.mxu0 0.0
    %846 = vmatpush1.msra.mxu0 %v472
    %847 = vmatprep.subr.mxu0 0.0
    %848 = vmatpush1.msra.mxu0 %v477
    %849 = vmatprep.subr.mxu0 0.0
    %850 = vmatpush1.msra.mxu0 %v482
    %851 = vmatprep.subr.mxu0 0.0
    %852 = vmatpush1.msra.mxu0 %v487
    %853 = vmatprep.subr.mxu0 0.0
    %854 = vmatpush1.msra.mxu0 %v492
    %855 = vmatprep.subr.mxu0 0.0
    %856 = vmatpush1.msra.mxu0 %v497
    %857 = vmatprep.subr.mxu0 0.0
    %858 = vmatpush1.msra.mxu0 %v502
    %859 = vmatprep.subr.mxu0 0.0
    %860 = vmatpush1.msra.mxu0 %v507
    %861 = vmatprep.subr.mxu0 0.0
    %862 = vmatpush1.msra.mxu0 0.0
    %863 = vmatprep.subr.mxu0 0.0
    %864 = vmatpush1.msra.mxu0 0.0
    %865 = vmatprep.subr.mxu0 0.0
    %866 = vmatpush1.msra.mxu0 0.0
    %867 = vmatprep.subr.mxu0 0.0
    %868 = vmatpush1.msra.mxu0 0.0
    %869 = vmatprep.subr.mxu0 0.0
    %870 = vmatpush1.msra.mxu0 0.0
    %871 = vmatprep.subr.mxu0 0.0
    %872 = vmatpush1.msra.mxu0 0.0
    %873 = vmatprep.subr.mxu0 0.0
    %874 = vmatpush1.msra.mxu0 0.0
    %875 = vmatprep.subr.mxu0 0.0
    %876 = vmatpush1.msra.mxu0 0.0
    %877 = vmatprep.subr.mxu0 0.0
    %878 = vmatpush1.msra.mxu0 0.0
    %879 = vmatprep.subr.mxu0 0.0
    %880 = vmatpush1.msra.mxu0 0.0
    %881 = vmatprep.subr.mxu0 0.0
    %882 = vmatpush1.msra.mxu0 0.0
    %883 = vmatprep.subr.mxu0 0.0
    %884 = vmatpush1.msra.mxu0 0.0
    %885 = vmatprep.subr.mxu0 0.0
    %886 = vmatpush1.msra.mxu0 0.0
    %887 = vmatprep.subr.mxu0 0.0
    %888 = vmatpush1.msra.mxu0 0.0
    %889 = vmatprep.subr.mxu0 0.0
    %890 = vmatpush1.msra.mxu0 0.0
    %891 = vmatprep.subr.mxu0 0.0
    %892 = vmatpush1.msra.mxu0 0.0
    %893 = vmatprep.subr.mxu0 0.0
    %894 = vmatpush1.msra.mxu0 0.0
    %895 = vmatprep.subr.mxu0 0.0
    %896 = vmatpush1.msra.mxu0 0.0
    %897 = vmatprep.subr.mxu0 0.0
    %898 = vmatpush1.msra.mxu0 0.0
    %899 = vmatprep.subr.mxu0 0.0
    %900 = vmatpush1.msra.mxu0 0.0
    %901 = vmatprep.subr.mxu0 0.0
    %902 = vmatpush1.msra.mxu0 0.0
    %903 = vmatprep.subr.mxu0 0.0
    %904 = vmatpush1.msra.mxu0 0.0
    %905 = vmatprep.subr.mxu0 0.0
    %906 = vmatpush1.msra.mxu0 0.0
    %907 = vmatprep.subr.mxu0 0.0
    %908 = vmatpush1.msra.mxu0 0.0
    %909 = vmatprep.mubr.f32.mxu0 0.0
    %910 = vmatmul.mubr.f32.gmra.mrb[0].mxu0 %v843
    %v911 = vpop.f32.mrb[0].mxu0
    %v912 = vadd.f32 0.0, %v911
    %v913 = vpop.f32.mrb[0].mxu0
    %914 = vdwg.mxu0
    %v916 = vsel %vm745, %v841, 0
    %918 = vmatprep.subr.mxu0 0.0
    %919 = vmatpush1.msra.mxu0 %v512
    %920 = vmatprep.subr.mxu0 0.0
    %921 = vmatpush1.msra.mxu0 %v517
    %922 = vmatprep.subr.mxu0 0.0
    %923 = vmatpush1.msra.mxu0 %v522
    %924 = vmatprep.subr.mxu0 0.0
    %925 = vmatpush1.msra.mxu0 %v527
    %926 = vmatprep.subr.mxu0 0.0
    %927 = vmatpush1.msra.mxu0 %v532
    %928 = vmatprep.subr.mxu0 0.0
    %929 = vmatpush1.msra.mxu0 %v537
    %930 = vmatprep.subr.mxu0 0.0
    %931 = vmatpush1.msra.mxu0 %v542
    %932 = vmatprep.subr.mxu0 0.0
    %933 = vmatpush1.msra.mxu0 %v547
    %934 = vmatprep.subr.mxu0 0.0
    %935 = vmatpush1.msra.mxu0 0.0
    %936 = vmatprep.subr.mxu0 0.0
    %937 = vmatpush1.msra.mxu0 0.0
    %938 = vmatprep.subr.mxu0 0.0
    %939 = vmatpush1.msra.mxu0 0.0
    %940 = vmatprep.subr.mxu0 0.0
    %941 = vmatpush1.msra.mxu0 0.0
    %942 = vmatprep.subr.mxu0 0.0
    %943 = vmatpush1.msra.mxu0 0.0
    %944 = vmatprep.subr.mxu0 0.0
    %945 = vmatpush1.msra.mxu0 0.0
    %946 = vmatprep.subr.mxu0 0.0
    %947 = vmatpush1.msra.mxu0 0.0
    %948 = vmatprep.subr.mxu0 0.0
    %949 = vmatpush1.msra.mxu0 0.0
    %950 = vmatprep.subr.mxu0 0.0
    %951 = vmatpush1.msra.mxu0 0.0
    %952 = vmatprep.subr.mxu0 0.0
    %953 = vmatpush1.msra.mxu0 0.0
    %954 = vmatprep.subr.mxu0 0.0
    %955 = vmatpush1.msra.mxu0 0.0
    %956 = vmatprep.subr.mxu0 0.0
    %957 = vmatpush1.msra.mxu0 0.0
    %958 = vmatprep.subr.mxu0 0.0
    %959 = vmatpush1.msra.mxu0 0.0
    %960 = vmatprep.subr.mxu0 0.0
    %961 = vmatpush1.msra.mxu0 0.0
    %962 = vmatprep.subr.mxu0 0.0
    %963 = vmatpush1.msra.mxu0 0.0
    %964 = vmatprep.subr.mxu0 0.0
    %965 = vmatpush1.msra.mxu0 0.0
    %966 = vmatprep.subr.mxu0 0.0
    %967 = vmatpush1.msra.mxu0 0.0
    %968 = vmatprep.subr.mxu0 0.0
    %969 = vmatpush1.msra.mxu0 0.0
    %970 = vmatprep.subr.mxu0 0.0
    %971 = vmatpush1.msra.mxu0 0.0
    %972 = vmatprep.subr.mxu0 0.0
    %973 = vmatpush1.msra.mxu0 0.0
    %974 = vmatprep.subr.mxu0 0.0
    %975 = vmatpush1.msra.mxu0 0.0
    %976 = vmatprep.subr.mxu0 0.0
    %977 = vmatpush1.msra.mxu0 0.0
    %978 = vmatprep.subr.mxu0 0.0
    %979 = vmatpush1.msra.mxu0 0.0
    %980 = vmatprep.subr.mxu0 0.0
    %981 = vmatpush1.msra.mxu0 0.0
    %982 = vmatprep.mubr.f32.mxu0 0.0
    %983 = vmatmul.mubr.f32.gmra.mrb[0].mxu0 %v916
    %v984 = vpop.f32.mrb[0].mxu0
    %v985 = vadd.f32 0.0, %v984
    %v986 = vpop.f32.mrb[0].mxu0
    %987 = vdwg.mxu0
    %988 = vst.msk [vmem:[#allocation2] sm:$0xff] %vm550, %v912
    %989 = vst.msk [vmem:[#allocation2 + $0x8] sm:$0xff] %vm550, %v985
    %990 = vrot.lane.b32.xlu0 %v138, 120
    %v991 = vpop.permute.xlu0 %990
    %992 = vrot.lane.b32.xlu0 %v270, 120
    %v993 = vpop.permute.xlu0 %992
    %994 = vrot.lane.b32.xlu0 %v275, 120
    %v995 = vpop.permute.xlu0 %994
    %996 = vrot.lane.b32.xlu0 %v280, 120
    %v997 = vpop.permute.xlu0 %996
    %998 = vrot.lane.b32.xlu0 %v285, 120
    %v999 = vpop.permute.xlu0 %998
    %1000 = vrot.lane.b32.xlu0 %v290, 120
    %v1001 = vpop.permute.xlu0 %1000
    %1002 = vrot.lane.b32.xlu0 %v295, 120
    %v1003 = vpop.permute.xlu0 %1002
    %1004 = vrot.lane.b32.xlu0 %v300, 120
    %v1005 = vpop.permute.xlu0 %1004
    %1006 = vrot.lane.b32.xlu0 %v305, 120
    %v1007 = vpop.permute.xlu0 %1006
    %v1008 = vsel %vm550, %v991, 0
    %v1010 = vsel %vm550, %v993, 0
    %v1012 = vsel %vm550, %v995, 0
    %v1014 = vsel %vm550, %v997, 0
    %v1016 = vsel %vm550, %v999, 0
    %v1018 = vsel %vm550, %v1001, 0
    %v1020 = vsel %vm550, %v1003, 0
    %v1022 = vsel %vm550, %v1005, 0
    %v1024 = vsel %vm550, %v1007, 0
    %1026 = vmatprep.subr.mxu0 0.0
    %1027 = vmatpush1.xpose.msra.mxu0 %v1010
    %1028 = vmatprep.subr.mxu0 0.0
    %1029 = vmatpush1.xpose.msra.mxu0 %v1012
    %1030 = vmatprep.subr.mxu0 0.0
    %1031 = vmatpush1.xpose.msra.mxu0 %v1014
    %1032 = vmatprep.subr.mxu0 0.0
    %1033 = vmatpush1.xpose.msra.mxu0 %v1016
    %1034 = vmatprep.subr.mxu0 0.0
    %1035 = vmatpush1.xpose.msra.mxu0 %v1018
    %1036 = vmatprep.subr.mxu0 0.0
    %1037 = vmatpush1.xpose.msra.mxu0 %v1020
    %1038 = vmatprep.subr.mxu0 0.0
    %1039 = vmatpush1.xpose.msra.mxu0 %v1022
    %1040 = vmatprep.subr.mxu0 0.0
    %1041 = vmatpush1.xpose.msra.mxu0 %v1024
    %1042 = vmatprep.subr.mxu0 0.0
    %1043 = vmatpush1.xpose.msra.mxu0 0.0
    %1044 = vmatprep.subr.mxu0 0.0
    %1045 = vmatpush1.xpose.msra.mxu0 0.0
    %1046 = vmatprep.subr.mxu0 0.0
    %1047 = vmatpush1.xpose.msra.mxu0 0.0
    %1048 = vmatprep.subr.mxu0 0.0
    %1049 = vmatpush1.xpose.msra.mxu0 0.0
    %1050 = vmatprep.subr.mxu0 0.0
    %1051 = vmatpush1.xpose.msra.mxu0 0.0
    %1052 = vmatprep.subr.mxu0 0.0
    %1053 = vmatpush1.xpose.msra.mxu0 0.0
    %1054 = vmatprep.subr.mxu0 0.0
    %1055 = vmatpush1.xpose.msra.mxu0 0.0
    %1056 = vmatprep.subr.mxu0 0.0
    %1057 = vmatpush1.xpose.msra.mxu0 0.0
    %1058 = vmatprep.subr.mxu0 0.0
    %1059 = vmatpush1.xpose.msra.mxu0 0.0
    %1060 = vmatprep.subr.mxu0 0.0
    %1061 = vmatpush1.xpose.msra.mxu0 0.0
    %1062 = vmatprep.subr.mxu0 0.0
    %1063 = vmatpush1.xpose.msra.mxu0 0.0
    %1064 = vmatprep.subr.mxu0 0.0
    %1065 = vmatpush1.xpose.msra.mxu0 0.0
    %1066 = vmatprep.subr.mxu0 0.0
    %1067 = vmatpush1.xpose.msra.mxu0 0.0
    %1068 = vmatprep.subr.mxu0 0.0
    %1069 = vmatpush1.xpose.msra.mxu0 0.0
    %1070 = vmatprep.subr.mxu0 0.0
    %1071 = vmatpush1.xpose.msra.mxu0 0.0
    %1072 = vmatprep.subr.mxu0 0.0
    %1073 = vmatpush1.xpose.msra.mxu0 0.0
    %1074 = vmatprep.subr.mxu0 0.0
    %1075 = vmatpush1.xpose.msra.mxu0 0.0
    %1076 = vmatprep.subr.mxu0 0.0
    %1077 = vmatpush1.xpose.msra.mxu0 0.0
    %1078 = vmatprep.subr.mxu0 0.0
    %1079 = vmatpush1.xpose.msra.mxu0 0.0
    %1080 = vmatprep.subr.mxu0 0.0
    %1081 = vmatpush1.xpose.msra.mxu0 0.0
    %1082 = vmatprep.subr.mxu0 0.0
    %1083 = vmatpush1.xpose.msra.mxu0 0.0
    %1084 = vmatprep.subr.mxu0 0.0
    %1085 = vmatpush1.xpose.msra.mxu0 0.0
    %1086 = vmatprep.subr.mxu0 0.0
    %1087 = vmatpush1.xpose.msra.mxu0 0.0
    %1088 = vmatprep.subr.mxu0 0.0
    %1089 = vmatpush1.xpose.msra.mxu0 0.0
    %1090 = vmatprep.mubr.f32.mxu0 0.0
    %1091 = vmatmul.mubr.f32.gmra.mrb[0].mxu0 %v1008
    %v1092 = vpop.f32.mrb[0].mxu0
    %v1093 = vadd.f32 0.0, %v1092
    %v1094 = vpop.f32.mrb[0].mxu0
    %1095 = vdwg.mxu0
    %1096 = vrot.lane.b32.xlu0 %v143, 120
    %v1097 = vpop.permute.xlu0 %1096
    %1098 = vrot.lane.b32.xlu0 %v310, 120
    %v1099 = vpop.permute.xlu0 %1098
    %1100 = vrot.lane.b32.xlu0 %v315, 120
    %v1101 = vpop.permute.xlu0 %1100
    %1102 = vrot.lane.b32.xlu0 %v320, 120
    %v1103 = vpop.permute.xlu0 %1102
    %1104 = vrot.lane.b32.xlu0 %v325, 120
    %v1105 = vpop.permute.xlu0 %1104
    %1106 = vrot.lane.b32.xlu0 %v330, 120
    %v1107 = vpop.permute.xlu0 %1106
    %1108 = vrot.lane.b32.xlu0 %v335, 120
    %v1109 = vpop.permute.xlu0 %1108
    %1110 = vrot.lane.b32.xlu0 %v340, 120
    %v1111 = vpop.permute.xlu0 %1110
    %1112 = vrot.lane.b32.xlu0 %v345, 120
    %v1113 = vpop.permute.xlu0 %1112
    %v1114 = vsel %vm550, %v1097, 0
    %v1116 = vsel %vm550, %v1099, 0
    %v1118 = vsel %vm550, %v1101, 0
    %v1120 = vsel %vm550, %v1103, 0
    %v1122 = vsel %vm550, %v1105, 0
    %v1124 = vsel %vm550, %v1107, 0
    %v1126 = vsel %vm550, %v1109, 0
    %v1128 = vsel %vm550, %v1111, 0
    %v1130 = vsel %vm550, %v1113, 0
    %1132 = vmatprep.subr.mxu0 0.0
    %1133 = vmatpush1.xpose.msra.mxu0 %v1116
    %1134 = vmatprep.subr.mxu0 0.0
    %1135 = vmatpush1.xpose.msra.mxu0 %v1118
    %1136 = vmatprep.subr.mxu0 0.0
    %1137 = vmatpush1.xpose.msra.mxu0 %v1120
    %1138 = vmatprep.subr.mxu0 0.0
    %1139 = vmatpush1.xpose.msra.mxu0 %v1122
    %1140 = vmatprep.subr.mxu0 0.0
    %1141 = vmatpush1.xpose.msra.mxu0 %v1124
    %1142 = vmatprep.subr.mxu0 0.0
    %1143 = vmatpush1.xpose.msra.mxu0 %v1126
    %1144 = vmatprep.subr.mxu0 0.0
    %1145 = vmatpush1.xpose.msra.mxu0 %v1128
    %1146 = vmatprep.subr.mxu0 0.0
    %1147 = vmatpush1.xpose.msra.mxu0 %v1130
    %1148 = vmatprep.subr.mxu0 0.0
    %1149 = vmatpush1.xpose.msra.mxu0 0.0
    %1150 = vmatprep.subr.mxu0 0.0
    %1151 = vmatpush1.xpose.msra.mxu0 0.0
    %1152 = vmatprep.subr.mxu0 0.0
    %1153 = vmatpush1.xpose.msra.mxu0 0.0
    %1154 = vmatprep.subr.mxu0 0.0
    %1155 = vmatpush1.xpose.msra.mxu0 0.0
    %1156 = vmatprep.subr.mxu0 0.0
    %1157 = vmatpush1.xpose.msra.mxu0 0.0
    %1158 = vmatprep.subr.mxu0 0.0
    %1159 = vmatpush1.xpose.msra.mxu0 0.0
    %1160 = vmatprep.subr.mxu0 0.0
    %1161 = vmatpush1.xpose.msra.mxu0 0.0
    %1162 = vmatprep.subr.mxu0 0.0
    %1163 = vmatpush1.xpose.msra.mxu0 0.0
    %1164 = vmatprep.subr.mxu0 0.0
    %1165 = vmatpush1.xpose.msra.mxu0 0.0
    %1166 = vmatprep.subr.mxu0 0.0
    %1167 = vmatpush1.xpose.msra.mxu0 0.0
    %1168 = vmatprep.subr.mxu0 0.0
    %1169 = vmatpush1.xpose.msra.mxu0 0.0
    %1170 = vmatprep.subr.mxu0 0.0
    %1171 = vmatpush1.xpose.msra.mxu0 0.0
    %1172 = vmatprep.subr.mxu0 0.0
    %1173 = vmatpush1.xpose.msra.mxu0 0.0
    %1174 = vmatprep.subr.mxu0 0.0
    %1175 = vmatpush1.xpose.msra.mxu0 0.0
    %1176 = vmatprep.subr.mxu0 0.0
    %1177 = vmatpush1.xpose.msra.mxu0 0.0
    %1178 = vmatprep.subr.mxu0 0.0
    %1179 = vmatpush1.xpose.msra.mxu0 0.0
    %1180 = vmatprep.subr.mxu0 0.0
    %1181 = vmatpush1.xpose.msra.mxu0 0.0
    %1182 = vmatprep.subr.mxu0 0.0
    %1183 = vmatpush1.xpose.msra.mxu0 0.0
    %1184 = vmatprep.subr.mxu0 0.0
    %1185 = vmatpush1.xpose.msra.mxu0 0.0
    %1186 = vmatprep.subr.mxu0 0.0
    %1187 = vmatpush1.xpose.msra.mxu0 0.0
    %1188 = vmatprep.subr.mxu0 0.0
    %1189 = vmatpush1.xpose.msra.mxu0 0.0
    %1190 = vmatprep.subr.mxu0 0.0
    %1191 = vmatpush1.xpose.msra.mxu0 0.0
    %1192 = vmatprep.subr.mxu0 0.0
    %1193 = vmatpush1.xpose.msra.mxu0 0.0
    %1194 = vmatprep.subr.mxu0 0.0
    %1195 = vmatpush1.xpose.msra.mxu0 0.0
    %1196 = vmatprep.mubr.f32.mxu0 0.0
    %1197 = vmatmul.mubr.f32.gmra.mrb[0].mxu0 %v1114
    %v1198 = vpop.f32.mrb[0].mxu0
    %v1199 = vadd.f32 0.0, %v1198
    %v1200 = vpop.f32.mrb[0].mxu0
    %1201 = vdwg.mxu0
    %v1202 = vsel %vm745, %v1093, -inf
    %1203 = vmax.xlane.f32.xlu0 %v1202
    %v1204 = vpop.xlane.xlu0 %1203
    %v1205 = vsel %vm745, %v1199, -inf
    %1206 = vmax.xlane.f32.xlu0 %v1205
    %v1207 = vpop.xlane.xlu0 %1206
    %vm1208 = vcmp.ge.f32.partialorder %v1093, %v1204
    %vm1209 = vcmp.ge.f32.partialorder %v1199, %v1207
    %v1210 = vsel %vm1208, -inf, %v1093
    %v1211 = vsel %vm1209, -inf, %v1199
    %v1212 = vsel %vm745, %v1210, -inf
    %1213 = vmax.xlane.f32.xlu0 %v1212
    %v1214 = vpop.xlane.xlu0 %1213
    %v1215 = vsel %vm745, %v1211, -inf
    %1216 = vmax.xlane.f32.xlu0 %v1215
    %v1217 = vpop.xlane.xlu0 %1216
    %vm1218 = vcmp.ge.f32.partialorder %v1210, %v1214
    %vm1219 = vcmp.ge.f32.partialorder %v1211, %v1217
    %v1220 = vsel %vm1218, -inf, %v1210
    %v1221 = vsel %vm1219, -inf, %v1211
    %v1222 = vsel %vm745, %v1220, -inf
    %1223 = vmax.xlane.f32.xlu0 %v1222
    %v1224 = vpop.xlane.xlu0 %1223
    %v1225 = vsel %vm745, %v1221, -inf
    %1226 = vmax.xlane.f32.xlu0 %v1225
    %v1227 = vpop.xlane.xlu0 %1226
    %vm1228 = vcmp.ge.f32.partialorder %v1220, %v1224
    %vm1229 = vcmp.ge.f32.partialorder %v1221, %v1227
    %v1230 = vsel %vm1228, -inf, %v1220
    %v1231 = vsel %vm1229, -inf, %v1221
    %v1232 = vsel %vm745, %v1230, -inf
    %1233 = vmax.xlane.f32.xlu0 %v1232
    %v1234 = vpop.xlane.xlu0 %1233
    %v1235 = vsel %vm745, %v1231, -inf
    %1236 = vmax.xlane.f32.xlu0 %v1235
    %v1237 = vpop.xlane.xlu0 %1236
    %vm1238 = vcmp.ge.f32.partialorder %v1230, %v1234
    %vm1239 = vcmp.ge.f32.partialorder %v1231, %v1237
    %v1240 = vsel %vm1238, -inf, %v1230
    %v1241 = vsel %vm1239, -inf, %v1231
    %v1242 = vsel %vm745, %v1240, -inf
    %1243 = vmax.xlane.f32.xlu0 %v1242
    %v1244 = vpop.xlane.xlu0 %1243
    %v1245 = vsel %vm745, %v1241, -inf
    %1246 = vmax.xlane.f32.xlu0 %v1245
    %v1247 = vpop.xlane.xlu0 %1246
    %vm1248 = vcmp.ge.f32.partialorder %v1240, %v1244
    %vm1249 = vcmp.ge.f32.partialorder %v1241, %v1247
    %v1250 = vsel %vm1248, -inf, %v1240
    %v1251 = vsel %vm1249, -inf, %v1241
    %v1252 = vsel %vm745, %v1250, -inf
    %1253 = vmax.xlane.f32.xlu0 %v1252
    %v1254 = vpop.xlane.xlu0 %1253
    %v1255 = vsel %vm745, %v1251, -inf
    %1256 = vmax.xlane.f32.xlu0 %v1255
    %v1257 = vpop.xlane.xlu0 %1256
    %vm1258 = vcmp.ge.f32.partialorder %v1250, %v1254
    %vm1259 = vcmp.ge.f32.partialorder %v1251, %v1257
    %v1260 = vsel %vm1258, -inf, %v1250
    %v1261 = vsel %vm1259, -inf, %v1251
    %v1262 = vsel %vm745, %v1260, -inf
    %1263 = vmax.xlane.f32.xlu0 %v1262
    %v1264 = vpop.xlane.xlu0 %1263
    %v1265 = vsel %vm745, %v1261, -inf
    %1266 = vmax.xlane.f32.xlu0 %v1265
    %v1267 = vpop.xlane.xlu0 %1266
    %vm1268 = vcmp.ge.f32.partialorder %v1260, %v1264
    %vm1269 = vcmp.ge.f32.partialorder %v1261, %v1267
    %v1270 = vsel %vm1268, -inf, %v1260
    %v1271 = vsel %vm1269, -inf, %v1261
    %v1272 = vsel %vm745, %v1270, -inf
    %1273 = vmax.xlane.f32.xlu0 %v1272
    %v1274 = vpop.xlane.xlu0 %1273
    %v1275 = vsel %vm745, %v1271, -inf
    %1276 = vmax.xlane.f32.xlu0 %v1275
    %v1277 = vpop.xlane.xlu0 %1276
    %vm1278 = vcmp.ge.f32.partialorder %v1093, %v1274
    %vm1279 = vcmp.ge.f32.partialorder %v1199, %v1277
    %v1280 = vsub.f32 %v1093, %v1204
    %v1281 = vsub.f32 %v1199, %v1207
    %v1282 = vmul.f32 %v1280, 1.442695
    %v1283 = vpow.pop %v1282
    %v1284 = vmul.f32 %v1281, 1.442695
    %v1285 = vpow.pop %v1284
    %v1286 = vsel %vm1278, %v1283, 0.0
    %v1287 = vsel %vm1279, %v1285, 0.0
    %v1288 = vsel %vm745, %v1286, 0.0
    %1289 = vadd.xlane.f32.xlu0 %v1288
    %v1290 = vpop.xlane.xlu0 %1289
    %v1291 = vsel %vm745, %v1287, 0.0
    %1292 = vadd.xlane.f32.xlu0 %v1291
    %v1293 = vpop.xlane.xlu0 %1292
    %v1294 = vrcp.pop %v1290
    %v1295 = vmul.f32 %v1286, %v1294
    %v1296 = vrcp.pop %v1293
    %v1297 = vmul.f32 %v1287, %v1296
    %1306 = vrot.lane.b32.xlu0 %v472, 120
    %v1307 = vpop.permute.xlu0 %1306
    %1308 = vrot.lane.b32.xlu0 %v477, 120
    %v1309 = vpop.permute.xlu0 %1308
    %1310 = vrot.lane.b32.xlu0 %v482, 120
    %v1311 = vpop.permute.xlu0 %1310
    %1312 = vrot.lane.b32.xlu0 %v487, 120
    %v1313 = vpop.permute.xlu0 %1312
    %1314 = vrot.lane.b32.xlu0 %v492, 120
    %v1315 = vpop.permute.xlu0 %1314
    %1316 = vrot.lane.b32.xlu0 %v497, 120
    %v1317 = vpop.permute.xlu0 %1316
    %1318 = vrot.lane.b32.xlu0 %v502, 120
    %v1319 = vpop.permute.xlu0 %1318
    %1320 = vrot.lane.b32.xlu0 %v507, 120
    %v1321 = vpop.permute.xlu0 %1320
    %v1331 = vsel %vm745, %v1295, 0
    %1333 = vmatprep.subr.mxu0 0.0
    %1334 = vmatpush1.msra.mxu0 %v1307
    %1335 = vmatprep.subr.mxu0 0.0
    %1336 = vmatpush1.msra.mxu0 %v1309
    %1337 = vmatprep.subr.mxu0 0.0
    %1338 = vmatpush1.msra.mxu0 %v1311
    %1339 = vmatprep.subr.mxu0 0.0
    %1340 = vmatpush1.msra.mxu0 %v1313
    %1341 = vmatprep.subr.mxu0 0.0
    %1342 = vmatpush1.msra.mxu0 %v1315
    %1343 = vmatprep.subr.mxu0 0.0
    %1344 = vmatpush1.msra.mxu0 %v1317
    %1345 = vmatprep.subr.mxu0 0.0
    %1346 = vmatpush1.msra.mxu0 %v1319
    %1347 = vmatprep.subr.mxu0 0.0
    %1348 = vmatpush1.msra.mxu0 %v1321
    %1349 = vmatprep.subr.mxu0 0.0
    %1350 = vmatpush1.msra.mxu0 0.0
    %1351 = vmatprep.subr.mxu0 0.0
    %1352 = vmatpush1.msra.mxu0 0.0
    %1353 = vmatprep.subr.mxu0 0.0
    %1354 = vmatpush1.msra.mxu0 0.0
    %1355 = vmatprep.subr.mxu0 0.0
    %1356 = vmatpush1.msra.mxu0 0.0
    %1357 = vmatprep.subr.mxu0 0.0
    %1358 = vmatpush1.msra.mxu0 0.0
    %1359 = vmatprep.subr.mxu0 0.0
    %1360 = vmatpush1.msra.mxu0 0.0
    %1361 = vmatprep.subr.mxu0 0.0
    %1362 = vmatpush1.msra.mxu0 0.0
    %1363 = vmatprep.subr.mxu0 0.0
    %1364 = vmatpush1.msra.mxu0 0.0
    %1365 = vmatprep.subr.mxu0 0.0
    %1366 = vmatpush1.msra.mxu0 0.0
    %1367 = vmatprep.subr.mxu0 0.0
    %1368 = vmatpush1.msra.mxu0 0.0
    %1369 = vmatprep.subr.mxu0 0.0
    %1370 = vmatpush1.msra.mxu0 0.0
    %1371 = vmatprep.subr.mxu0 0.0
    %1372 = vmatpush1.msra.mxu0 0.0
    %1373 = vmatprep.subr.mxu0 0.0
    %1374 = vmatpush1.msra.mxu0 0.0
    %1375 = vmatprep.subr.mxu0 0.0
    %1376 = vmatpush1.msra.mxu0 0.0
    %1377 = vmatprep.subr.mxu0 0.0
    %1378 = vmatpush1.msra.mxu0 0.0
    %1379 = vmatprep.subr.mxu0 0.0
    %1380 = vmatpush1.msra.mxu0 0.0
    %1381 = vmatprep.subr.mxu0 0.0
    %1382 = vmatpush1.msra.mxu0 0.0
    %1383 = vmatprep.subr.mxu0 0.0
    %1384 = vmatpush1.msra.mxu0 0.0
    %1385 = vmatprep.subr.mxu0 0.0
    %1386 = vmatpush1.msra.mxu0 0.0
    %1387 = vmatprep.subr.mxu0 0.0
    %1388 = vmatpush1.msra.mxu0 0.0
    %1389 = vmatprep.subr.mxu0 0.0
    %1390 = vmatpush1.msra.mxu0 0.0
    %1391 = vmatprep.subr.mxu0 0.0
    %1392 = vmatpush1.msra.mxu0 0.0
    %1393 = vmatprep.subr.mxu0 0.0
    %1394 = vmatpush1.msra.mxu0 0.0
    %1395 = vmatprep.subr.mxu0 0.0
    %1396 = vmatpush1.msra.mxu0 0.0
    %1397 = vmatprep.mubr.f32.mxu0 0.0
    %1398 = vmatmul.mubr.f32.gmra.mrb[0].mxu0 %v1331
    %v1399 = vpop.f32.mrb[0].mxu0
    %v1400 = vadd.f32 0.0, %v1399
    %v1401 = vpop.f32.mrb[0].mxu0
    %1402 = vdwg.mxu0
    %1411 = vrot.lane.b32.xlu0 %v512, 120
    %v1412 = vpop.permute.xlu0 %1411
    %1413 = vrot.lane.b32.xlu0 %v517, 120
    %v1414 = vpop.permute.xlu0 %1413
    %1415 = vrot.lane.b32.xlu0 %v522, 120
    %v1416 = vpop.permute.xlu0 %1415
    %1417 = vrot.lane.b32.xlu0 %v527, 120
    %v1418 = vpop.permute.xlu0 %1417
    %1419 = vrot.lane.b32.xlu0 %v532, 120
    %v1420 = vpop.permute.xlu0 %1419
    %1421 = vrot.lane.b32.xlu0 %v537, 120
    %v1422 = vpop.permute.xlu0 %1421
    %1423 = vrot.lane.b32.xlu0 %v542, 120
    %v1424 = vpop.permute.xlu0 %1423
    %1425 = vrot.lane.b32.xlu0 %v547, 120
    %v1426 = vpop.permute.xlu0 %1425
    %v1436 = vsel %vm745, %v1297, 0
    %1438 = vmatprep.subr.mxu0 0.0
    %1439 = vmatpush1.msra.mxu0 %v1412
    %1440 = vmatprep.subr.mxu0 0.0
    %1441 = vmatpush1.msra.mxu0 %v1414
    %1442 = vmatprep.subr.mxu0 0.0
    %1443 = vmatpush1.msra.mxu0 %v1416
    %1444 = vmatprep.subr.mxu0 0.0
    %1445 = vmatpush1.msra.mxu0 %v1418
    %1446 = vmatprep.subr.mxu0 0.0
    %1447 = vmatpush1.msra.mxu0 %v1420
    %1448 = vmatprep.subr.mxu0 0.0
    %1449 = vmatpush1.msra.mxu0 %v1422
    %1450 = vmatprep.subr.mxu0 0.0
    %1451 = vmatpush1.msra.mxu0 %v1424
    %1452 = vmatprep.subr.mxu0 0.0
    %1453 = vmatpush1.msra.mxu0 %v1426
    %1454 = vmatprep.subr.mxu0 0.0
    %1455 = vmatpush1.msra.mxu0 0.0
    %1456 = vmatprep.subr.mxu0 0.0
    %1457 = vmatpush1.msra.mxu0 0.0
    %1458 = vmatprep.subr.mxu0 0.0
    %1459 = vmatpush1.msra.mxu0 0.0
    %1460 = vmatprep.subr.mxu0 0.0
    %1461 = vmatpush1.msra.mxu0 0.0
    %1462 = vmatprep.subr.mxu0 0.0
    %1463 = vmatpush1.msra.mxu0 0.0
    %1464 = vmatprep.subr.mxu0 0.0
    %1465 = vmatpush1.msra.mxu0 0.0
    %1466 = vmatprep.subr.mxu0 0.0
    %1467 = vmatpush1.msra.mxu0 0.0
    %1468 = vmatprep.subr.mxu0 0.0
    %1469 = vmatpush1.msra.mxu0 0.0
    %1470 = vmatprep.subr.mxu0 0.0
    %1471 = vmatpush1.msra.mxu0 0.0
    %1472 = vmatprep.subr.mxu0 0.0
    %1473 = vmatpush1.msra.mxu0 0.0
    %1474 = vmatprep.subr.mxu0 0.0
    %1475 = vmatpush1.msra.mxu0 0.0
    %1476 = vmatprep.subr.mxu0 0.0
    %1477 = vmatpush1.msra.mxu0 0.0
    %1478 = vmatprep.subr.mxu0 0.0
    %1479 = vmatpush1.msra.mxu0 0.0
    %1480 = vmatprep.subr.mxu0 0.0
    %1481 = vmatpush1.msra.mxu0 0.0
    %1482 = vmatprep.subr.mxu0 0.0
    %1483 = vmatpush1.msra.mxu0 0.0
    %1484 = vmatprep.subr.mxu0 0.0
    %1485 = vmatpush1.msra.mxu0 0.0
    %1486 = vmatprep.subr.mxu0 0.0
    %1487 = vmatpush1.msra.mxu0 0.0
    %1488 = vmatprep.subr.mxu0 0.0
    %1489 = vmatpush1.msra.mxu0 0.0
    %1490 = vmatprep.subr.mxu0 0.0
    %1491 = vmatpush1.msra.mxu0 0.0
    %1492 = vmatprep.subr.mxu0 0.0
    %1493 = vmatpush1.msra.mxu0 0.0
    %1494 = vmatprep.subr.mxu0 0.0
    %1495 = vmatpush1.msra.mxu0 0.0
    %1496 = vmatprep.subr.mxu0 0.0
    %1497 = vmatpush1.msra.mxu0 0.0
    %1498 = vmatprep.subr.mxu0 0.0
    %1499 = vmatpush1.msra.mxu0 0.0
    %1500 = vmatprep.subr.mxu0 0.0
    %1501 = vmatpush1.msra.mxu0 0.0
    %1502 = vmatprep.mubr.f32.mxu0 0.0
    %1503 = vmatmul.mubr.f32.gmra.mrb[0].mxu0 %v1436
    %v1504 = vpop.f32.mrb[0].mxu0
    %v1505 = vadd.f32 0.0, %v1504
    %v1506 = vpop.f32.mrb[0].mxu0
    %1507 = vdwg.mxu0
    %1510 = vrot.lane.b32.xlu0 %v1400, 8
    %v1511 = vpop.permute.xlu0 %1510
    %1512 = vrot.lane.b32.xlu0 %v1505, 8
    %v1513 = vpop.permute.xlu0 %1512
    %vm1516 = vcmask 130112
    %1517 = vst.msk [vmem:[#allocation2] sm:$0xff] %vm1516, %v1511
    %1518 = vst.msk [vmem:[#allocation2 + $0x8] sm:$0xff] %vm1516, %v1513
    %1519 = vrot.lane.b32.xlu0 %v138, 112
    %v1520 = vpop.permute.xlu0 %1519
    %1521 = vrot.lane.b32.xlu0 %v270, 112
    %v1522 = vpop.permute.xlu0 %1521
    %1523 = vrot.lane.b32.xlu0 %v275, 112
    %v1524 = vpop.permute.xlu0 %1523
    %1525 = vrot.lane.b32.xlu0 %v280, 112
    %v1526 = vpop.permute.xlu0 %1525
    %1527 = vrot.lane.b32.xlu0 %v285, 112
    %v1528 = vpop.permute.xlu0 %1527
    %1529 = vrot.lane.b32.xlu0 %v290, 112
    %v1530 = vpop.permute.xlu0 %1529
    %1531 = vrot.lane.b32.xlu0 %v295, 112
    %v1532 = vpop.permute.xlu0 %1531
    %1533 = vrot.lane.b32.xlu0 %v300, 112
    %v1534 = vpop.permute.xlu0 %1533
    %1535 = vrot.lane.b32.xlu0 %v305, 112
    %v1536 = vpop.permute.xlu0 %1535
    %v1537 = vsel %vm550, %v1520, 0
    %v1539 = vsel %vm550, %v1522, 0
    %v1541 = vsel %vm550, %v1524, 0
    %v1543 = vsel %vm550, %v1526, 0
    %v1545 = vsel %vm550, %v1528, 0
    %v1547 = vsel %vm550, %v1530, 0
    %v1549 = vsel %vm550, %v1532, 0
    %v1551 = vsel %vm550, %v1534, 0
    %v1553 = vsel %vm550, %v1536, 0
    %1555 = vmatprep.subr.mxu0 0.0
    %1556 = vmatpush1.xpose.msra.mxu0 %v1539
    %1557 = vmatprep.subr.mxu0 0.0
    %1558 = vmatpush1.xpose.msra.mxu0 %v1541
    %1559 = vmatprep.subr.mxu0 0.0
    %1560 = vmatpush1.xpose.msra.mxu0 %v1543
    %1561 = vmatprep.subr.mxu0 0.0
    %1562 = vmatpush1.xpose.msra.mxu0 %v1545
    %1563 = vmatprep.subr.mxu0 0.0
    %1564 = vmatpush1.xpose.msra.mxu0 %v1547
    %1565 = vmatprep.subr.mxu0 0.0
    %1566 = vmatpush1.xpose.msra.mxu0 %v1549
    %1567 = vmatprep.subr.mxu0 0.0
    %1568 = vmatpush1.xpose.msra.mxu0 %v1551
    %1569 = vmatprep.subr.mxu0 0.0
    %1570 = vmatpush1.xpose.msra.mxu0 %v1553
    %1571 = vmatprep.subr.mxu0 0.0
    %1572 = vmatpush1.xpose.msra.mxu0 0.0
    %1573 = vmatprep.subr.mxu0 0.0
    %1574 = vmatpush1.xpose.msra.mxu0 0.0
    %1575 = vmatprep.subr.mxu0 0.0
    %1576 = vmatpush1.xpose.msra.mxu0 0.0
    %1577 = vmatprep.subr.mxu0 0.0
    %1578 = vmatpush1.xpose.msra.mxu0 0.0
    %1579 = vmatprep.subr.mxu0 0.0
    %1580 = vmatpush1.xpose.msra.mxu0 0.0
    %1581 = vmatprep.subr.mxu0 0.0
    %1582 = vmatpush1.xpose.msra.mxu0 0.0
    %1583 = vmatprep.subr.mxu0 0.0
    %1584 = vmatpush1.xpose.msra.mxu0 0.0
    %1585 = vmatprep.subr.mxu0 0.0
    %1586 = vmatpush1.xpose.msra.mxu0 0.0
    %1587 = vmatprep.subr.mxu0 0.0
    %1588 = vmatpush1.xpose.msra.mxu0 0.0
    %1589 = vmatprep.subr.mxu0 0.0
    %1590 = vmatpush1.xpose.msra.mxu0 0.0
    %1591 = vmatprep.subr.mxu0 0.0
    %1592 = vmatpush1.xpose.msra.mxu0 0.0
    %1593 = vmatprep.subr.mxu0 0.0
    %1594 = vmatpush1.xpose.msra.mxu0 0.0
    %1595 = vmatprep.subr.mxu0 0.0
    %1596 = vmatpush1.xpose.msra.mxu0 0.0
    %1597 = vmatprep.subr.mxu0 0.0
    %1598 = vmatpush1.xpose.msra.mxu0 0.0
    %1599 = vmatprep.subr.mxu0 0.0
    %1600 = vmatpush1.xpose.msra.mxu0 0.0
    %1601 = vmatprep.subr.mxu0 0.0
    %1602 = vmatpush1.xpose.msra.mxu0 0.0
    %1603 = vmatprep.subr.mxu0 0.0
    %1604 = vmatpush1.xpose.msra.mxu0 0.0
    %1605 = vmatprep.subr.mxu0 0.0
    %1606 = vmatpush1.xpose.msra.mxu0 0.0
    %1607 = vmatprep.subr.mxu0 0.0
    %1608 = vmatpush1.xpose.msra.mxu0 0.0
    %1609 = vmatprep.subr.mxu0 0.0
    %1610 = vmatpush1.xpose.msra.mxu0 0.0
    %1611 = vmatprep.subr.mxu0 0.0
    %1612 = vmatpush1.xpose.msra.mxu0 0.0
    %1613 = vmatprep.subr.mxu0 0.0
    %1614 = vmatpush1.xpose.msra.mxu0 0.0
    %1615 = vmatprep.subr.mxu0 0.0
    %1616 = vmatpush1.xpose.msra.mxu0 0.0
    %1617 = vmatprep.subr.mxu0 0.0
    %1618 = vmatpush1.xpose.msra.mxu0 0.0
    %1619 = vmatprep.mubr.f32.mxu0 0.0
    %1620 = vmatmul.mubr.f32.gmra.mrb[0].mxu0 %v1537
    %v1621 = vpop.f32.mrb[0].mxu0
    %v1622 = vadd.f32 0.0, %v1621
    %v1623 = vpop.f32.mrb[0].mxu0
    %1624 = vdwg.mxu0
    %1625 = vrot.lane.b32.xlu0 %v143, 112
    %v1626 = vpop.permute.xlu0 %1625
    %1627 = vrot.lane.b32.xlu0 %v310, 112
    %v1628 = vpop.permute.xlu0 %1627
    %1629 = vrot.lane.b32.xlu0 %v315, 112
    %v1630 = vpop.permute.xlu0 %1629
    %1631 = vrot.lane.b32.xlu0 %v320, 112
    %v1632 = vpop.permute.xlu0 %1631
    %1633 = vrot.lane.b32.xlu0 %v325, 112
    %v1634 = vpop.permute.xlu0 %1633
    %1635 = vrot.lane.b32.xlu0 %v330, 112
    %v1636 = vpop.permute.xlu0 %1635
    %1637 = vrot.lane.b32.xlu0 %v335, 112
    %v1638 = vpop.permute.xlu0 %1637
    %1639 = vrot.lane.b32.xlu0 %v340, 112
    %v1640 = vpop.permute.xlu0 %1639
    %1641 = vrot.lane.b32.xlu0 %v345, 112
    %v1642 = vpop.permute.xlu0 %1641
    %v1643 = vsel %vm550, %v1626, 0
    %v1645 = vsel %vm550, %v1628, 0
    %v1647 = vsel %vm550, %v1630, 0
    %v1649 = vsel %vm550, %v1632, 0
    %v1651 = vsel %vm550, %v1634, 0
    %v1653 = vsel %vm550, %v1636, 0
    %v1655 = vsel %vm550, %v1638, 0
    %v1657 = vsel %vm550, %v1640, 0
    %v1659 = vsel %vm550, %v1642, 0
    %1661 = vmatprep.subr.mxu0 0.0
    %1662 = vmatpush1.xpose.msra.mxu0 %v1645
    %1663 = vmatprep.subr.mxu0 0.0
    %1664 = vmatpush1.xpose.msra.mxu0 %v1647
    %1665 = vmatprep.subr.mxu0 0.0
    %1666 = vmatpush1.xpose.msra.mxu0 %v1649
    %1667 = vmatprep.subr.mxu0 0.0
    %1668 = vmatpush1.xpose.msra.mxu0 %v1651
    %1669 = vmatprep.subr.mxu0 0.0
    %1670 = vmatpush1.xpose.msra.mxu0 %v1653
    %1671 = vmatprep.subr.mxu0 0.0
    %1672 = vmatpush1.xpose.msra.mxu0 %v1655
    %1673 = vmatprep.subr.mxu0 0.0
    %1674 = vmatpush1.xpose.msra.mxu0 %v1657
    %1675 = vmatprep.subr.mxu0 0.0
    %1676 = vmatpush1.xpose.msra.mxu0 %v1659
    %1677 = vmatprep.subr.mxu0 0.0
    %1678 = vmatpush1.xpose.msra.mxu0 0.0
    %1679 = vmatprep.subr.mxu0 0.0
    %1680 = vmatpush1.xpose.msra.mxu0 0.0
    %1681 = vmatprep.subr.mxu0 0.0
    %1682 = vmatpush1.xpose.msra.mxu0 0.0
    %1683 = vmatprep.subr.mxu0 0.0
    %1684 = vmatpush1.xpose.msra.mxu0 0.0
    %1685 = vmatprep.subr.mxu0 0.0
    %1686 = vmatpush1.xpose.msra.mxu0 0.0
    %1687 = vmatprep.subr.mxu0 0.0
    %1688 = vmatpush1.xpose.msra.mxu0 0.0
    %1689 = vmatprep.subr.mxu0 0.0
    %1690 = vmatpush1.xpose.msra.mxu0 0.0
    %1691 = vmatprep.subr.mxu0 0.0
    %1692 = vmatpush1.xpose.msra.mxu0 0.0
    %1693 = vmatprep.subr.mxu0 0.0
    %1694 = vmatpush1.xpose.msra.mxu0 0.0
    %1695 = vmatprep.subr.mxu0 0.0
    %1696 = vmatpush1.xpose.msra.mxu0 0.0
    %1697 = vmatprep.subr.mxu0 0.0
    %1698 = vmatpush1.xpose.msra.mxu0 0.0
    %1699 = vmatprep.subr.mxu0 0.0
    %1700 = vmatpush1.xpose.msra.mxu0 0.0
    %1701 = vmatprep.subr.mxu0 0.0
    %1702 = vmatpush1.xpose.msra.mxu0 0.0
    %1703 = vmatprep.subr.mxu0 0.0
    %1704 = vmatpush1.xpose.msra.mxu0 0.0
    %1705 = vmatprep.subr.mxu0 0.0
    %1706 = vmatpush1.xpose.msra.mxu0 0.0
    %1707 = vmatprep.subr.mxu0 0.0
    %1708 = vmatpush1.xpose.msra.mxu0 0.0
    %1709 = vmatprep.subr.mxu0 0.0
    %1710 = vmatpush1.xpose.msra.mxu0 0.0
    %1711 = vmatprep.subr.mxu0 0.0
    %1712 = vmatpush1.xpose.msra.mxu0 0.0
    %1713 = vmatprep.subr.mxu0 0.0
    %1714 = vmatpush1.xpose.msra.mxu0 0.0
    %1715 = vmatprep.subr.mxu0 0.0
    %1716 = vmatpush1.xpose.msra.mxu0 0.0
    %1717 = vmatprep.subr.mxu0 0.0
    %1718 = vmatpush1.xpose.msra.mxu0 0.0
    %1719 = vmatprep.subr.mxu0 0.0
    %1720 = vmatpush1.xpose.msra.mxu0 0.0
    %1721 = vmatprep.subr.mxu0 0.0
    %1722 = vmatpush1.xpose.msra.mxu0 0.0
    %1723 = vmatprep.subr.mxu0 0.0
    %1724 = vmatpush1.xpose.msra.mxu0 0.0
    %1725 = vmatprep.mubr.f32.mxu0 0.0
    %1726 = vmatmul.mubr.f32.gmra.mrb[0].mxu0 %v1643
    %v1727 = vpop.f32.mrb[0].mxu0
    %v1728 = vadd.f32 0.0, %v1727
    %v1729 = vpop.f32.mrb[0].mxu0
    %1730 = vdwg.mxu0
    %v1731 = vsel %vm745, %v1622, -inf
    %1732 = vmax.xlane.f32.xlu0 %v1731
    %v1733 = vpop.xlane.xlu0 %1732
    %v1734 = vsel %vm745, %v1728, -inf
    %1735 = vmax.xlane.f32.xlu0 %v1734
    %v1736 = vpop.xlane.xlu0 %1735
    %vm1737 = vcmp.ge.f32.partialorder %v1622, %v1733
    %vm1738 = vcmp.ge.f32.partialorder %v1728, %v1736
    %v1739 = vsel %vm1737, -inf, %v1622
    %v1740 = vsel %vm1738, -inf, %v1728
    %v1741 = vsel %vm745, %v1739, -inf
    %1742 = vmax.xlane.f32.xlu0 %v1741
    %v1743 = vpop.xlane.xlu0 %1742
    %v1744 = vsel %vm745, %v1740, -inf
    %1745 = vmax.xlane.f32.xlu0 %v1744
    %v1746 = vpop.xlane.xlu0 %1745
    %vm1747 = vcmp.ge.f32.partialorder %v1739, %v1743
    %vm1748 = vcmp.ge.f32.partialorder %v1740, %v1746
    %v1749 = vsel %vm1747, -inf, %v1739
    %v1750 = vsel %vm1748, -inf, %v1740
    %v1751 = vsel %vm745, %v1749, -inf
    %1752 = vmax.xlane.f32.xlu0 %v1751
    %v1753 = vpop.xlane.xlu0 %1752
    %v1754 = vsel %vm745, %v1750, -inf
    %1755 = vmax.xlane.f32.xlu0 %v1754
    %v1756 = vpop.xlane.xlu0 %1755
    %vm1757 = vcmp.ge.f32.partialorder %v1749, %v1753
    %vm1758 = vcmp.ge.f32.partialorder %v1750, %v1756
    %v1759 = vsel %vm1757, -inf, %v1749
    %v1760 = vsel %vm1758, -inf, %v1750
    %v1761 = vsel %vm745, %v1759, -inf
    %1762 = vmax.xlane.f32.xlu0 %v1761
    %v1763 = vpop.xlane.xlu0 %1762
    %v1764 = vsel %vm745, %v1760, -inf
    %1765 = vmax.xlane.f32.xlu0 %v1764
    %v1766 = vpop.xlane.xlu0 %1765
    %vm1767 = vcmp.ge.f32.partialorder %v1759, %v1763
    %vm1768 = vcmp.ge.f32.partialorder %v1760, %v1766
    %v1769 = vsel %vm1767, -inf, %v1759
    %v1770 = vsel %vm1768, -inf, %v1760
    %v1771 = vsel %vm745, %v1769, -inf
    %1772 = vmax.xlane.f32.xlu0 %v1771
    %v1773 = vpop.xlane.xlu0 %1772
    %v1774 = vsel %vm745, %v1770, -inf
    %1775 = vmax.xlane.f32.xlu0 %v1774
    %v1776 = vpop.xlane.xlu0 %1775
    %vm1777 = vcmp.ge.f32.partialorder %v1769, %v1773
    %vm1778 = vcmp.ge.f32.partialorder %v1770, %v1776
    %v1779 = vsel %vm1777, -inf, %v1769
    %v1780 = vsel %vm1778, -inf, %v1770
    %v1781 = vsel %vm745, %v1779, -inf
    %1782 = vmax.xlane.f32.xlu0 %v1781
    %v1783 = vpop.xlane.xlu0 %1782
    %v1784 = vsel %vm745, %v1780, -inf
    %1785 = vmax.xlane.f32.xlu0 %v1784
    %v1786 = vpop.xlane.xlu0 %1785
    %vm1787 = vcmp.ge.f32.partialorder %v1779, %v1783
    %vm1788 = vcmp.ge.f32.partialorder %v1780, %v1786
    %v1789 = vsel %vm1787, -inf, %v1779
    %v1790 = vsel %vm1788, -inf, %v1780
    %v1791 = vsel %vm745, %v1789, -inf
    %1792 = vmax.xlane.f32.xlu0 %v1791
    %v1793 = vpop.xlane.xlu0 %1792
    %v1794 = vsel %vm745, %v1790, -inf
    %1795 = vmax.xlane.f32.xlu0 %v1794
    %v1796 = vpop.xlane.xlu0 %1795
    %vm1797 = vcmp.ge.f32.partialorder %v1789, %v1793
    %vm1798 = vcmp.ge.f32.partialorder %v1790, %v1796
    %v1799 = vsel %vm1797, -inf, %v1789
    %v1800 = vsel %vm1798, -inf, %v1790
    %v1801 = vsel %vm745, %v1799, -inf
    %1802 = vmax.xlane.f32.xlu0 %v1801
    %v1803 = vpop.xlane.xlu0 %1802
    %v1804 = vsel %vm745, %v1800, -inf
    %1805 = vmax.xlane.f32.xlu0 %v1804
    %v1806 = vpop.xlane.xlu0 %1805
    %vm1807 = vcmp.ge.f32.partialorder %v1622, %v1803
    %vm1808 = vcmp.ge.f32.partialorder %v1728, %v1806
    %v1809 = vsub.f32 %v1622, %v1733
    %v1810 = vsub.f32 %v1728, %v1736
    %v1811 = vmul.f32 %v1809, 1.442695
    %v1812 = vpow.pop %v1811
    %v1813 = vmul.f32 %v1810, 1.442695
    %v1814 = vpow.pop %v1813
    %v1815 = vsel %vm1807, %v1812, 0.0
    %v1816 = vsel %vm1808, %v1814, 0.0
    %v1817 = vsel %vm745, %v1815, 0.0
    %1818 = vadd.xlane.f32.xlu0 %v1817
    %v1819 = vpop.xlane.xlu0 %1818
    %v1820 = vsel %vm745, %v1816, 0.0
    %1821 = vadd.xlane.f32.xlu0 %v1820
    %v1822 = vpop.xlane.xlu0 %1821
    %v1823 = vrcp.pop %v1819
    %v1824 = vmul.f32 %v1815, %v1823
    %v1825 = vrcp.pop %v1822
    %v1826 = vmul.f32 %v1816, %v1825
    %1827 = vrot.lane.b32.xlu0 %v472, 112
    %v1828 = vpop.permute.xlu0 %1827
    %1829 = vrot.lane.b32.xlu0 %v477, 112
    %v1830 = vpop.permute.xlu0 %1829
    %1831 = vrot.lane.b32.xlu0 %v482, 112
    %v1832 = vpop.permute.xlu0 %1831
    %1833 = vrot.lane.b32.xlu0 %v487, 112
    %v1834 = vpop.permute.xlu0 %1833
    %1835 = vrot.lane.b32.xlu0 %v492, 112
    %v1836 = vpop.permute.xlu0 %1835
    %1837 = vrot.lane.b32.xlu0 %v497, 112
    %v1838 = vpop.permute.xlu0 %1837
    %1839 = vrot.lane.b32.xlu0 %v502, 112
    %v1840 = vpop.permute.xlu0 %1839
    %1841 = vrot.lane.b32.xlu0 %v507, 112
    %v1842 = vpop.permute.xlu0 %1841
    %v1852 = vsel %vm745, %v1824, 0
    %1854 = vmatprep.subr.mxu0 0.0
    %1855 = vmatpush1.msra.mxu0 %v1828
    %1856 = vmatprep.subr.mxu0 0.0
    %1857 = vmatpush1.msra.mxu0 %v1830
    %1858 = vmatprep.subr.mxu0 0.0
    %1859 = vmatpush1.msra.mxu0 %v1832
    %1860 = vmatprep.subr.mxu0 0.0
    %1861 = vmatpush1.msra.mxu0 %v1834
    %1862 = vmatprep.subr.mxu0 0.0
    %1863 = vmatpush1.msra.mxu0 %v1836
    %1864 = vmatprep.subr.mxu0 0.0
    %1865 = vmatpush1.msra.mxu0 %v1838
    %1866 = vmatprep.subr.mxu0 0.0
    %1867 = vmatpush1.msra.mxu0 %v1840
    %1868 = vmatprep.subr.mxu0 0.0
    %1869 = vmatpush1.msra.mxu0 %v1842
    %1870 = vmatprep.subr.mxu0 0.0
    %1871 = vmatpush1.msra.mxu0 0.0
    %1872 = vmatprep.subr.mxu0 0.0
    %1873 = vmatpush1.msra.mxu0 0.0
    %1874 = vmatprep.subr.mxu0 0.0
    %1875 = vmatpush1.msra.mxu0 0.0
    %1876 = vmatprep.subr.mxu0 0.0
    %1877 = vmatpush1.msra.mxu0 0.0
    %1878 = vmatprep.subr.mxu0 0.0
    %1879 = vmatpush1.msra.mxu0 0.0
    %1880 = vmatprep.subr.mxu0 0.0
    %1881 = vmatpush1.msra.mxu0 0.0
    %1882 = vmatprep.subr.mxu0 0.0
    %1883 = vmatpush1.msra.mxu0 0.0
    %1884 = vmatprep.subr.mxu0 0.0
    %1885 = vmatpush1.msra.mxu0 0.0
    %1886 = vmatprep.subr.mxu0 0.0
    %1887 = vmatpush1.msra.mxu0 0.0
    %1888 = vmatprep.subr.mxu0 0.0
    %1889 = vmatpush1.msra.mxu0 0.0
    %1890 = vmatprep.subr.mxu0 0.0
    %1891 = vmatpush1.msra.mxu0 0.0
    %1892 = vmatprep.subr.mxu0 0.0
    %1893 = vmatpush1.msra.mxu0 0.0
    %1894 = vmatprep.subr.mxu0 0.0
    %1895 = vmatpush1.msra.mxu0 0.0
    %1896 = vmatprep.subr.mxu0 0.0
    %1897 = vmatpush1.msra.mxu0 0.0
    %1898 = vmatprep.subr.mxu0 0.0
    %1899 = vmatpush1.msra.mxu0 0.0
    %1900 = vmatprep.subr.mxu0 0.0
    %1901 = vmatpush1.msra.mxu0 0.0
    %1902 = vmatprep.subr.mxu0 0.0
    %1903 = vmatpush1.msra.mxu0 0.0
    %1904 = vmatprep.subr.mxu0 0.0
    %1905 = vmatpush1.msra.mxu0 0.0
    %1906 = vmatprep.subr.mxu0 0.0
    %1907 = vmatpush1.msra.mxu0 0.0
    %1908 = vmatprep.subr.mxu0 0.0
    %1909 = vmatpush1.msra.mxu0 0.0
    %1910 = vmatprep.subr.mxu0 0.0
    %1911 = vmatpush1.msra.mxu0 0.0
    %1912 = vmatprep.subr.mxu0 0.0
    %1913 = vmatpush1.msra.mxu0 0.0
    %1914 = vmatprep.subr.mxu0 0.0
    %1915 = vmatpush1.msra.mxu0 0.0
    %1916 = vmatprep.subr.mxu0 0.0
    %1917 = vmatpush1.msra.mxu0 0.0
    %1918 = vmatprep.mubr.f32.mxu0 0.0
    %1919 = vmatmul.mubr.f32.gmra.mrb[0].mxu0 %v1852
    %v1920 = vpop.f32.mrb[0].mxu0
    %v1921 = vadd.f32 0.0, %v1920
    %v1922 = vpop.f32.mrb[0].mxu0
    %1923 = vdwg.mxu0
    %1924 = vrot.lane.b32.xlu0 %v512, 112
    %v1925 = vpop.permute.xlu0 %1924
    %1926 = vrot.lane.b32.xlu0 %v517, 112
    %v1927 = vpop.permute.xlu0 %1926
    %1928 = vrot.lane.b32.xlu0 %v522, 112
    %v1929 = vpop.permute.xlu0 %1928
    %1930 = vrot.lane.b32.xlu0 %v527, 112
    %v1931 = vpop.permute.xlu0 %1930
    %1932 = vrot.lane.b32.xlu0 %v532, 112
    %v1933 = vpop.permute.xlu0 %1932
    %1934 = vrot.lane.b32.xlu0 %v537, 112
    %v1935 = vpop.permute.xlu0 %1934
    %1936 = vrot.lane.b32.xlu0 %v542, 112
    %v1937 = vpop.permute.xlu0 %1936
    %1938 = vrot.lane.b32.xlu0 %v547, 112
    %v1939 = vpop.permute.xlu0 %1938
    %v1949 = vsel %vm745, %v1826, 0
    %1951 = vmatprep.subr.mxu0 0.0
    %1952 = vmatpush1.msra.mxu0 %v1925
    %1953 = vmatprep.subr.mxu0 0.0
    %1954 = vmatpush1.msra.mxu0 %v1927
    %1955 = vmatprep.subr.mxu0 0.0
    %1956 = vmatpush1.msra.mxu0 %v1929
    %1957 = vmatprep.subr.mxu0 0.0
    %1958 = vmatpush1.msra.mxu0 %v1931
    %1959 = vmatprep.subr.mxu0 0.0
    %1960 = vmatpush1.msra.mxu0 %v1933
    %1961 = vmatprep.subr.mxu0 0.0
    %1962 = vmatpush1.msra.mxu0 %v1935
    %1963 = vmatprep.subr.mxu0 0.0
    %1964 = vmatpush1.msra.mxu0 %v1937
    %1965 = vmatprep.subr.mxu0 0.0
    %1966 = vmatpush1.msra.mxu0 %v1939
    %1967 = vmatprep.subr.mxu0 0.0
    %1968 = vmatpush1.msra.mxu0 0.0
    %1969 = vmatprep.subr.mxu0 0.0
    %1970 = vmatpush1.msra.mxu0 0.0
    %1971 = vmatprep.subr.mxu0 0.0
    %1972 = vmatpush1.msra.mxu0 0.0
    %1973 = vmatprep.subr.mxu0 0.0
    %1974 = vmatpush1.msra.mxu0 0.0
    %1975 = vmatprep.subr.mxu0 0.0
    %1976 = vmatpush1.msra.mxu0 0.0
    %1977 = vmatprep.subr.mxu0 0.0
    %1978 = vmatpush1.msra.mxu0 0.0
    %1979 = vmatprep.subr.mxu0 0.0
    %1980 = vmatpush1.msra.mxu0 0.0
    %1981 = vmatprep.subr.mxu0 0.0
    %1982 = vmatpush1.msra.mxu0 0.0
    %1983 = vmatprep.subr.mxu0 0.0
    %1984 = vmatpush1.msra.mxu0 0.0
    %1985 = vmatprep.subr.mxu0 0.0
    %1986 = vmatpush1.msra.mxu0 0.0
    %1987 = vmatprep.subr.mxu0 0.0
    %1988 = vmatpush1.msra.mxu0 0.0
    %1989 = vmatprep.subr.mxu0 0.0
    %1990 = vmatpush1.msra.mxu0 0.0
    %1991 = vmatprep.subr.mxu0 0.0
    %1992 = vmatpush1.msra.mxu0 0.0
    %1993 = vmatprep.subr.mxu0 0.0
    %1994 = vmatpush1.msra.mxu0 0.0
    %1995 = vmatprep.subr.mxu0 0.0
    %1996 = vmatpush1.msra.mxu0 0.0
    %1997 = vmatprep.subr.mxu0 0.0
    %1998 = vmatpush1.msra.mxu0 0.0
    %1999 = vmatprep.subr.mxu0 0.0
    %2000 = vmatpush1.msra.mxu0 0.0
    %2001 = vmatprep.subr.mxu0 0.0
    %2002 = vmatpush1.msra.mxu0 0.0
    %2003 = vmatprep.subr.mxu0 0.0
    %2004 = vmatpush1.msra.mxu0 0.0
    %2005 = vmatprep.subr.mxu0 0.0
    %2006 = vmatpush1.msra.mxu0 0.0
    %2007 = vmatprep.subr.mxu0 0.0
    %2008 = vmatpush1.msra.mxu0 0.0
    %2009 = vmatprep.subr.mxu0 0.0
    %2010 = vmatpush1.msra.mxu0 0.0
    %2011 = vmatprep.subr.mxu0 0.0
    %2012 = vmatpush1.msra.mxu0 0.0
    %2013 = vmatprep.subr.mxu0 0.0
    %2014 = vmatpush1.msra.mxu0 0.0
    %2015 = vmatprep.mubr.f32.mxu0 0.0
    %2016 = vmatmul.mubr.f32.gmra.mrb[0].mxu0 %v1949
    %v2017 = vpop.f32.mrb[0].mxu0
    %v2018 = vadd.f32 0.0, %v2017
    %v2019 = vpop.f32.mrb[0].mxu0
    %2020 = vdwg.mxu0
    %2023 = vrot.lane.b32.xlu0 %v1921, 16
    %v2024 = vpop.permute.xlu0 %2023
    %2025 = vrot.lane.b32.xlu0 %v2018, 16
    %v2026 = vpop.permute.xlu0 %2025
    %vm2029 = vcmask 195712
    %2030 = vst.msk [vmem:[#allocation2] sm:$0xff] %vm2029, %v2024
    %2031 = vst.msk [vmem:[#allocation2 + $0x8] sm:$0xff] %vm2029, %v2026
    %2032 = vrot.lane.b32.xlu0 %v138, 104
    %v2033 = vpop.permute.xlu0 %2032
    %2034 = vrot.lane.b32.xlu0 %v270, 104
    %v2035 = vpop.permute.xlu0 %2034
    %2036 = vrot.lane.b32.xlu0 %v275, 104
    %v2037 = vpop.permute.xlu0 %2036
    %2038 = vrot.lane.b32.xlu0 %v280, 104
    %v2039 = vpop.permute.xlu0 %2038
    %2040 = vrot.lane.b32.xlu0 %v285, 104
    %v2041 = vpop.permute.xlu0 %2040
    %2042 = vrot.lane.b32.xlu0 %v290, 104
    %v2043 = vpop.permute.xlu0 %2042
    %2044 = vrot.lane.b32.xlu0 %v295, 104
    %v2045 = vpop.permute.xlu0 %2044
    %2046 = vrot.lane.b32.xlu0 %v300, 104
    %v2047 = vpop.permute.xlu0 %2046
    %2048 = vrot.lane.b32.xlu0 %v305, 104
    %v2049 = vpop.permute.xlu0 %2048
    %v2050 = vsel %vm550, %v2033, 0
    %v2052 = vsel %vm550, %v2035, 0
    %v2054 = vsel %vm550, %v2037, 0
    %v2056 = vsel %vm550, %v2039, 0
    %v2058 = vsel %vm550, %v2041, 0
    %v2060 = vsel %vm550, %v2043, 0
    %v2062 = vsel %vm550, %v2045, 0
    %v2064 = vsel %vm550, %v2047, 0
    %v2066 = vsel %vm550, %v2049, 0
    %2068 = vmatprep.subr.mxu0 0.0
    %2069 = vmatpush1.xpose.msra.mxu0 %v2052
    %2070 = vmatprep.subr.mxu0 0.0
    %2071 = vmatpush1.xpose.msra.mxu0 %v2054
    %2072 = vmatprep.subr.mxu0 0.0
    %2073 = vmatpush1.xpose.msra.mxu0 %v2056
    %2074 = vmatprep.subr.mxu0 0.0
    %2075 = vmatpush1.xpose.msra.mxu0 %v2058
    %2076 = vmatprep.subr.mxu0 0.0
    %2077 = vmatpush1.xpose.msra.mxu0 %v2060
    %2078 = vmatprep.subr.mxu0 0.0
    %2079 = vmatpush1.xpose.msra.mxu0 %v2062
    %2080 = vmatprep.subr.mxu0 0.0
    %2081 = vmatpush1.xpose.msra.mxu0 %v2064
    %2082 = vmatprep.subr.mxu0 0.0
    %2083 = vmatpush1.xpose.msra.mxu0 %v2066
    %2084 = vmatprep.subr.mxu0 0.0
    %2085 = vmatpush1.xpose.msra.mxu0 0.0
    %2086 = vmatprep.subr.mxu0 0.0
    %2087 = vmatpush1.xpose.msra.mxu0 0.0
    %2088 = vmatprep.subr.mxu0 0.0
    %2089 = vmatpush1.xpose.msra.mxu0 0.0
    %2090 = vmatprep.subr.mxu0 0.0
    %2091 = vmatpush1.xpose.msra.mxu0 0.0
    %2092 = vmatprep.subr.mxu0 0.0
    %2093 = vmatpush1.xpose.msra.mxu0 0.0
    %2094 = vmatprep.subr.mxu0 0.0
    %2095 = vmatpush1.xpose.msra.mxu0 0.0
    %2096 = vmatprep.subr.mxu0 0.0
    %2097 = vmatpush1.xpose.msra.mxu0 0.0
    %2098 = vmatprep.subr.mxu0 0.0
    %2099 = vmatpush1.xpose.msra.mxu0 0.0
    %2100 = vmatprep.subr.mxu0 0.0
    %2101 = vmatpush1.xpose.msra.mxu0 0.0
    %2102 = vmatprep.subr.mxu0 0.0
    %2103 = vmatpush1.xpose.msra.mxu0 0.0
    %2104 = vmatprep.subr.mxu0 0.0
    %2105 = vmatpush1.xpose.msra.mxu0 0.0
    %2106 = vmatprep.subr.mxu0 0.0
    %2107 = vmatpush1.xpose.msra.mxu0 0.0
    %2108 = vmatprep.subr.mxu0 0.0
    %2109 = vmatpush1.xpose.msra.mxu0 0.0
    %2110 = vmatprep.subr.mxu0 0.0
    %2111 = vmatpush1.xpose.msra.mxu0 0.0
    %2112 = vmatprep.subr.mxu0 0.0
    %2113 = vmatpush1.xpose.msra.mxu0 0.0
    %2114 = vmatprep.subr.mxu0 0.0
    %2115 = vmatpush1.xpose.msra.mxu0 0.0
    %2116 = vmatprep.subr.mxu0 0.0
    %2117 = vmatpush1.xpose.msra.mxu0 0.0
    %2118 = vmatprep.subr.mxu0 0.0
    %2119 = vmatpush1.xpose.msra.mxu0 0.0
    %2120 = vmatprep.subr.mxu0 0.0
    %2121 = vmatpush1.xpose.msra.mxu0 0.0
    %2122 = vmatprep.subr.mxu0 0.0
    %2123 = vmatpush1.xpose.msra.mxu0 0.0
    %2124 = vmatprep.subr.mxu0 0.0
    %2125 = vmatpush1.xpose.msra.mxu0 0.0
    %2126 = vmatprep.subr.mxu0 0.0
    %2127 = vmatpush1.xpose.msra.mxu0 0.0
    %2128 = vmatprep.subr.mxu0 0.0
    %2129 = vmatpush1.xpose.msra.mxu0 0.0
    %2130 = vmatprep.subr.mxu0 0.0
    %2131 = vmatpush1.xpose.msra.mxu0 0.0
    %2132 = vmatprep.mubr.f32.mxu0 0.0
    %2133 = vmatmul.mubr.f32.gmra.mrb[0].mxu0 %v2050
    %v2134 = vpop.f32.mrb[0].mxu0
    %v2135 = vadd.f32 0.0, %v2134
    %v2136 = vpop.f32.mrb[0].mxu0
    %2137 = vdwg.mxu0
    %2138 = vrot.lane.b32.xlu0 %v143, 104
    %v2139 = vpop.permute.xlu0 %2138
    %2140 = vrot.lane.b32.xlu0 %v310, 104
    %v2141 = vpop.permute.xlu0 %2140
    %2142 = vrot.lane.b32.xlu0 %v315, 104
    %v2143 = vpop.permute.xlu0 %2142
    %2144 = vrot.lane.b32.xlu0 %v320, 104
    %v2145 = vpop.permute.xlu0 %2144
    %2146 = vrot.lane.b32.xlu0 %v325, 104
    %v2147 = vpop.permute.xlu0 %2146
    %2148 = vrot.lane.b32.xlu0 %v330, 104
    %v2149 = vpop.permute.xlu0 %2148
    %2150 = vrot.lane.b32.xlu0 %v335, 104
    %v2151 = vpop.permute.xlu0 %2150
    %2152 = vrot.lane.b32.xlu0 %v340, 104
    %v2153 = vpop.permute.xlu0 %2152
    %2154 = vrot.lane.b32.xlu0 %v345, 104
    %v2155 = vpop.permute.xlu0 %2154
    %v2156 = vsel %vm550, %v2139, 0
    %v2158 = vsel %vm550, %v2141, 0
    %v2160 = vsel %vm550, %v2143, 0
    %v2162 = vsel %vm550, %v2145, 0
    %v2164 = vsel %vm550, %v2147, 0
    %v2166 = vsel %vm550, %v2149, 0
    %v2168 = vsel %vm550, %v2151, 0
    %v2170 = vsel %vm550, %v2153, 0
    %v2172 = vsel %vm550, %v2155, 0
    %2174 = vmatprep.subr.mxu0 0.0
    %2175 = vmatpush1.xpose.msra.mxu0 %v2158
    %2176 = vmatprep.subr.mxu0 0.0
    %2177 = vmatpush1.xpose.msra.mxu0 %v2160
    %2178 = vmatprep.subr.mxu0 0.0
    %2179 = vmatpush1.xpose.msra.mxu0 %v2162
    %2180 = vmatprep.subr.mxu0 0.0
    %2181 = vmatpush1.xpose.msra.mxu0 %v2164
    %2182 = vmatprep.subr.mxu0 0.0
    %2183 = vmatpush1.xpose.msra.mxu0 %v2166
    %2184 = vmatprep.subr.mxu0 0.0
    %2185 = vmatpush1.xpose.msra.mxu0 %v2168
    %2186 = vmatprep.subr.mxu0 0.0
    %2187 = vmatpush1.xpose.msra.mxu0 %v2170
    %2188 = vmatprep.subr.mxu0 0.0
    %2189 = vmatpush1.xpose.msra.mxu0 %v2172
    %2190 = vmatprep.subr.mxu0 0.0
    %2191 = vmatpush1.xpose.msra.mxu0 0.0
    %2192 = vmatprep.subr.mxu0 0.0
    %2193 = vmatpush1.xpose.msra.mxu0 0.0
    %2194 = vmatprep.subr.mxu0 0.0
    %2195 = vmatpush1.xpose.msra.mxu0 0.0
    %2196 = vmatprep.subr.mxu0 0.0
    %2197 = vmatpush1.xpose.msra.mxu0 0.0
    %2198 = vmatprep.subr.mxu0 0.0
    %2199 = vmatpush1.xpose.msra.mxu0 0.0
    %2200 = vmatprep.subr.mxu0 0.0
    %2201 = vmatpush1.xpose.msra.mxu0 0.0
    %2202 = vmatprep.subr.mxu0 0.0
    %2203 = vmatpush1.xpose.msra.mxu0 0.0
    %2204 = vmatprep.subr.mxu0 0.0
    %2205 = vmatpush1.xpose.msra.mxu0 0.0
    %2206 = vmatprep.subr.mxu0 0.0
    %2207 = vmatpush1.xpose.msra.mxu0 0.0
    %2208 = vmatprep.subr.mxu0 0.0
    %2209 = vmatpush1.xpose.msra.mxu0 0.0
    %2210 = vmatprep.subr.mxu0 0.0
    %2211 = vmatpush1.xpose.msra.mxu0 0.0
    %2212 = vmatprep.subr.mxu0 0.0
    %2213 = vmatpush1.xpose.msra.mxu0 0.0
    %2214 = vmatprep.subr.mxu0 0.0
    %2215 = vmatpush1.xpose.msra.mxu0 0.0
    %2216 = vmatprep.subr.mxu0 0.0
    %2217 = vmatpush1.xpose.msra.mxu0 0.0
    %2218 = vmatprep.subr.mxu0 0.0
    %2219 = vmatpush1.xpose.msra.mxu0 0.0
    %2220 = vmatprep.subr.mxu0 0.0
    %2221 = vmatpush1.xpose.msra.mxu0 0.0
    %2222 = vmatprep.subr.mxu0 0.0
    %2223 = vmatpush1.xpose.msra.mxu0 0.0
    %2224 = vmatprep.subr.mxu0 0.0
    %2225 = vmatpush1.xpose.msra.mxu0 0.0
    %2226 = vmatprep.subr.mxu0 0.0
    %2227 = vmatpush1.xpose.msra.mxu0 0.0
    %2228 = vmatprep.subr.mxu0 0.0
    %2229 = vmatpush1.xpose.msra.mxu0 0.0
    %2230 = vmatprep.subr.mxu0 0.0
    %2231 = vmatpush1.xpose.msra.mxu0 0.0
    %2232 = vmatprep.subr.mxu0 0.0
    %2233 = vmatpush1.xpose.msra.mxu0 0.0
    %2234 = vmatprep.subr.mxu0 0.0
    %2235 = vmatpush1.xpose.msra.mxu0 0.0
    %2236 = vmatprep.subr.mxu0 0.0
    %2237 = vmatpush1.xpose.msra.mxu0 0.0
    %2238 = vmatprep.mubr.f32.mxu0 0.0
    %2239 = vmatmul.mubr.f32.gmra.mrb[0].mxu0 %v2156
    %v2240 = vpop.f32.mrb[0].mxu0
    %v2241 = vadd.f32 0.0, %v2240
    %v2242 = vpop.f32.mrb[0].mxu0
    %2243 = vdwg.mxu0
    %v2244 = vsel %vm745, %v2135, -inf
    %2245 = vmax.xlane.f32.xlu0 %v2244
    %v2246 = vpop.xlane.xlu0 %2245
    %v2247 = vsel %vm745, %v2241, -inf
    %2248 = vmax.xlane.f32.xlu0 %v2247
    %v2249 = vpop.xlane.xlu0 %2248
    %vm2250 = vcmp.ge.f32.partialorder %v2135, %v2246
    %vm2251 = vcmp.ge.f32.partialorder %v2241, %v2249
    %v2252 = vsel %vm2250, -inf, %v2135
    %v2253 = vsel %vm2251, -inf, %v2241
    %v2254 = vsel %vm745, %v2252, -inf
    %2255 = vmax.xlane.f32.xlu0 %v2254
    %v2256 = vpop.xlane.xlu0 %2255
    %v2257 = vsel %vm745, %v2253, -inf
    %2258 = vmax.xlane.f32.xlu0 %v2257
    %v2259 = vpop.xlane.xlu0 %2258
    %vm2260 = vcmp.ge.f32.partialorder %v2252, %v2256
    %vm2261 = vcmp.ge.f32.partialorder %v2253, %v2259
    %v2262 = vsel %vm2260, -inf, %v2252
    %v2263 = vsel %vm2261, -inf, %v2253
    %v2264 = vsel %vm745, %v2262, -inf
    %2265 = vmax.xlane.f32.xlu0 %v2264
    %v2266 = vpop.xlane.xlu0 %2265
    %v2267 = vsel %vm745, %v2263, -inf
    %2268 = vmax.xlane.f32.xlu0 %v2267
    %v2269 = vpop.xlane.xlu0 %2268
    %vm2270 = vcmp.ge.f32.partialorder %v2262, %v2266
    %vm2271 = vcmp.ge.f32.partialorder %v2263, %v2269
    %v2272 = vsel %vm2270, -inf, %v2262
    %v2273 = vsel %vm2271, -inf, %v2263
    %v2274 = vsel %vm745, %v2272, -inf
    %2275 = vmax.xlane.f32.xlu0 %v2274
    %v2276 = vpop.xlane.xlu0 %2275
    %v2277 = vsel %vm745, %v2273, -inf
    %2278 = vmax.xlane.f32.xlu0 %v2277
    %v2279 = vpop.xlane.xlu0 %2278
    %vm2280 = vcmp.ge.f32.partialorder %v2272, %v2276
    %vm2281 = vcmp.ge.f32.partialorder %v2273, %v2279
    %v2282 = vsel %vm2280, -inf, %v2272
    %v2283 = vsel %vm2281, -inf, %v2273
    %v2284 = vsel %vm745, %v2282, -inf
    %2285 = vmax.xlane.f32.xlu0 %v2284
    %v2286 = vpop.xlane.xlu0 %2285
    %v2287 = vsel %vm745, %v2283, -inf
    %2288 = vmax.xlane.f32.xlu0 %v2287
    %v2289 = vpop.xlane.xlu0 %2288
    %vm2290 = vcmp.ge.f32.partialorder %v2282, %v2286
    %vm2291 = vcmp.ge.f32.partialorder %v2283, %v2289
    %v2292 = vsel %vm2290, -inf, %v2282
    %v2293 = vsel %vm2291, -inf, %v2283
    %v2294 = vsel %vm745, %v2292, -inf
    %2295 = vmax.xlane.f32.xlu0 %v2294
    %v2296 = vpop.xlane.xlu0 %2295
    %v2297 = vsel %vm745, %v2293, -inf
    %2298 = vmax.xlane.f32.xlu0 %v2297
    %v2299 = vpop.xlane.xlu0 %2298
    %vm2300 = vcmp.ge.f32.partialorder %v2292, %v2296
    %vm2301 = vcmp.ge.f32.partialorder %v2293, %v2299
    %v2302 = vsel %vm2300, -inf, %v2292
    %v2303 = vsel %vm2301, -inf, %v2293
    %v2304 = vsel %vm745, %v2302, -inf
    %2305 = vmax.xlane.f32.xlu0 %v2304
    %v2306 = vpop.xlane.xlu0 %2305
    %v2307 = vsel %vm745, %v2303, -inf
    %2308 = vmax.xlane.f32.xlu0 %v2307
    %v2309 = vpop.xlane.xlu0 %2308
    %vm2310 = vcmp.ge.f32.partialorder %v2302, %v2306
    %vm2311 = vcmp.ge.f32.partialorder %v2303, %v2309
    %v2312 = vsel %vm2310, -inf, %v2302
    %v2313 = vsel %vm2311, -inf, %v2303
    %v2314 = vsel %vm745, %v2312, -inf
    %2315 = vmax.xlane.f32.xlu0 %v2314
    %v2316 = vpop.xlane.xlu0 %2315
    %v2317 = vsel %vm745, %v2313, -inf
    %2318 = vmax.xlane.f32.xlu0 %v2317
    %v2319 = vpop.xlane.xlu0 %2318
    %vm2320 = vcmp.ge.f32.partialorder %v2135, %v2316
    %vm2321 = vcmp.ge.f32.partialorder %v2241, %v2319
    %v2322 = vsub.f32 %v2135, %v2246
    %v2323 = vsub.f32 %v2241, %v2249
    %v2324 = vmul.f32 %v2322, 1.442695
    %v2325 = vpow.pop %v2324
    %v2326 = vmul.f32 %v2323, 1.442695
    %v2327 = vpow.pop %v2326
    %v2328 = vsel %vm2320, %v2325, 0.0
    %v2329 = vsel %vm2321, %v2327, 0.0
    %v2330 = vsel %vm745, %v2328, 0.0
    %2331 = vadd.xlane.f32.xlu0 %v2330
    %v2332 = vpop.xlane.xlu0 %2331
    %v2333 = vsel %vm745, %v2329, 0.0
    %2334 = vadd.xlane.f32.xlu0 %v2333
    %v2335 = vpop.xlane.xlu0 %2334
    %v2336 = vrcp.pop %v2332
    %v2337 = vmul.f32 %v2328, %v2336
    %v2338 = vrcp.pop %v2335
    %v2339 = vmul.f32 %v2329, %v2338
    %2340 = vrot.lane.b32.xlu0 %v472, 104
    %v2341 = vpop.permute.xlu0 %2340
    %2342 = vrot.lane.b32.xlu0 %v477, 104
    %v2343 = vpop.permute.xlu0 %2342
    %2344 = vrot.lane.b32.xlu0 %v482, 104
    %v2345 = vpop.permute.xlu0 %2344
    %2346 = vrot.lane.b32.xlu0 %v487, 104
    %v2347 = vpop.permute.xlu0 %2346
    %2348 = vrot.lane.b32.xlu0 %v492, 104
    %v2349 = vpop.permute.xlu0 %2348
    %2350 = vrot.lane.b32.xlu0 %v497, 104
    %v2351 = vpop.permute.xlu0 %2350
    %2352 = vrot.lane.b32.xlu0 %v502, 104
    %v2353 = vpop.permute.xlu0 %2352
    %2354 = vrot.lane.b32.xlu0 %v507, 104
    %v2355 = vpop.permute.xlu0 %2354
    %v2365 = vsel %vm745, %v2337, 0
    %2367 = vmatprep.subr.mxu0 0.0
    %2368 = vmatpush1.msra.mxu0 %v2341
    %2369 = vmatprep.subr.mxu0 0.0
    %2370 = vmatpush1.msra.mxu0 %v2343
    %2371 = vmatprep.subr.mxu0 0.0
    %2372 = vmatpush1.msra.mxu0 %v2345
    %2373 = vmatprep.subr.mxu0 0.0
    %2374 = vmatpush1.msra.mxu0 %v2347
    %2375 = vmatprep.subr.mxu0 0.0
    %2376 = vmatpush1.msra.mxu0 %v2349
    %2377 = vmatprep.subr.mxu0 0.0
    %2378 = vmatpush1.msra.mxu0 %v2351
    %2379 = vmatprep.subr.mxu0 0.0
    %2380 = vmatpush1.msra.mxu0 %v2353
    %2381 = vmatprep.subr.mxu0 0.0
    %2382 = vmatpush1.msra.mxu0 %v2355
    %2383 = vmatprep.subr.mxu0 0.0
    %2384 = vmatpush1.msra.mxu0 0.0
    %2385 = vmatprep.subr.mxu0 0.0
    %2386 = vmatpush1.msra.mxu0 0.0
    %2387 = vmatprep.subr.mxu0 0.0
    %2388 = vmatpush1.msra.mxu0 0.0
    %2389 = vmatprep.subr.mxu0 0.0
    %2390 = vmatpush1.msra.mxu0 0.0
    %2391 = vmatprep.subr.mxu0 0.0
    %2392 = vmatpush1.msra.mxu0 0.0
    %2393 = vmatprep.subr.mxu0 0.0
    %2394 = vmatpush1.msra.mxu0 0.0
    %2395 = vmatprep.subr.mxu0 0.0
    %2396 = vmatpush1.msra.mxu0 0.0
    %2397 = vmatprep.subr.mxu0 0.0
    %2398 = vmatpush1.msra.mxu0 0.0
    %2399 = vmatprep.subr.mxu0 0.0
    %2400 = vmatpush1.msra.mxu0 0.0
    %2401 = vmatprep.subr.mxu0 0.0
    %2402 = vmatpush1.msra.mxu0 0.0
    %2403 = vmatprep.subr.mxu0 0.0
    %2404 = vmatpush1.msra.mxu0 0.0
    %2405 = vmatprep.subr.mxu0 0.0
    %2406 = vmatpush1.msra.mxu0 0.0
    %2407 = vmatprep.subr.mxu0 0.0
    %2408 = vmatpush1.msra.mxu0 0.0
    %2409 = vmatprep.subr.mxu0 0.0
    %2410 = vmatpush1.msra.mxu0 0.0
    %2411 = vmatprep.subr.mxu0 0.0
    %2412 = vmatpush1.msra.mxu0 0.0
    %2413 = vmatprep.subr.mxu0 0.0
    %2414 = vmatpush1.msra.mxu0 0.0
    %2415 = vmatprep.subr.mxu0 0.0
    %2416 = vmatpush1.msra.mxu0 0.0
    %2417 = vmatprep.subr.mxu0 0.0
    %2418 = vmatpush1.msra.mxu0 0.0
    %2419 = vmatprep.subr.mxu0 0.0
    %2420 = vmatpush1.msra.mxu0 0.0
    %2421 = vmatprep.subr.mxu0 0.0
    %2422 = vmatpush1.msra.mxu0 0.0
    %2423 = vmatprep.subr.mxu0 0.0
    %2424 = vmatpush1.msra.mxu0 0.0
    %2425 = vmatprep.subr.mxu0 0.0
    %2426 = vmatpush1.msra.mxu0 0.0
    %2427 = vmatprep.subr.mxu0 0.0
    %2428 = vmatpush1.msra.mxu0 0.0
    %2429 = vmatprep.subr.mxu0 0.0
    %2430 = vmatpush1.msra.mxu0 0.0
    %2431 = vmatprep.mubr.f32.mxu0 0.0
    %2432 = vmatmul.mubr.f32.gmra.mrb[0].mxu0 %v2365
    %v2433 = vpop.f32.mrb[0].mxu0
    %v2434 = vadd.f32 0.0, %v2433
    %v2435 = vpop.f32.mrb[0].mxu0
    %2436 = vdwg.mxu0
    %2437 = vrot.lane.b32.xlu0 %v512, 104
    %v2438 = vpop.permute.xlu0 %2437
    %2439 = vrot.lane.b32.xlu0 %v517, 104
    %v2440 = vpop.permute.xlu0 %2439
    %2441 = vrot.lane.b32.xlu0 %v522, 104
    %v2442 = vpop.permute.xlu0 %2441
    %2443 = vrot.lane.b32.xlu0 %v527, 104
    %v2444 = vpop.permute.xlu0 %2443
    %2445 = vrot.lane.b32.xlu0 %v532, 104
    %v2446 = vpop.permute.xlu0 %2445
    %2447 = vrot.lane.b32.xlu0 %v537, 104
    %v2448 = vpop.permute.xlu0 %2447
    %2449 = vrot.lane.b32.xlu0 %v542, 104
    %v2450 = vpop.permute.xlu0 %2449
    %2451 = vrot.lane.b32.xlu0 %v547, 104
    %v2452 = vpop.permute.xlu0 %2451
    %v2462 = vsel %vm745, %v2339, 0
    %2464 = vmatprep.subr.mxu0 0.0
    %2465 = vmatpush1.msra.mxu0 %v2438
    %2466 = vmatprep.subr.mxu0 0.0
    %2467 = vmatpush1.msra.mxu0 %v2440
    %2468 = vmatprep.subr.mxu0 0.0
    %2469 = vmatpush1.msra.mxu0 %v2442
    %2470 = vmatprep.subr.mxu0 0.0
    %2471 = vmatpush1.msra.mxu0 %v2444
    %2472 = vmatprep.subr.mxu0 0.0
    %2473 = vmatpush1.msra.mxu0 %v2446
    %2474 = vmatprep.subr.mxu0 0.0
    %2475 = vmatpush1.msra.mxu0 %v2448
    %2476 = vmatprep.subr.mxu0 0.0
    %2477 = vmatpush1.msra.mxu0 %v2450
    %2478 = vmatprep.subr.mxu0 0.0
    %2479 = vmatpush1.msra.mxu0 %v2452
    %2480 = vmatprep.subr.mxu0 0.0
    %2481 = vmatpush1.msra.mxu0 0.0
    %2482 = vmatprep.subr.mxu0 0.0
    %2483 = vmatpush1.msra.mxu0 0.0
    %2484 = vmatprep.subr.mxu0 0.0
    %2485 = vmatpush1.msra.mxu0 0.0
    %2486 = vmatprep.subr.mxu0 0.0
    %2487 = vmatpush1.msra.mxu0 0.0
    %2488 = vmatprep.subr.mxu0 0.0
    %2489 = vmatpush1.msra.mxu0 0.0
    %2490 = vmatprep.subr.mxu0 0.0
    %2491 = vmatpush1.msra.mxu0 0.0
    %2492 = vmatprep.subr.mxu0 0.0
    %2493 = vmatpush1.msra.mxu0 0.0
    %2494 = vmatprep.subr.mxu0 0.0
    %2495 = vmatpush1.msra.mxu0 0.0
    %2496 = vmatprep.subr.mxu0 0.0
    %2497 = vmatpush1.msra.mxu0 0.0
    %2498 = vmatprep.subr.mxu0 0.0
    %2499 = vmatpush1.msra.mxu0 0.0
    %2500 = vmatprep.subr.mxu0 0.0
    %2501 = vmatpush1.msra.mxu0 0.0
    %2502 = vmatprep.subr.mxu0 0.0
    %2503 = vmatpush1.msra.mxu0 0.0
    %2504 = vmatprep.subr.mxu0 0.0
    %2505 = vmatpush1.msra.mxu0 0.0
    %2506 = vmatprep.subr.mxu0 0.0
    %2507 = vmatpush1.msra.mxu0 0.0
    %2508 = vmatprep.subr.mxu0 0.0
    %2509 = vmatpush1.msra.mxu0 0.0
    %2510 = vmatprep.subr.mxu0 0.0
    %2511 = vmatpush1.msra.mxu0 0.0
    %2512 = vmatprep.subr.mxu0 0.0
    %2513 = vmatpush1.msra.mxu0 0.0
    %2514 = vmatprep.subr.mxu0 0.0
    %2515 = vmatpush1.msra.mxu0 0.0
    %2516 = vmatprep.subr.mxu0 0.0
    %2517 = vmatpush1.msra.mxu0 0.0
    %2518 = vmatprep.subr.mxu0 0.0
    %2519 = vmatpush1.msra.mxu0 0.0
    %2520 = vmatprep.subr.mxu0 0.0
    %2521 = vmatpush1.msra.mxu0 0.0
    %2522 = vmatprep.subr.mxu0 0.0
    %2523 = vmatpush1.msra.mxu0 0.0
    %2524 = vmatprep.subr.mxu0 0.0
    %2525 = vmatpush1.msra.mxu0 0.0
    %2526 = vmatprep.subr.mxu0 0.0
    %2527 = vmatpush1.msra.mxu0 0.0
    %2528 = vmatprep.mubr.f32.mxu0 0.0
    %2529 = vmatmul.mubr.f32.gmra.mrb[0].mxu0 %v2462
    %v2530 = vpop.f32.mrb[0].mxu0
    %v2531 = vadd.f32 0.0, %v2530
    %v2532 = vpop.f32.mrb[0].mxu0
    %2533 = vdwg.mxu0
    %2536 = vrot.lane.b32.xlu0 %v2434, 24
    %v2537 = vpop.permute.xlu0 %2536
    %2538 = vrot.lane.b32.xlu0 %v2531, 24
    %v2539 = vpop.permute.xlu0 %2538
    %vm2542 = vcmask 261312
    %2543 = vst.msk [vmem:[#allocation2] sm:$0xff] %vm2542, %v2537
    %2544 = vst.msk [vmem:[#allocation2 + $0x8] sm:$0xff] %vm2542, %v2539
    %v2545 = vld [vmem:[#allocation2] sm:$0xff]
    %v2546 = vld [vmem:[#allocation2 + $0x8] sm:$0xff]
    %s2547 = scalar_lea.vmem %s3, 96
    %v2548 = vld [vmem:[%s2547] sm:$0xff]
    %v2549 = vld [vmem:[%s2547 + $0x8] sm:$0xff]
    %v2550 = vld [vmem:[%s2547 + $0x10] sm:$0xff]
    %v2551 = vld [vmem:[%s2547 + $0x18] sm:$0xff]
    %v2552 = vlaneseq
    %v2553 = vshrl.u32 %v2552, 7
    %v2554 = vsub.s32 3, %v2553
    %v2555 = vrot.slane %v21, %v2554
    %v2557 = vsel %vm64, %v2545, 0
    %v2560 = vsel %vm64, %v2546, 0
    %2562 = vmatprep.subr.mxu0 0.0
    %2563 = vmatpush1.msra.mxu0 %v2548
    %2564 = vmatprep.subr.mxu0 0.0
    %2565 = vmatpush1.msra.mxu0 %v2549
    %2566 = vmatprep.subr.mxu0 0.0
    %2567 = vmatpush1.msra.mxu0 %v2550
    %2568 = vmatprep.subr.mxu0 0.0
    %2569 = vmatpush1.msra.mxu0 %v2551
    %2570 = vmatprep.subr.mxu0 0.0
    %2571 = vmatpush1.msra.mxu0 0.0
    %2572 = vmatprep.subr.mxu0 0.0
    %2573 = vmatpush1.msra.mxu0 0.0
    %2574 = vmatprep.subr.mxu0 0.0
    %2575 = vmatpush1.msra.mxu0 0.0
    %2576 = vmatprep.subr.mxu0 0.0
    %2577 = vmatpush1.msra.mxu0 0.0
    %2578 = vmatprep.subr.mxu0 0.0
    %2579 = vmatpush1.msra.mxu0 0.0
    %2580 = vmatprep.subr.mxu0 0.0
    %2581 = vmatpush1.msra.mxu0 0.0
    %2582 = vmatprep.subr.mxu0 0.0
    %2583 = vmatpush1.msra.mxu0 0.0
    %2584 = vmatprep.subr.mxu0 0.0
    %2585 = vmatpush1.msra.mxu0 0.0
    %2586 = vmatprep.subr.mxu0 0.0
    %2587 = vmatpush1.msra.mxu0 0.0
    %2588 = vmatprep.subr.mxu0 0.0
    %2589 = vmatpush1.msra.mxu0 0.0
    %2590 = vmatprep.subr.mxu0 0.0
    %2591 = vmatpush1.msra.mxu0 0.0
    %2592 = vmatprep.subr.mxu0 0.0
    %2593 = vmatpush1.msra.mxu0 0.0
    %2594 = vmatprep.subr.mxu0 0.0
    %2595 = vmatpush1.msra.mxu0 0.0
    %2596 = vmatprep.subr.mxu0 0.0
    %2597 = vmatpush1.msra.mxu0 0.0
    %2598 = vmatprep.subr.mxu0 0.0
    %2599 = vmatpush1.msra.mxu0 0.0
    %2600 = vmatprep.subr.mxu0 0.0
    %2601 = vmatpush1.msra.mxu0 0.0
    %2602 = vmatprep.subr.mxu0 0.0
    %2603 = vmatpush1.msra.mxu0 0.0
    %2604 = vmatprep.subr.mxu0 0.0
    %2605 = vmatpush1.msra.mxu0 0.0
    %2606 = vmatprep.subr.mxu0 0.0
    %2607 = vmatpush1.msra.mxu0 0.0
    %2608 = vmatprep.subr.mxu0 0.0
    %2609 = vmatpush1.msra.mxu0 0.0
    %2610 = vmatprep.subr.mxu0 0.0
    %2611 = vmatpush1.msra.mxu0 0.0
    %2612 = vmatprep.subr.mxu0 0.0
    %2613 = vmatpush1.msra.mxu0 0.0
    %2614 = vmatprep.subr.mxu0 0.0
    %2615 = vmatpush1.msra.mxu0 0.0
    %2616 = vmatprep.subr.mxu0 0.0
    %2617 = vmatpush1.msra.mxu0 0.0
    %2618 = vmatprep.subr.mxu0 0.0
    %2619 = vmatpush1.msra.mxu0 0.0
    %2620 = vmatprep.subr.mxu0 0.0
    %2621 = vmatpush1.msra.mxu0 0.0
    %2622 = vmatprep.subr.mxu0 0.0
    %2623 = vmatpush1.msra.mxu0 0.0
    %2624 = vmatprep.subr.mxu0 0.0
    %2625 = vmatpush1.msra.mxu0 0.0
    %2626 = vmatprep.mubr.f32.mxu0 0.0
    %2627 = vmatmul.mubr.f32.gmra.mrb[0].mxu0 %v2557
    %v2628 = vpop.f32.mrb[0].mxu0
    %v2629 = vadd.f32 %v2555, %v2628
    %v2630 = vpop.f32.mrb[0].mxu0
    %2631 = vmatprep.mubr.f32.mxu0 0.0
    %2632 = vmatmul.mubr.f32.gmra.mrb[0].mxu0 %v2560
    %v2633 = vpop.f32.mrb[0].mxu0
    %v2634 = vadd.f32 %v2555, %v2633
    %v2635 = vpop.f32.mrb[0].mxu0
    %2636 = vdwg.mxu0
    %2637 = vst.msk [vmem:[#allocation3] sm:$0xff] %vm64, %v2629
    %2638 = vst.msk [vmem:[#allocation3 + $0x8] sm:$0xff] %vm64, %v2634
    // Predicated region
    $region22: #{tpu_custom_call.1} parent=1 // pred_check
      _
    $region23: #{tpu_custom_call.1} parent=1 // pred_check_branch
      %2640 = sbr.rel (0) target = $region25
    $region24: #{tpu_custom_call.1} parent=1 // pred_region
      %s2642 = ssub.s32 256, 256
      %2643 = vsyncadd [#allocation4], %s2642
      %s2644 = sshll.u32 [#allocation3], 4
      %s2645 = int_to_ptr.vmem [resolvable:$true] %s2644
      %2650 = dma.vmem_to_hbm [thread:$0]  %s2645, 256, %s5, [#allocation4], 128, 128, 8
    $region25: #{tpu_custom_call.1} parent=1 // pred_fallthru
      _
    // Predicated region
    $region26: #{tpu_custom_call.1} parent=1 // pred_check
      _
    $region27: #{tpu_custom_call.1} parent=1 // pred_check_branch
      %2652 = sbr.rel (0) target = $region29
    $region28: #{tpu_custom_call.1} parent=1 // pred_region
      %2653 = dma.done [#allocation4], 256
    $region29: #{tpu_custom_call.1} parent=1 // pred_fallthru
      _
    %2654 = vsyncpa [#allocation4], 1

</llo_original>
